<compile_context>
chip_gen: v7x
topology: tpu7x:2x2x1
jax: 0.10.0
libtpu: 0.0.40
codegen_flags: <defaults>
</compile_context>

<pallas_src>
import functools

import jax
import jax.numpy as jnp
import numpy as np
from jax.experimental import pallas as pl
from jax.experimental.pallas import tpu as pltpu

# ----------------------------- synthetic config -------------------------------------
LATENT = 32              # config.model.sdf.decoder.latent_size
HIDDEN = 2 * LATENT      # SimplePointnet(hidden_dim = 2 * latent_size)
WITH_NORMALS = True      # kernel implements the with_normals=True config (ENC_IN = 6)
ENC_IN = 6 if WITH_NORMALS else 3
DEC_HIDDEN = 64          # ImplicitMap hidden width (decoder dims not given in config;
                         # chosen: [3+L, 64, 64, 1], softplus(beta=100), no skip)
SOFTPLUS_BETA = 100.0

B = 2                    # batch
N_MNFLD = 128            # manifold points per shape
N_NONMNFLD = 128         # non-manifold samples per shape (samples_nonmnfld has 7 ch)


# ----------------------------- fused kernel -----------------------------------------
def _implicit_vae_kernel(
        pts_ref, nrm_ref, ptsT_nm_ref, eps_ref,
        # SimplePointnet weights
        wpos_p_ref, wpos_n_ref, bpos_ref,
        w0_ref, b0_ref,
        w1a_ref, w1p_ref, b1_ref,
        w2a_ref, w2p_ref, b2_ref,
        w3a_ref, w3p_ref, b3_ref,
        wm_ref, bm_ref, ws_ref, bs_ref,
        # ImplicitMap weights (stored transposed: channel-major)
        dw1x_ref, dw1z_ref, db1_ref,
        dw2_ref, db2_ref, dw3_ref, db3_ref,
        # outputs
        sdf_ref, mean_ref, latent_ref, reg_ref):
    """One batch element per grid step; everything stays resident in VMEM."""
    dot = functools.partial(jnp.dot, preferred_element_type=jnp.float32)
    relu = lambda v: jnp.maximum(v, 0.0)

    # -------- SimplePointnet encoder (points on sublanes, channels on lanes) --------
    pts = pts_ref[0]                                              # (N, 3)
    nrm = nrm_ref[0]                                              # (N, 3)
    # fc_pos over cat([pts, nrm], -1) folded into a split matmul (no concat in HBM).
    net = dot(pts, wpos_p_ref[...]) + dot(nrm, wpos_n_ref[...]) + bpos_ref[...]  # (N, 2H)
    net = dot(relu(net), w0_ref[...]) + b0_ref[...]                              # (N, H)

    def pool_block(net, wa_ref, wp_ref, b_ref):
        # fc_k(relu(cat([net, maxpool(net)], -1))):
        #   big term     relu(net) @ Wa          -> MXU (N=128 rows)
        #   pooled term  relu(max(net)) @ Wp     -> VPU broadcast-mul + XLU reduce
        r = relu(net)                                             # (N, H)
        pooled_col = jnp.max(r.T, axis=-1, keepdims=True)         # (H, 1) = relu(maxpool)
        pool_row = jnp.sum(pooled_col * wp_ref[...], axis=0, keepdims=True)  # (1, H)
        return dot(r, wa_ref[...]) + pool_row + b_ref[...]        # (N, H)

    net = pool_block(net, w1a_ref, w1p_ref, b1_ref)               # fc_1
    net = pool_block(net, w2a_ref, w2p_ref, b2_ref)               # fc_2
    net = pool_block(net, w3a_ref, w3p_ref, b3_ref)               # fc_3

    # final maxpool over points, then fc_mean / fc_std off the MXU as well
    pooled_col = jnp.max(relu(net).T, axis=-1, keepdims=True)     # (H, 1)
    mean = jnp.sum(pooled_col * wm_ref[...], axis=0, keepdims=True) + bm_ref[...]  # (1, L)
    std = jnp.sum(pooled_col * ws_ref[...], axis=0, keepdims=True) + bs_ref[...]   # (1, L)

    # reparameterization: latent = Normal(mean, exp(std)).rsample() = mean + exp(std)*eps
    lat = mean + jnp.exp(std) * eps_ref[0]                        # (1, L)

    mean_ref[0] = mean
    latent_ref[0] = lat
    # latent_reg = |mean|.mean(-1) + |std + 1|.mean(-1)
    reg_ref[0] = (jnp.mean(jnp.abs(mean), axis=-1, keepdims=True)
                  + jnp.mean(jnp.abs(std + 1.0), axis=-1, keepdims=True))   # (1, 1)

    # -------- ImplicitMap decoder, transposed orientation (lane-dense output) -------
    def softplus_beta(v):
        bv = SOFTPLUS_BETA * v
        safe = jnp.log1p(jnp.exp(jnp.minimum(bv, 20.0))) / SOFTPLUS_BETA
        return jnp.where(bv > 20.0, v, safe)

    ptsT = ptsT_nm_ref[0]                                         # (3, M)
    # latent contribution of layer 1 as a (Hd, 1) column: VPU mul + XLU lane-reduce
    lat_col = jnp.sum(dw1z_ref[...] * lat, axis=-1, keepdims=True)                # (Hd, 1)
    h = dot(dw1x_ref[...], ptsT) + lat_col + db1_ref[...]                         # (Hd, M)
    h = softplus_beta(h)
    h = softplus_beta(dot(dw2_ref[...], h) + db2_ref[...])                        # (Hd, M)
    # final (Hd -> 1) layer as broadcast-mul + sublane-reduce: lane-dense (1, M) row
    sdf_ref[0] = jnp.sum(h * dw3_ref[...], axis=0, keepdims=True) + db3_ref[...]  # (1, M)


def implicit_vae_forward(pts_mnfld, nrm_mnfld, ptsT_nonmnfld, eps, enc_params, dec_params):
    """Fused encoder + rsample + decoder.  Returns (sdf_row, mean, latent, reg)."""
    Bn, N, _ = pts_mnfld.shape
    M = ptsT_nonmnfld.shape[2]
    L = LATENT

    data_specs = [
        pl.BlockSpec((1, N, 3), lambda b: (b, 0, 0)),             # points_mnfld
        pl.BlockSpec((1, N, 3), lambda b: (b, 0, 0)),             # normals_mnfld
        pl.BlockSpec((1, 3, M), lambda b: (b, 0, 0)),             # points_nonmnfld^T
        pl.BlockSpec((1, 1, L), lambda b: (b, 0, 0)),             # eps
    ]
    # weights: full-array blocks with constant index_map -> kept resident in VMEM
    weight_specs = [pl.BlockSpec(p.shape, lambda b: (0, 0))
                    for p in (*enc_params, *dec_params)]

    out_shapes = (jax.ShapeDtypeStruct((Bn, 1, M), jnp.float32),  # sdf (lane-dense row)
                  jax.ShapeDtypeStruct((Bn, 1, L), jnp.float32),  # q_latent_mean
                  jax.ShapeDtypeStruct((Bn, 1, L), jnp.float32),  # latent
                  jax.ShapeDtypeStruct((Bn, 1, 1), jnp.float32))  # latent_reg
    out_specs = [pl.BlockSpec((1, 1, M), lambda b: (b, 0, 0)),
                 pl.BlockSpec((1, 1, L), lambda b: (b, 0, 0)),
                 pl.BlockSpec((1, 1, L), lambda b: (b, 0, 0)),
                 pl.BlockSpec((1, 1, 1), lambda b: (b, 0, 0))]

    return pl.pallas_call(
        _implicit_vae_kernel,
        out_shape=out_shapes,
        grid_spec=pltpu.PrefetchScalarGridSpec(
            num_scalar_prefetch=0, grid=(Bn,),
            in_specs=data_specs + weight_specs,
            out_specs=out_specs),
        compiler_params=pltpu.CompilerParams(dimension_semantics=("parallel",)),
    )(pts_mnfld, nrm_mnfld, ptsT_nonmnfld, eps, *enc_params, *dec_params)


# ----------------------------- parameter init ---------------------------------------
def _linear_init(key, fan_in, fan_out):
    """PyTorch nn.Linear default: U(-1/sqrt(fan_in), 1/sqrt(fan_in))."""
    kw, kb = jax.random.split(key)
    bound = 1.0 / (fan_in ** 0.5)
    w = jax.random.uniform(kw, (fan_in, fan_out), jnp.float32, -bound, bound)
    b = jax.random.uniform(kb, (1, fan_out), jnp.float32, -bound, bound)
    return w, b


def init_params(key):
    keys = jax.random.split(key, 10)
    H, L, Hd = HIDDEN, LATENT, DEC_HIDDEN
    wpos, bpos = _linear_init(keys[0], ENC_IN, 2 * H)    # fc_pos
    w0, b0 = _linear_init(keys[1], 2 * H, H)             # fc_0
    w1, b1 = _linear_init(keys[2], 2 * H, H)             # fc_1
    w2, b2 = _linear_init(keys[3], 2 * H, H)             # fc_2
    w3, b3 = _linear_init(keys[4], 2 * H, H)             # fc_3
    wm, bm = _linear_init(keys[5], H, L)                 # fc_mean
    ws, bs = _linear_init(keys[6], H, L)                 # fc_std
    enc_params = [wpos[:3], wpos[3:], bpos,              # fc_pos split (points | normals)
                  w0, b0,
                  w1[:H], w1[H:], b1,                    # fc_k split (net | pooled)
                  w2[:H], w2[H:], b2,
                  w3[:H], w3[H:], b3,
                  wm, bm, ws, bs]

    wd1, bd1 = _linear_init(keys[7], 3 + L, Hd)          # decoder layer 1
    wd2, bd2 = _linear_init(keys[8], Hd, Hd)
    wd3, bd3 = _linear_init(keys[9], Hd, 1)
    # decoder weights stored transposed (channel-major) for the lane-dense kernel
    dec_params = [jnp.transpose(wd1[:3]),                # (Hd, 3)   xyz part
                  jnp.transpose(wd1[3:]),                # (Hd, L)   latent part
                  jnp.transpose(bd1),                    # (Hd, 1)
                  jnp.transpose(wd2),                    # (Hd, Hd)
                  jnp.transpose(bd2),                    # (Hd, 1)
                  wd3,                                   # (Hd, 1)
                  bd3]                                   # (1, 1)
    return enc_params, dec_params


# ----------------------------- full forward (module semantics) ----------------------
def implicit_generator_forward(batch_dict, enc_params, dec_params, rng):
    points_mnfld = batch_dict['points_mnfld']                     # (B, N, 3)
    normals_mnfld = batch_dict['normals_mnfld']                   # (B, N, 3)
    points_nonmnfld = batch_dict['samples_nonmnfld'][:, :, :3]    # (B, M, 3)
    # layout plumbing only: decoder kernel wants channel-major points so the sdf
    # store is a lane-dense (1, M) row.
    ptsT_nonmnfld = jnp.transpose(points_nonmnfld, (0, 2, 1))     # (B, 3, M)

    Bn = points_mnfld.shape[0]
    eps = jax.random.normal(rng, (Bn, 1, LATENT), jnp.float32)    # N(0,1) for rsample

    sdf_row, mean3, lat3, reg3 = implicit_vae_forward(
        points_mnfld, normals_mnfld, ptsT_nonmnfld, eps, enc_params, dec_params)

    out = dict(batch_dict)
    out['latent'] = lat3[:, 0, :]                                 # (B, L)
    out['latent_reg'] = reg3[:, 0, 0]                             # (B,)
    out['q_latent_mean'] = mean3[:, 0, :]                         # (B, L)
    out['points_nonmnfld'] = points_nonmnfld
    out['sdf_nonmnfld'] = jnp.transpose(sdf_row, (0, 2, 1))       # (B, M, 1)
    return out


# ----------------------------- pure-JAX reference -----------------------------------
def _reference_forward(batch_dict, enc_params, dec_params, rng):
    (wpos_p, wpos_n, bpos, w0, b0, w1a, w1p, b1, w2a, w2p, b2,
     w3a, w3p, b3, wm, bm, ws, bs) = enc_params
    dw1x, dw1z, db1, dw2, db2, dw3, db3 = dec_params
    relu = jax.nn.relu

    def sp(v):
        bv = SOFTPLUS_BETA * v
        return jnp.where(bv > 20.0, v,
                         jnp.log1p(jnp.exp(jnp.minimum(bv, 20.0))) / SOFTPLUS_BETA)

    with jax.default_matmul_precision("float32"):
        pts = batch_dict['points_mnfld']
        nrm = batch_dict['normals_mnfld']
        x = jnp.concatenate([pts, nrm], axis=-1)                  # (B, N, 6)
        wpos = jnp.concatenate([wpos_p, wpos_n], axis=0)          # (6, 2H)
        net = x @ wpos + bpos
        net = relu(net) @ w0 + b0
        for wa, wp, bb in ((w1a, w1p, b1), (w2a, w2p, b2), (w3a, w3p, b3)):
            pooled = jnp.max(net, axis=1, keepdims=True)
            net = relu(net) @ wa + relu(pooled) @ wp + bb
        pooled = relu(jnp.max(net, axis=1, keepdims=True))        # (B, 1, H)
        mean = pooled @ wm + bm                                   # (B, 1, L)
        std = pooled @ ws + bs
        eps = jax.random.normal(rng, mean.shape, jnp.float32)
        lat = mean + jnp.exp(std) * eps
        reg = (jnp.abs(mean).mean(-1) + jnp.abs(std + 1.0).mean(-1))[:, 0]   # (B,)

        p_nm = batch_dict['samples_nonmnfld'][:, :, :3]           # (B, M, 3)
        h = p_nm @ jnp.transpose(dw1x) + lat @ jnp.transpose(dw1z) + jnp.transpose(db1)
        h = sp(h)
        h = sp(h @ jnp.transpose(dw2) + jnp.transpose(db2))
        sdf = h @ dw3 + db3                                       # (B, M, 1)
    return {'q_latent_mean': mean[:, 0, :], 'latent': lat[:, 0, :],
            'latent_reg': reg, 'sdf_nonmnfld': sdf}


# ----------------------------- main --------------------------------------------------
if __name__ == "__main__":
    key = jax.random.PRNGKey(0)
    k_pts, k_nrm, k_smp, k_par, k_eps = jax.random.split(key, 5)

    batch_dict = {
        'points_mnfld': jax.random.normal(k_pts, (B, N_MNFLD, 3), jnp.float32),
        'normals_mnfld': jax.random.normal(k_nrm, (B, N_MNFLD, 3), jnp.float32),
        # samples_nonmnfld: [xyz(3), normal(3), gt_sdf(1)] -> 7 channels
        'samples_nonmnfld': jax.random.normal(k_smp, (B, N_NONMNFLD, 7), jnp.float32),
    }
    enc_params, dec_params = init_params(k_par)

    fwd = jax.jit(implicit_generator_forward)
    out = fwd(batch_dict, enc_params, dec_params, k_eps)
    jax.block_until_ready(out['sdf_nonmnfld'])
    jax.block_until_ready(out['latent'])

    assert out['sdf_nonmnfld'].shape == (B, N_NONMNFLD, 1)
    assert out['latent'].shape == (B, LATENT)
    assert out['q_latent_mean'].shape == (B, LATENT)
    assert out['latent_reg'].shape == (B,)

    # numerical check against a pure-JAX reference of the same forward pass
    ref = _reference_forward(batch_dict, enc_params, dec_params, k_eps)
    np.testing.assert_allclose(np.asarray(out['q_latent_mean']),
                               np.asarray(ref['q_latent_mean']), rtol=1e-3, atol=1e-3)
    np.testing.assert_allclose(np.asarray(out['latent']),
                               np.asarray(ref['latent']), rtol=1e-3, atol=1e-3)
    np.testing.assert_allclose(np.asarray(out['latent_reg']),
                               np.asarray(ref['latent_reg']), rtol=1e-3, atol=1e-3)
    np.testing.assert_allclose(np.asarray(out['sdf_nonmnfld']),
                               np.asarray(ref['sdf_nonmnfld']), rtol=1e-3, atol=1e-3)

    print("KERNEL_OK")
</pallas_src>

<mosaic_0001>
module attributes {stable_mosaic.version = 11 : i64} {
  func.func @_implicit_vae_kernel(%arg0: i32, %arg1: memref<1x128x3xf32, #tpu.memory_space<vmem>>, %arg2: memref<1x128x3xf32, #tpu.memory_space<vmem>>, %arg3: memref<1x3x128xf32, #tpu.memory_space<vmem>>, %arg4: memref<1x1x32xf32, #tpu.memory_space<vmem>>, %arg5: memref<3x128xf32, #tpu.memory_space<vmem>>, %arg6: memref<3x128xf32, #tpu.memory_space<vmem>>, %arg7: memref<1x128xf32, #tpu.memory_space<vmem>>, %arg8: memref<128x64xf32, #tpu.memory_space<vmem>>, %arg9: memref<1x64xf32, #tpu.memory_space<vmem>>, %arg10: memref<64x64xf32, #tpu.memory_space<vmem>>, %arg11: memref<64x64xf32, #tpu.memory_space<vmem>>, %arg12: memref<1x64xf32, #tpu.memory_space<vmem>>, %arg13: memref<64x64xf32, #tpu.memory_space<vmem>>, %arg14: memref<64x64xf32, #tpu.memory_space<vmem>>, %arg15: memref<1x64xf32, #tpu.memory_space<vmem>>, %arg16: memref<64x64xf32, #tpu.memory_space<vmem>>, %arg17: memref<64x64xf32, #tpu.memory_space<vmem>>, %arg18: memref<1x64xf32, #tpu.memory_space<vmem>>, %arg19: memref<64x32xf32, #tpu.memory_space<vmem>>, %arg20: memref<1x32xf32, #tpu.memory_space<vmem>>, %arg21: memref<64x32xf32, #tpu.memory_space<vmem>>, %arg22: memref<1x32xf32, #tpu.memory_space<vmem>>, %arg23: memref<64x3xf32, #tpu.memory_space<vmem>>, %arg24: memref<64x32xf32, #tpu.memory_space<vmem>>, %arg25: memref<64x1xf32, #tpu.memory_space<vmem>>, %arg26: memref<64x64xf32, #tpu.memory_space<vmem>>, %arg27: memref<64x1xf32, #tpu.memory_space<vmem>>, %arg28: memref<64x1xf32, #tpu.memory_space<vmem>>, %arg29: memref<1x1xf32, #tpu.memory_space<vmem>>, %arg30: memref<1x1x128xf32, #tpu.memory_space<vmem>>, %arg31: memref<1x1x32xf32, #tpu.memory_space<vmem>>, %arg32: memref<1x1x32xf32, #tpu.memory_space<vmem>>, %arg33: memref<1x1x1xf32, #tpu.memory_space<vmem>>) attributes {dimension_semantics = [#tpu.dimension_semantics<parallel>], iteration_bounds = array<i64: 2>, scalar_prefetch = 0 : i64, scratch_operands = 0 : i64, tpu.core_type = #tpu.core_type<tc>, window_params = [{transform_indices = @transform_0, window_bounds = array<i64: 1, 128, 3>}, {transform_indices = @transform_1, window_bounds = array<i64: 1, 128, 3>}, {transform_indices = @transform_2, window_bounds = array<i64: 1, 3, 128>}, {transform_indices = @transform_3, window_bounds = array<i64: 1, 1, 32>}, {pipeline_mode = #tpu.pipeline_mode<synchronous>, transform_indices = @transform_4, window_bounds = array<i64: 3, 128>}, {pipeline_mode = #tpu.pipeline_mode<synchronous>, transform_indices = @transform_5, window_bounds = array<i64: 3, 128>}, {pipeline_mode = #tpu.pipeline_mode<synchronous>, transform_indices = @transform_6, window_bounds = array<i64: 1, 128>}, {pipeline_mode = #tpu.pipeline_mode<synchronous>, transform_indices = @transform_7, window_bounds = array<i64: 128, 64>}, {pipeline_mode = #tpu.pipeline_mode<synchronous>, transform_indices = @transform_8, window_bounds = array<i64: 1, 64>}, {pipeline_mode = #tpu.pipeline_mode<synchronous>, transform_indices = @transform_9, window_bounds = array<i64: 64, 64>}, {pipeline_mode = #tpu.pipeline_mode<synchronous>, transform_indices = @transform_10, window_bounds = array<i64: 64, 64>}, {pipeline_mode = #tpu.pipeline_mode<synchronous>, transform_indices = @transform_11, window_bounds = array<i64: 1, 64>}, {pipeline_mode = #tpu.pipeline_mode<synchronous>, transform_indices = @transform_12, window_bounds = array<i64: 64, 64>}, {pipeline_mode = #tpu.pipeline_mode<synchronous>, transform_indices = @transform_13, window_bounds = array<i64: 64, 64>}, {pipeline_mode = #tpu.pipeline_mode<synchronous>, transform_indices = @transform_14, window_bounds = array<i64: 1, 64>}, {pipeline_mode = #tpu.pipeline_mode<synchronous>, transform_indices = @transform_15, window_bounds = array<i64: 64, 64>}, {pipeline_mode = #tpu.pipeline_mode<synchronous>, transform_indices = @transform_16, window_bounds = array<i64: 64, 64>}, {pipeline_mode = #tpu.pipeline_mode<synchronous>, transform_indices = @transform_17, window_bounds = array<i64: 1, 64>}, {pipeline_mode = #tpu.pipeline_mode<synchronous>, transform_indices = @transform_18, window_bounds = array<i64: 64, 32>}, {pipeline_mode = #tpu.pipeline_mode<synchronous>, transform_indices = @transform_19, window_bounds = array<i64: 1, 32>}, {pipeline_mode = #tpu.pipeline_mode<synchronous>, transform_indices = @transform_20, window_bounds = array<i64: 64, 32>}, {pipeline_mode = #tpu.pipeline_mode<synchronous>, transform_indices = @transform_21, window_bounds = array<i64: 1, 32>}, {pipeline_mode = #tpu.pipeline_mode<synchronous>, transform_indices = @transform_22, window_bounds = array<i64: 64, 3>}, {pipeline_mode = #tpu.pipeline_mode<synchronous>, transform_indices = @transform_23, window_bounds = array<i64: 64, 32>}, {pipeline_mode = #tpu.pipeline_mode<synchronous>, transform_indices = @transform_24, window_bounds = array<i64: 64, 1>}, {pipeline_mode = #tpu.pipeline_mode<synchronous>, transform_indices = @transform_25, window_bounds = array<i64: 64, 64>}, {pipeline_mode = #tpu.pipeline_mode<synchronous>, transform_indices = @transform_26, window_bounds = array<i64: 64, 1>}, {pipeline_mode = #tpu.pipeline_mode<synchronous>, transform_indices = @transform_27, window_bounds = array<i64: 64, 1>}, {pipeline_mode = #tpu.pipeline_mode<synchronous>, transform_indices = @transform_28, window_bounds = array<i64: 1, 1>}, {transform_indices = @transform_29, window_bounds = array<i64: 1, 1, 128>}, {transform_indices = @transform_30, window_bounds = array<i64: 1, 1, 32>}, {transform_indices = @transform_31, window_bounds = array<i64: 1, 1, 32>}, {transform_indices = @transform_32, window_bounds = array<i64: 1, 1, 1>}]} {
    %c0 = arith.constant 0 : index
    %c0_0 = arith.constant 0 : index
    %c0_1 = arith.constant 0 : index
    %0 = vector.load %arg1[%c0, %c0_0, %c0_1] : memref<1x128x3xf32, #tpu.memory_space<vmem>>, vector<1x128x3xf32>
    %1 = vector.shape_cast %0 : vector<1x128x3xf32> to vector<128x3xf32>
    %c0_2 = arith.constant 0 : index
    %c0_3 = arith.constant 0 : index
    %c0_4 = arith.constant 0 : index
    %2 = vector.load %arg2[%c0_2, %c0_3, %c0_4] : memref<1x128x3xf32, #tpu.memory_space<vmem>>, vector<1x128x3xf32>
    %3 = vector.shape_cast %2 : vector<1x128x3xf32> to vector<128x3xf32>
    %c0_5 = arith.constant 0 : index
    %c0_6 = arith.constant 0 : index
    %4 = vector.load %arg5[%c0_5, %c0_6] : memref<3x128xf32, #tpu.memory_space<vmem>>, vector<3x128xf32>
    %cst = arith.constant dense<0.000000e+00> : vector<128x128xf32>
    %5 = tpu.matmul %1, %4, %cst {dimension_numbers = #tpu.dot_dimension_numbers<[1], [0], [0], [1], [0, 0, 1, 1], [], []>} : vector<128x3xf32>, vector<3x128xf32>, vector<128x128xf32> -> vector<128x128xf32>
    %c0_7 = arith.constant 0 : index
    %c0_8 = arith.constant 0 : index
    %6 = vector.load %arg6[%c0_7, %c0_8] : memref<3x128xf32, #tpu.memory_space<vmem>>, vector<3x128xf32>
    %cst_9 = arith.constant dense<0.000000e+00> : vector<128x128xf32>
    %7 = tpu.matmul %3, %6, %cst_9 {dimension_numbers = #tpu.dot_dimension_numbers<[1], [0], [0], [1], [0, 0, 1, 1], [], []>} : vector<128x3xf32>, vector<3x128xf32>, vector<128x128xf32> -> vector<128x128xf32>
    %8 = arith.addf %5, %7 : vector<128x128xf32>
    %c0_10 = arith.constant 0 : index
    %c0_11 = arith.constant 0 : index
    %9 = vector.load %arg7[%c0_10, %c0_11] : memref<1x128xf32, #tpu.memory_space<vmem>>, vector<1x128xf32>
    %10 = vector.broadcast %9 : vector<1x128xf32> to vector<128x128xf32>
    %11 = arith.addf %8, %10 : vector<128x128xf32>
    %cst_12 = arith.constant 0.000000e+00 : f32
    %12 = vector.broadcast %cst_12 : f32 to vector<128x128xf32>
    %13 = arith.maximumf %11, %12 : vector<128x128xf32>
    %c0_13 = arith.constant 0 : index
    %c0_14 = arith.constant 0 : index
    %14 = vector.load %arg8[%c0_13, %c0_14] : memref<128x64xf32, #tpu.memory_space<vmem>>, vector<128x64xf32>
    %cst_15 = arith.constant dense<0.000000e+00> : vector<128x64xf32>
    %15 = tpu.matmul %13, %14, %cst_15 {dimension_numbers = #tpu.dot_dimension_numbers<[1], [0], [0], [1], [0, 0, 1, 1], [], []>} : vector<128x128xf32>, vector<128x64xf32>, vector<128x64xf32> -> vector<128x64xf32>
    %c0_16 = arith.constant 0 : index
    %c0_17 = arith.constant 0 : index
    %16 = vector.load %arg9[%c0_16, %c0_17] : memref<1x64xf32, #tpu.memory_space<vmem>>, vector<1x64xf32>
    %17 = vector.broadcast %16 : vector<1x64xf32> to vector<128x64xf32>
    %18 = arith.addf %15, %17 : vector<128x64xf32>
    %cst_18 = arith.constant 0.000000e+00 : f32
    %19 = vector.broadcast %cst_18 : f32 to vector<128x64xf32>
    %20 = arith.maximumf %18, %19 : vector<128x64xf32>
    %21 = tpu.transpose %20, [1, 0] : vector<128x64xf32> -> vector<64x128xf32>
    %cst_19 = arith.constant dense<0xFF800000> : vector<64xf32>
    %22 = vector.multi_reduction <maximumf>, %21, %cst_19 [1] : vector<64x128xf32> to vector<64xf32>
    %23 = vector.shape_cast %22 : vector<64xf32> to vector<64x1xf32>
    %c0_20 = arith.constant 0 : index
    %c0_21 = arith.constant 0 : index
    %24 = vector.load %arg11[%c0_20, %c0_21] : memref<64x64xf32, #tpu.memory_space<vmem>>, vector<64x64xf32>
    %25 = vector.broadcast %23 : vector<64x1xf32> to vector<64x64xf32>
    %26 = arith.mulf %25, %24 : vector<64x64xf32>
    %cst_22 = arith.constant dense<0.000000e+00> : vector<64xf32>
    %27 = vector.multi_reduction <add>, %26, %cst_22 [0] : vector<64x64xf32> to vector<64xf32>
    %28 = vector.shape_cast %27 : vector<64xf32> to vector<1x64xf32>
    %c0_23 = arith.constant 0 : index
    %c0_24 = arith.constant 0 : index
    %29 = vector.load %arg10[%c0_23, %c0_24] : memref<64x64xf32, #tpu.memory_space<vmem>>, vector<64x64xf32>
    %cst_25 = arith.constant dense<0.000000e+00> : vector<128x64xf32>
    %30 = tpu.matmul %20, %29, %cst_25 {dimension_numbers = #tpu.dot_dimension_numbers<[1], [0], [0], [1], [0, 0, 1, 1], [], []>} : vector<128x64xf32>, vector<64x64xf32>, vector<128x64xf32> -> vector<128x64xf32>
    %31 = vector.broadcast %28 : vector<1x64xf32> to vector<128x64xf32>
    %32 = arith.addf %30, %31 : vector<128x64xf32>
    %c0_26 = arith.constant 0 : index
    %c0_27 = arith.constant 0 : index
    %33 = vector.load %arg12[%c0_26, %c0_27] : memref<1x64xf32, #tpu.memory_space<vmem>>, vector<1x64xf32>
    %34 = vector.broadcast %33 : vector<1x64xf32> to vector<128x64xf32>
    %35 = arith.addf %32, %34 : vector<128x64xf32>
    %cst_28 = arith.constant 0.000000e+00 : f32
    %36 = vector.broadcast %cst_28 : f32 to vector<128x64xf32>
    %37 = arith.maximumf %35, %36 : vector<128x64xf32>
    %38 = tpu.transpose %37, [1, 0] : vector<128x64xf32> -> vector<64x128xf32>
    %cst_29 = arith.constant dense<0xFF800000> : vector<64xf32>
    %39 = vector.multi_reduction <maximumf>, %38, %cst_29 [1] : vector<64x128xf32> to vector<64xf32>
    %40 = vector.shape_cast %39 : vector<64xf32> to vector<64x1xf32>
    %c0_30 = arith.constant 0 : index
    %c0_31 = arith.constant 0 : index
    %41 = vector.load %arg14[%c0_30, %c0_31] : memref<64x64xf32, #tpu.memory_space<vmem>>, vector<64x64xf32>
    %42 = vector.broadcast %40 : vector<64x1xf32> to vector<64x64xf32>
    %43 = arith.mulf %42, %41 : vector<64x64xf32>
    %cst_32 = arith.constant dense<0.000000e+00> : vector<64xf32>
    %44 = vector.multi_reduction <add>, %43, %cst_32 [0] : vector<64x64xf32> to vector<64xf32>
    %45 = vector.shape_cast %44 : vector<64xf32> to vector<1x64xf32>
    %c0_33 = arith.constant 0 : index
    %c0_34 = arith.constant 0 : index
    %46 = vector.load %arg13[%c0_33, %c0_34] : memref<64x64xf32, #tpu.memory_space<vmem>>, vector<64x64xf32>
    %cst_35 = arith.constant dense<0.000000e+00> : vector<128x64xf32>
    %47 = tpu.matmul %37, %46, %cst_35 {dimension_numbers = #tpu.dot_dimension_numbers<[1], [0], [0], [1], [0, 0, 1, 1], [], []>} : vector<128x64xf32>, vector<64x64xf32>, vector<128x64xf32> -> vector<128x64xf32>
    %48 = vector.broadcast %45 : vector<1x64xf32> to vector<128x64xf32>
    %49 = arith.addf %47, %48 : vector<128x64xf32>
    %c0_36 = arith.constant 0 : index
    %c0_37 = arith.constant 0 : index
    %50 = vector.load %arg15[%c0_36, %c0_37] : memref<1x64xf32, #tpu.memory_space<vmem>>, vector<1x64xf32>
    %51 = vector.broadcast %50 : vector<1x64xf32> to vector<128x64xf32>
    %52 = arith.addf %49, %51 : vector<128x64xf32>
    %cst_38 = arith.constant 0.000000e+00 : f32
    %53 = vector.broadcast %cst_38 : f32 to vector<128x64xf32>
    %54 = arith.maximumf %52, %53 : vector<128x64xf32>
    %55 = tpu.transpose %54, [1, 0] : vector<128x64xf32> -> vector<64x128xf32>
    %cst_39 = arith.constant dense<0xFF800000> : vector<64xf32>
    %56 = vector.multi_reduction <maximumf>, %55, %cst_39 [1] : vector<64x128xf32> to vector<64xf32>
    %57 = vector.shape_cast %56 : vector<64xf32> to vector<64x1xf32>
    %c0_40 = arith.constant 0 : index
    %c0_41 = arith.constant 0 : index
    %58 = vector.load %arg17[%c0_40, %c0_41] : memref<64x64xf32, #tpu.memory_space<vmem>>, vector<64x64xf32>
    %59 = vector.broadcast %57 : vector<64x1xf32> to vector<64x64xf32>
    %60 = arith.mulf %59, %58 : vector<64x64xf32>
    %cst_42 = arith.constant dense<0.000000e+00> : vector<64xf32>
    %61 = vector.multi_reduction <add>, %60, %cst_42 [0] : vector<64x64xf32> to vector<64xf32>
    %62 = vector.shape_cast %61 : vector<64xf32> to vector<1x64xf32>
    %c0_43 = arith.constant 0 : index
    %c0_44 = arith.constant 0 : index
    %63 = vector.load %arg16[%c0_43, %c0_44] : memref<64x64xf32, #tpu.memory_space<vmem>>, vector<64x64xf32>
    %cst_45 = arith.constant dense<0.000000e+00> : vector<128x64xf32>
    %64 = tpu.matmul %54, %63, %cst_45 {dimension_numbers = #tpu.dot_dimension_numbers<[1], [0], [0], [1], [0, 0, 1, 1], [], []>} : vector<128x64xf32>, vector<64x64xf32>, vector<128x64xf32> -> vector<128x64xf32>
    %65 = vector.broadcast %62 : vector<1x64xf32> to vector<128x64xf32>
    %66 = arith.addf %64, %65 : vector<128x64xf32>
    %c0_46 = arith.constant 0 : index
    %c0_47 = arith.constant 0 : index
    %67 = vector.load %arg18[%c0_46, %c0_47] : memref<1x64xf32, #tpu.memory_space<vmem>>, vector<1x64xf32>
    %68 = vector.broadcast %67 : vector<1x64xf32> to vector<128x64xf32>
    %69 = arith.addf %66, %68 : vector<128x64xf32>
    %cst_48 = arith.constant 0.000000e+00 : f32
    %70 = vector.broadcast %cst_48 : f32 to vector<128x64xf32>
    %71 = arith.maximumf %69, %70 : vector<128x64xf32>
    %72 = tpu.transpose %71, [1, 0] : vector<128x64xf32> -> vector<64x128xf32>
    %cst_49 = arith.constant dense<0xFF800000> : vector<64xf32>
    %73 = vector.multi_reduction <maximumf>, %72, %cst_49 [1] : vector<64x128xf32> to vector<64xf32>
    %74 = vector.shape_cast %73 : vector<64xf32> to vector<64x1xf32>
    %c0_50 = arith.constant 0 : index
    %c0_51 = arith.constant 0 : index
    %75 = vector.load %arg19[%c0_50, %c0_51] : memref<64x32xf32, #tpu.memory_space<vmem>>, vector<64x32xf32>
    %76 = vector.broadcast %74 : vector<64x1xf32> to vector<64x32xf32>
    %77 = arith.mulf %76, %75 : vector<64x32xf32>
    %cst_52 = arith.constant dense<0.000000e+00> : vector<32xf32>
    %78 = vector.multi_reduction <add>, %77, %cst_52 [0] : vector<64x32xf32> to vector<32xf32>
    %79 = vector.shape_cast %78 : vector<32xf32> to vector<1x32xf32>
    %c0_53 = arith.constant 0 : index
    %c0_54 = arith.constant 0 : index
    %80 = vector.load %arg20[%c0_53, %c0_54] : memref<1x32xf32, #tpu.memory_space<vmem>>, vector<1x32xf32>
    %81 = arith.addf %79, %80 : vector<1x32xf32>
    %c0_55 = arith.constant 0 : index
    %c0_56 = arith.constant 0 : index
    %82 = vector.load %arg21[%c0_55, %c0_56] : memref<64x32xf32, #tpu.memory_space<vmem>>, vector<64x32xf32>
    %83 = vector.broadcast %74 : vector<64x1xf32> to vector<64x32xf32>
    %84 = arith.mulf %83, %82 : vector<64x32xf32>
    %cst_57 = arith.constant dense<0.000000e+00> : vector<32xf32>
    %85 = vector.multi_reduction <add>, %84, %cst_57 [0] : vector<64x32xf32> to vector<32xf32>
    %86 = vector.shape_cast %85 : vector<32xf32> to vector<1x32xf32>
    %c0_58 = arith.constant 0 : index
    %c0_59 = arith.constant 0 : index
    %87 = vector.load %arg22[%c0_58, %c0_59] : memref<1x32xf32, #tpu.memory_space<vmem>>, vector<1x32xf32>
    %88 = arith.addf %86, %87 : vector<1x32xf32>
    %89 = math.exp %88 : vector<1x32xf32>
    %c0_60 = arith.constant 0 : index
    %c0_61 = arith.constant 0 : index
    %c0_62 = arith.constant 0 : index
    %90 = vector.load %arg4[%c0_60, %c0_61, %c0_62] : memref<1x1x32xf32, #tpu.memory_space<vmem>>, vector<1x1x32xf32>
    %91 = vector.shape_cast %90 : vector<1x1x32xf32> to vector<1x32xf32>
    %92 = arith.mulf %89, %91 : vector<1x32xf32>
    %93 = arith.addf %81, %92 : vector<1x32xf32>
    %c0_63 = arith.constant 0 : index
    %c0_64 = arith.constant 0 : index
    %c0_65 = arith.constant 0 : index
    %94 = vector.load %arg31[%c0_63, %c0_64, %c0_65] : memref<1x1x32xf32, #tpu.memory_space<vmem>>, vector<1x1x32xf32>
    %95 = vector.shape_cast %94 : vector<1x1x32xf32> to vector<1x32xf32>
    %96 = vector.shape_cast %81 : vector<1x32xf32> to vector<1x1x32xf32>
    tpu.vector_store %arg31[%c0_63, %c0_64, %c0_65], %96 {strides = array<i32>} : memref<1x1x32xf32, #tpu.memory_space<vmem>>, vector<1x1x32xf32>,
    %c0_66 = arith.constant 0 : index
    %c0_67 = arith.constant 0 : index
    %c0_68 = arith.constant 0 : index
    %97 = vector.load %arg32[%c0_66, %c0_67, %c0_68] : memref<1x1x32xf32, #tpu.memory_space<vmem>>, vector<1x1x32xf32>
    %98 = vector.shape_cast %97 : vector<1x1x32xf32> to vector<1x32xf32>
    %99 = vector.shape_cast %93 : vector<1x32xf32> to vector<1x1x32xf32>
    tpu.vector_store %arg32[%c0_66, %c0_67, %c0_68], %99 {strides = array<i32>} : memref<1x1x32xf32, #tpu.memory_space<vmem>>, vector<1x1x32xf32>,
    %100 = math.absf %81 : vector<1x32xf32>
    %cst_69 = arith.constant dense<0.000000e+00> : vector<1xf32>
    %101 = vector.multi_reduction <add>, %100, %cst_69 [1] : vector<1x32xf32> to vector<1xf32>
    %102 = vector.shape_cast %101 : vector<1xf32> to vector<1x1xf32>
    %cst_70 = arith.constant 3.200000e+01 : f32
    %103 = vector.broadcast %cst_70 : f32 to vector<1x1xf32>
    %104 = arith.divf %102, %103 : vector<1x1xf32>
    %cst_71 = arith.constant 1.000000e+00 : f32
    %105 = vector.broadcast %cst_71 : f32 to vector<1x32xf32>
    %106 = arith.addf %88, %105 : vector<1x32xf32>
    %107 = math.absf %106 : vector<1x32xf32>
    %cst_72 = arith.constant dense<0.000000e+00> : vector<1xf32>
    %108 = vector.multi_reduction <add>, %107, %cst_72 [1] : vector<1x32xf32> to vector<1xf32>
    %109 = vector.shape_cast %108 : vector<1xf32> to vector<1x1xf32>
    %cst_73 = arith.constant 3.200000e+01 : f32
    %110 = vector.broadcast %cst_73 : f32 to vector<1x1xf32>
    %111 = arith.divf %109, %110 : vector<1x1xf32>
    %112 = arith.addf %104, %111 : vector<1x1xf32>
    %c0_74 = arith.constant 0 : index
    %c0_75 = arith.constant 0 : index
    %c0_76 = arith.constant 0 : index
    %113 = vector.load %arg33[%c0_74, %c0_75, %c0_76] : memref<1x1x1xf32, #tpu.memory_space<vmem>>, vector<1x1x1xf32>
    %114 = vector.shape_cast %113 : vector<1x1x1xf32> to vector<1x1xf32>
    %115 = vector.shape_cast %112 : vector<1x1xf32> to vector<1x1x1xf32>
    tpu.vector_store %arg33[%c0_74, %c0_75, %c0_76], %115 {strides = array<i32>} : memref<1x1x1xf32, #tpu.memory_space<vmem>>, vector<1x1x1xf32>,
    %c0_77 = arith.constant 0 : index
    %c0_78 = arith.constant 0 : index
    %c0_79 = arith.constant 0 : index
    %116 = vector.load %arg3[%c0_77, %c0_78, %c0_79] : memref<1x3x128xf32, #tpu.memory_space<vmem>>, vector<1x3x128xf32>
    %117 = vector.shape_cast %116 : vector<1x3x128xf32> to vector<3x128xf32>
    %c0_80 = arith.constant 0 : index
    %c0_81 = arith.constant 0 : index
    %118 = vector.load %arg24[%c0_80, %c0_81] : memref<64x32xf32, #tpu.memory_space<vmem>>, vector<64x32xf32>
    %119 = vector.broadcast %93 : vector<1x32xf32> to vector<64x32xf32>
    %120 = arith.mulf %118, %119 : vector<64x32xf32>
    %cst_82 = arith.constant dense<0.000000e+00> : vector<64xf32>
    %121 = vector.multi_reduction <add>, %120, %cst_82 [1] : vector<64x32xf32> to vector<64xf32>
    %122 = vector.shape_cast %121 : vector<64xf32> to vector<64x1xf32>
    %c0_83 = arith.constant 0 : index
    %c0_84 = arith.constant 0 : index
    %123 = vector.load %arg23[%c0_83, %c0_84] : memref<64x3xf32, #tpu.memory_space<vmem>>, vector<64x3xf32>
    %cst_85 = arith.constant dense<0.000000e+00> : vector<64x128xf32>
    %124 = tpu.matmul %123, %117, %cst_85 {dimension_numbers = #tpu.dot_dimension_numbers<[1], [0], [0], [1], [0, 0, 1, 1], [], []>} : vector<64x3xf32>, vector<3x128xf32>, vector<64x128xf32> -> vector<64x128xf32>
    %125 = vector.broadcast %122 : vector<64x1xf32> to vector<64x128xf32>
    %126 = arith.addf %124, %125 : vector<64x128xf32>
    %c0_86 = arith.constant 0 : index
    %c0_87 = arith.constant 0 : index
    %127 = vector.load %arg25[%c0_86, %c0_87] : memref<64x1xf32, #tpu.memory_space<vmem>>, vector<64x1xf32>
    %128 = vector.broadcast %127 : vector<64x1xf32> to vector<64x128xf32>
    %129 = arith.addf %126, %128 : vector<64x128xf32>
    %cst_88 = arith.constant 1.000000e+02 : f32
    %130 = vector.broadcast %cst_88 : f32 to vector<64x128xf32>
    %131 = arith.mulf %130, %129 : vector<64x128xf32>
    %cst_89 = arith.constant 2.000000e+01 : f32
    %132 = vector.broadcast %cst_89 : f32 to vector<64x128xf32>
    %133 = arith.minimumf %131, %132 : vector<64x128xf32>
    %134 = math.exp %133 : vector<64x128xf32>
    %135 = math.log1p %134 : vector<64x128xf32>
    %cst_90 = arith.constant 1.000000e+02 : f32
    %136 = vector.broadcast %cst_90 : f32 to vector<64x128xf32>
    %137 = arith.divf %135, %136 : vector<64x128xf32>
    %cst_91 = arith.constant 2.000000e+01 : f32
    %138 = vector.broadcast %cst_91 : f32 to vector<64x128xf32>
    %139 = arith.cmpf ogt, %131, %138 : vector<64x128xf32>
    %140 = arith.select %139, %129, %137 : vector<64x128xi1>, vector<64x128xf32>
    %c0_92 = arith.constant 0 : index
    %c0_93 = arith.constant 0 : index
    %141 = vector.load %arg26[%c0_92, %c0_93] : memref<64x64xf32, #tpu.memory_space<vmem>>, vector<64x64xf32>
    %cst_94 = arith.constant dense<0.000000e+00> : vector<64x128xf32>
    %142 = tpu.matmul %141, %140, %cst_94 {dimension_numbers = #tpu.dot_dimension_numbers<[1], [0], [0], [1], [0, 0, 1, 1], [], []>} : vector<64x64xf32>, vector<64x128xf32>, vector<64x128xf32> -> vector<64x128xf32>
    %c0_95 = arith.constant 0 : index
    %c0_96 = arith.constant 0 : index
    %143 = vector.load %arg27[%c0_95, %c0_96] : memref<64x1xf32, #tpu.memory_space<vmem>>, vector<64x1xf32>
    %144 = vector.broadcast %143 : vector<64x1xf32> to vector<64x128xf32>
    %145 = arith.addf %142, %144 : vector<64x128xf32>
    %cst_97 = arith.constant 1.000000e+02 : f32
    %146 = vector.broadcast %cst_97 : f32 to vector<64x128xf32>
    %147 = arith.mulf %146, %145 : vector<64x128xf32>
    %cst_98 = arith.constant 2.000000e+01 : f32
    %148 = vector.broadcast %cst_98 : f32 to vector<64x128xf32>
    %149 = arith.minimumf %147, %148 : vector<64x128xf32>
    %150 = math.exp %149 : vector<64x128xf32>
    %151 = math.log1p %150 : vector<64x128xf32>
    %cst_99 = arith.constant 1.000000e+02 : f32
    %152 = vector.broadcast %cst_99 : f32 to vector<64x128xf32>
    %153 = arith.divf %151, %152 : vector<64x128xf32>
    %cst_100 = arith.constant 2.000000e+01 : f32
    %154 = vector.broadcast %cst_100 : f32 to vector<64x128xf32>
    %155 = arith.cmpf ogt, %147, %154 : vector<64x128xf32>
    %156 = arith.select %155, %145, %153 : vector<64x128xi1>, vector<64x128xf32>
    %c0_101 = arith.constant 0 : index
    %c0_102 = arith.constant 0 : index
    %157 = vector.load %arg28[%c0_101, %c0_102] : memref<64x1xf32, #tpu.memory_space<vmem>>, vector<64x1xf32>
    %158 = vector.broadcast %157 : vector<64x1xf32> to vector<64x128xf32>
    %159 = arith.mulf %156, %158 : vector<64x128xf32>
    %cst_103 = arith.constant dense<0.000000e+00> : vector<128xf32>
    %160 = vector.multi_reduction <add>, %159, %cst_103 [0] : vector<64x128xf32> to vector<128xf32>
    %161 = vector.shape_cast %160 : vector<128xf32> to vector<1x128xf32>
    %c0_104 = arith.constant 0 : index
    %c0_105 = arith.constant 0 : index
    %162 = vector.load %arg29[%c0_104, %c0_105] : memref<1x1xf32, #tpu.memory_space<vmem>>, vector<1x1xf32>
    %163 = vector.broadcast %162 : vector<1x1xf32> to vector<1x128xf32>
    %164 = arith.addf %161, %163 : vector<1x128xf32>
    %c0_106 = arith.constant 0 : index
    %c0_107 = arith.constant 0 : index
    %c0_108 = arith.constant 0 : index
    %165 = vector.load %arg30[%c0_106, %c0_107, %c0_108] : memref<1x1x128xf32, #tpu.memory_space<vmem>>, vector<1x1x128xf32>
    %166 = vector.shape_cast %165 : vector<1x1x128xf32> to vector<1x128xf32>
    %167 = vector.shape_cast %164 : vector<1x128xf32> to vector<1x1x128xf32>
    tpu.vector_store %arg30[%c0_106, %c0_107, %c0_108], %167 {strides = array<i32>} : memref<1x1x128xf32, #tpu.memory_space<vmem>>, vector<1x1x128xf32>,
    return
  }
  func.func @transform_0(%arg0: i32) -> (i32, i32, i32) {
    %c0_i32 = arith.constant 0 : i32
    %c0_i32_0 = arith.constant 0 : i32
    %c0_i32_1 = arith.constant 0 : i32
    return %arg0, %c0_i32, %c0_i32_0 : i32, i32, i32
  }
  func.func @transform_1(%arg0: i32) -> (i32, i32, i32) {
    %c0_i32 = arith.constant 0 : i32
    %c0_i32_0 = arith.constant 0 : i32
    %c0_i32_1 = arith.constant 0 : i32
    return %arg0, %c0_i32, %c0_i32_0 : i32, i32, i32
  }
  func.func @transform_2(%arg0: i32) -> (i32, i32, i32) {
    %c0_i32 = arith.constant 0 : i32
    %c0_i32_0 = arith.constant 0 : i32
    %c0_i32_1 = arith.constant 0 : i32
    return %arg0, %c0_i32, %c0_i32_0 : i32, i32, i32
  }
  func.func @transform_3(%arg0: i32) -> (i32, i32, i32) {
    %c0_i32 = arith.constant 0 : i32
    %c0_i32_0 = arith.constant 0 : i32
    %c0_i32_1 = arith.constant 0 : i32
    return %arg0, %c0_i32, %c0_i32_0 : i32, i32, i32
  }
  func.func @transform_4(%arg0: i32) -> (i32, i32) {
    %c0_i32 = arith.constant 0 : i32
    %c0_i32_0 = arith.constant 0 : i32
    %c0_i32_1 = arith.constant 0 : i32
    return %c0_i32, %c0_i32_0 : i32, i32
  }
  func.func @transform_5(%arg0: i32) -> (i32, i32) {
    %c0_i32 = arith.constant 0 : i32
    %c0_i32_0 = arith.constant 0 : i32
    %c0_i32_1 = arith.constant 0 : i32
    return %c0_i32, %c0_i32_0 : i32, i32
  }
  func.func @transform_6(%arg0: i32) -> (i32, i32) {
    %c0_i32 = arith.constant 0 : i32
    %c0_i32_0 = arith.constant 0 : i32
    %c0_i32_1 = arith.constant 0 : i32
    return %c0_i32, %c0_i32_0 : i32, i32
  }
  func.func @transform_7(%arg0: i32) -> (i32, i32) {
    %c0_i32 = arith.constant 0 : i32
    %c0_i32_0 = arith.constant 0 : i32
    %c0_i32_1 = arith.constant 0 : i32
    return %c0_i32, %c0_i32_0 : i32, i32
  }
  func.func @transform_8(%arg0: i32) -> (i32, i32) {
    %c0_i32 = arith.constant 0 : i32
    %c0_i32_0 = arith.constant 0 : i32
    %c0_i32_1 = arith.constant 0 : i32
    return %c0_i32, %c0_i32_0 : i32, i32
  }
  func.func @transform_9(%arg0: i32) -> (i32, i32) {
    %c0_i32 = arith.constant 0 : i32
    %c0_i32_0 = arith.constant 0 : i32
    %c0_i32_1 = arith.constant 0 : i32
    return %c0_i32, %c0_i32_0 : i32, i32
  }
  func.func @transform_10(%arg0: i32) -> (i32, i32) {
    %c0_i32 = arith.constant 0 : i32
    %c0_i32_0 = arith.constant 0 : i32
    %c0_i32_1 = arith.constant 0 : i32
    return %c0_i32, %c0_i32_0 : i32, i32
  }
  func.func @transform_11(%arg0: i32) -> (i32, i32) {
    %c0_i32 = arith.constant 0 : i32
    %c0_i32_0 = arith.constant 0 : i32
    %c0_i32_1 = arith.constant 0 : i32
    return %c0_i32, %c0_i32_0 : i32, i32
  }
  func.func @transform_12(%arg0: i32) -> (i32, i32) {
    %c0_i32 = arith.constant 0 : i32
    %c0_i32_0 = arith.constant 0 : i32
    %c0_i32_1 = arith.constant 0 : i32
    return %c0_i32, %c0_i32_0 : i32, i32
  }
  func.func @transform_13(%arg0: i32) -> (i32, i32) {
    %c0_i32 = arith.constant 0 : i32
    %c0_i32_0 = arith.constant 0 : i32
    %c0_i32_1 = arith.constant 0 : i32
    return %c0_i32, %c0_i32_0 : i32, i32
  }
  func.func @transform_14(%arg0: i32) -> (i32, i32) {
    %c0_i32 = arith.constant 0 : i32
    %c0_i32_0 = arith.constant 0 : i32
    %c0_i32_1 = arith.constant 0 : i32
    return %c0_i32, %c0_i32_0 : i32, i32
  }
  func.func @transform_15(%arg0: i32) -> (i32, i32) {
    %c0_i32 = arith.constant 0 : i32
    %c0_i32_0 = arith.constant 0 : i32
    %c0_i32_1 = arith.constant 0 : i32
    return %c0_i32, %c0_i32_0 : i32, i32
  }
  func.func @transform_16(%arg0: i32) -> (i32, i32) {
    %c0_i32 = arith.constant 0 : i32
    %c0_i32_0 = arith.constant 0 : i32
    %c0_i32_1 = arith.constant 0 : i32
    return %c0_i32, %c0_i32_0 : i32, i32
  }
  func.func @transform_17(%arg0: i32) -> (i32, i32) {
    %c0_i32 = arith.constant 0 : i32
    %c0_i32_0 = arith.constant 0 : i32
    %c0_i32_1 = arith.constant 0 : i32
    return %c0_i32, %c0_i32_0 : i32, i32
  }
  func.func @transform_18(%arg0: i32) -> (i32, i32) {
    %c0_i32 = arith.constant 0 : i32
    %c0_i32_0 = arith.constant 0 : i32
    %c0_i32_1 = arith.constant 0 : i32
    return %c0_i32, %c0_i32_0 : i32, i32
  }
  func.func @transform_19(%arg0: i32) -> (i32, i32) {
    %c0_i32 = arith.constant 0 : i32
    %c0_i32_0 = arith.constant 0 : i32
    %c0_i32_1 = arith.constant 0 : i32
    return %c0_i32, %c0_i32_0 : i32, i32
  }
  func.func @transform_20(%arg0: i32) -> (i32, i32) {
    %c0_i32 = arith.constant 0 : i32
    %c0_i32_0 = arith.constant 0 : i32
    %c0_i32_1 = arith.constant 0 : i32
    return %c0_i32, %c0_i32_0 : i32, i32
  }
  func.func @transform_21(%arg0: i32) -> (i32, i32) {
    %c0_i32 = arith.constant 0 : i32
    %c0_i32_0 = arith.constant 0 : i32
    %c0_i32_1 = arith.constant 0 : i32
    return %c0_i32, %c0_i32_0 : i32, i32
  }
  func.func @transform_22(%arg0: i32) -> (i32, i32) {
    %c0_i32 = arith.constant 0 : i32
    %c0_i32_0 = arith.constant 0 : i32
    %c0_i32_1 = arith.constant 0 : i32
    return %c0_i32, %c0_i32_0 : i32, i32
  }
  func.func @transform_23(%arg0: i32) -> (i32, i32) {
    %c0_i32 = arith.constant 0 : i32
    %c0_i32_0 = arith.constant 0 : i32
    %c0_i32_1 = arith.constant 0 : i32
    return %c0_i32, %c0_i32_0 : i32, i32
  }
  func.func @transform_24(%arg0: i32) -> (i32, i32) {
    %c0_i32 = arith.constant 0 : i32
    %c0_i32_0 = arith.constant 0 : i32
    %c0_i32_1 = arith.constant 0 : i32
    return %c0_i32, %c0_i32_0 : i32, i32
  }
  func.func @transform_25(%arg0: i32) -> (i32, i32) {
    %c0_i32 = arith.constant 0 : i32
    %c0_i32_0 = arith.constant 0 : i32
    %c0_i32_1 = arith.constant 0 : i32
    return %c0_i32, %c0_i32_0 : i32, i32
  }
  func.func @transform_26(%arg0: i32) -> (i32, i32) {
    %c0_i32 = arith.constant 0 : i32
    %c0_i32_0 = arith.constant 0 : i32
    %c0_i32_1 = arith.constant 0 : i32
    return %c0_i32, %c0_i32_0 : i32, i32
  }
  func.func @transform_27(%arg0: i32) -> (i32, i32) {
    %c0_i32 = arith.constant 0 : i32
    %c0_i32_0 = arith.constant 0 : i32
    %c0_i32_1 = arith.constant 0 : i32
    return %c0_i32, %c0_i32_0 : i32, i32
  }
  func.func @transform_28(%arg0: i32) -> (i32, i32) {
    %c0_i32 = arith.constant 0 : i32
    %c0_i32_0 = arith.constant 0 : i32
    %c0_i32_1 = arith.constant 0 : i32
    return %c0_i32, %c0_i32_0 : i32, i32
  }
  func.func @transform_29(%arg0: i32) -> (i32, i32, i32) {
    %c0_i32 = arith.constant 0 : i32
    %c0_i32_0 = arith.constant 0 : i32
    %c0_i32_1 = arith.constant 0 : i32
    return %arg0, %c0_i32, %c0_i32_0 : i32, i32, i32
  }
  func.func @transform_30(%arg0: i32) -> (i32, i32, i32) {
    %c0_i32 = arith.constant 0 : i32
    %c0_i32_0 = arith.constant 0 : i32
    %c0_i32_1 = arith.constant 0 : i32
    return %arg0, %c0_i32, %c0_i32_0 : i32, i32, i32
  }
  func.func @transform_31(%arg0: i32) -> (i32, i32, i32) {
    %c0_i32 = arith.constant 0 : i32
    %c0_i32_0 = arith.constant 0 : i32
    %c0_i32_1 = arith.constant 0 : i32
    return %arg0, %c0_i32, %c0_i32_0 : i32, i32, i32
  }
  func.func @transform_32(%arg0: i32) -> (i32, i32, i32) {
    %c0_i32 = arith.constant 0 : i32
    %c0_i32_0 = arith.constant 0 : i32
    %c0_i32_1 = arith.constant 0 : i32
    return %arg0, %c0_i32, %c0_i32_0 : i32, i32, i32
  }
}

</mosaic_0001>

<llo_original>
// kernel: implicit_generator_forward.1
$region0: #{implicit_generator_forward.1}
  #allocation0 [shape = 'u32[]', space=smem, size = 0x4, offset = 0x4, fixed_abs, tag = 'smem constant byte address 0x4 - core index']
  #allocation1 [shape = 'u32[144,128]{1,0:T(1,128)}', space=vmem, size = 0x12000, scoped, tag = 'internal scratch']
  #allocation2 [shape = 'f32[1,1]{1,0:T(1,128)S(1)}', space=vmem, size = 0x200, scoped, tag = 'scoped memory for implicit_generator_forward.1']
  %s0 = inlined_call_operand.smem [shape: u32[33], index: -1, kind: input, shape index: {}]
  %s1 = sld [smem:[%s0]]
  %s2 = scalar_lea.smem %s0, 1
  %s3 = sld [smem:[%s2]]
  %s4 = scalar_lea.smem %s0, 2
  %s5 = sld [smem:[%s4]]
  %s6 = scalar_lea.smem %s0, 3
  %s7 = sld [smem:[%s6]]
  %s8 = scalar_lea.smem %s0, 4
  %s9 = sld [smem:[%s8]]
  %s10 = scalar_lea.smem %s0, 5
  %s11 = sld [smem:[%s10]]
  %s12 = scalar_lea.smem %s0, 6
  %s13 = sld [smem:[%s12]]
  %s14 = scalar_lea.smem %s0, 7
  %s15 = sld [smem:[%s14]]
  %s16 = scalar_lea.smem %s0, 8
  %s17 = sld [smem:[%s16]]
  %s18 = scalar_lea.smem %s0, 9
  %s19 = sld [smem:[%s18]]
  %s20 = scalar_lea.smem %s0, 10
  %s21 = sld [smem:[%s20]]
  %s22 = scalar_lea.smem %s0, 11
  %s23 = sld [smem:[%s22]]
  %s24 = scalar_lea.smem %s0, 12
  %s25 = sld [smem:[%s24]]
  %s26 = scalar_lea.smem %s0, 13
  %s27 = sld [smem:[%s26]]
  %s28 = scalar_lea.smem %s0, 14
  %s29 = sld [smem:[%s28]]
  %s30 = scalar_lea.smem %s0, 15
  %s31 = sld [smem:[%s30]]
  %s32 = scalar_lea.smem %s0, 16
  %s33 = sld [smem:[%s32]]
  %s34 = scalar_lea.smem %s0, 17
  %s35 = sld [smem:[%s34]]
  %s36 = scalar_lea.smem %s0, 18
  %s37 = sld [smem:[%s36]]
  %s38 = scalar_lea.smem %s0, 19
  %s39 = sld [smem:[%s38]]
  %s40 = scalar_lea.smem %s0, 20
  %s41 = sld [smem:[%s40]]
  %s42 = scalar_lea.smem %s0, 21
  %s43 = sld [smem:[%s42]]
  %s44 = scalar_lea.smem %s0, 22
  %s45 = sld [smem:[%s44]]
  %s46 = scalar_lea.smem %s0, 23
  %s47 = sld [smem:[%s46]]
  %s48 = scalar_lea.smem %s0, 24
  %s49 = sld [smem:[%s48]]
  %s50 = scalar_lea.smem %s0, 25
  %s51 = sld [smem:[%s50]]
  %s52 = scalar_lea.smem %s0, 26
  %s53 = sld [smem:[%s52]]
  %s54 = scalar_lea.smem %s0, 27
  %s55 = sld [smem:[%s54]]
  %s56 = scalar_lea.smem %s0, 28
  %s57 = sld [smem:[%s56]]
  %s58 = scalar_lea.smem %s0, 29
  %s59 = sld [smem:[%s58]]
  %s60 = scalar_lea.smem %s0, 30
  %s61 = sld [smem:[%s60]]
  %s62 = scalar_lea.smem %s0, 31
  %s63 = sld [smem:[%s62]]
  %s64 = scalar_lea.smem %s0, 32
  %s65 = sld [smem:[%s64]]
  %66 = xla_tuple %s59, %s61, %s63, %s65
  %s67 = sld [smem:[#allocation0]]
  $region173: #{implicit_generator_forward.1} parent=0
    _
  %s69 = ssub.s32 1, %s67
  %s70 = scalar_select 0, %s69, %s67
  %v71 = vstv %s57
  %72 = vst [vmem:[#allocation2] sm:$0x1] %v71
  $region1: #{implicit_generator_forward.1} parent=0
    #allocation3 [shape = 'u8[1024]{0}', space=vmem, size = 0x400, scoped, tag = 'output window, operand 0']
    #allocation4 [shape = 's32[2]{0}', space=sflag, size = 0x8, scoped, tag = 'scoped memory for implicit_generator_forward.1']
    #allocation5 [shape = 'u8[1024]{0}', space=vmem, size = 0x400, scoped, tag = 'output window, operand 1']
    #allocation6 [shape = 's32[2]{0}', space=sflag, size = 0x8, scoped, tag = 'scoped memory for implicit_generator_forward.1']
    #allocation7 [shape = 'u8[1024]{0}', space=vmem, size = 0x400, scoped, tag = 'output window, operand 2']
    %73 = vsyncpa [#allocation4], 0
    %s74 = scalar_lea.sflag [#allocation4], 1
    %75 = vsyncpa %s74, 0
    %76 = vsyncpa [#allocation6], 0
    %s77 = scalar_lea.sflag [#allocation6], 1
    %78 = vsyncpa %s77, 0
    loop: start=0, step=1, limit=4
    $region2: #{implicit_generator_forward.1} parent=1 // loop_pre_header
      _
    $region3: #{implicit_generator_forward.1} parent=1 // loop_header
      %s80 = sphi 0, %s84
      %p81 = scmp.ge.s32.totalorder %s80, 4
      %s90 = sphi 0, %s92
      %s93 = sphi 0, %s90
      %s94 = sphi 0, %s93
      %s110 = sphi 0, %s94
      %s116 = sphi 0, %s118
      %s119 = sphi 0, %s116
      %s120 = sphi 0, %s119
      %s136 = sphi 0, %s120
      %s142 = sphi 0, %s144
      %s145 = sphi 0, %s142
      %s146 = sphi 0, %s145
      %s162 = sphi 0, %s146
      %s168 = sphi 0, %s170
      %s171 = sphi 0, %s168
      %s172 = sphi 0, %s171
      %s188 = sphi 0, %s172
      %s192 = sphi 0, %s192
      %s194 = sphi 0, %s192
      %s195 = sphi 0, %s194
      %s209 = sphi 0, %s195
      %s213 = sphi 0, %s213
      %s215 = sphi 0, %s213
      %s216 = sphi 0, %s215
      %s230 = sphi 0, %s216
      %s234 = sphi 0, %s234
      %s236 = sphi 0, %s234
      %s237 = sphi 0, %s236
      %s251 = sphi 0, %s237
      %s255 = sphi 0, %s255
      %s257 = sphi 0, %s255
      %s258 = sphi 0, %s257
      %s272 = sphi 0, %s258
      %s276 = sphi 0, %s276
      %s278 = sphi 0, %s276
      %s279 = sphi 0, %s278
      %s293 = sphi 0, %s279
      %s297 = sphi 0, %s297
      %s299 = sphi 0, %s297
      %s300 = sphi 0, %s299
      %s314 = sphi 0, %s300
      %s318 = sphi 0, %s318
      %s320 = sphi 0, %s318
      %s321 = sphi 0, %s320
      %s335 = sphi 0, %s321
      %s339 = sphi 0, %s339
      %s341 = sphi 0, %s339
      %s342 = sphi 0, %s341
      %s356 = sphi 0, %s342
      %s360 = sphi 0, %s360
      %s362 = sphi 0, %s360
      %s363 = sphi 0, %s362
      %s377 = sphi 0, %s363
      %s381 = sphi 0, %s381
      %s383 = sphi 0, %s381
      %s384 = sphi 0, %s383
      %s398 = sphi 0, %s384
      %s402 = sphi 0, %s402
      %s404 = sphi 0, %s402
      %s405 = sphi 0, %s404
      %s419 = sphi 0, %s405
      %s423 = sphi 0, %s423
      %s425 = sphi 0, %s423
      %s426 = sphi 0, %s425
      %s440 = sphi 0, %s426
      %s444 = sphi 0, %s444
      %s446 = sphi 0, %s444
      %s447 = sphi 0, %s446
      %s461 = sphi 0, %s447
      %s465 = sphi 0, %s465
      %s467 = sphi 0, %s465
      %s468 = sphi 0, %s467
      %s482 = sphi 0, %s468
      %s486 = sphi 0, %s486
      %s488 = sphi 0, %s486
      %s489 = sphi 0, %s488
      %s503 = sphi 0, %s489
      %s507 = sphi 0, %s507
      %s509 = sphi 0, %s507
      %s510 = sphi 0, %s509
      %s524 = sphi 0, %s510
      %s528 = sphi 0, %s528
      %s530 = sphi 0, %s528
      %s531 = sphi 0, %s530
      %s545 = sphi 0, %s531
      %s549 = sphi 0, %s549
      %s551 = sphi 0, %s549
      %s552 = sphi 0, %s551
      %s566 = sphi 0, %s552
      %s570 = sphi 0, %s570
      %s572 = sphi 0, %s570
      %s573 = sphi 0, %s572
      %s587 = sphi 0, %s573
      %s591 = sphi 0, %s591
      %s593 = sphi 0, %s591
      %s594 = sphi 0, %s593
      %s608 = sphi 0, %s594
      %s612 = sphi 0, %s612
      %s614 = sphi 0, %s612
      %s615 = sphi 0, %s614
      %s629 = sphi 0, %s615
      %s633 = sphi 0, %s633
      %s635 = sphi 0, %s633
      %s636 = sphi 0, %s635
      %s650 = sphi 0, %s636
      %s654 = sphi 0, %s654
      %s656 = sphi 0, %s654
      %s657 = sphi 0, %s656
      %s671 = sphi 0, %s657
      %s675 = sphi 0, %s675
      %s677 = sphi 0, %s675
      %s678 = sphi 0, %s677
      %s692 = sphi 0, %s678
      %s696 = sphi 0, %s696
      %s698 = sphi 0, %s696
      %s699 = sphi 0, %s698
      %s713 = sphi 0, %s699
      %s719 = sphi 0, %s721
      %s722 = sphi 0, %s719
      %s723 = sphi 0, %s722
      %s739 = sphi 0, %s723
      %s745 = sphi 0, %s747
      %s748 = sphi 0, %s745
      %s749 = sphi 0, %s748
      %s765 = sphi 0, %s749
      %s771 = sphi 0, %s773
      %s774 = sphi 0, %s771
      %s775 = sphi 0, %s774
      %s791 = sphi 0, %s775
      %s797 = sphi 0, %s799
      %s800 = sphi 0, %s797
      %s801 = sphi 0, %s800
      %s817 = sphi 0, %s801
    $region4: #{implicit_generator_forward.1} parent=1 // loop_header_branch
      %83 = sbr.rel (%p81) target = $region8
    $region5: #{implicit_generator_forward.1} parent=1 // loop_body
      %s85 = ssub.s32 %s80, 1
      %s86 = ssub.s32 %s80, 2
      %s87 = sadd.s32 %s80, 1
      %s88 = ssub.s32 %s80, %s87
      %p89 = scmp.eq.s32.totalorder %s88, 0
      %s91 = sadd.s32 %s90, 1
      %s92 = scalar_select %p89, %s90, %s91
      %p95 = pneg %p89
      %p96 = scmp.eq.s32.totalorder %s80, 1
      %p97 = por %p95, %p96
      %p98 = scmp.ne.s32.totalorder %s90, %s93
      %p99 = scmp.eq.s32.totalorder %s80, 0
      %p100 = por %p98, %p99
      %p101 = scmp.ne.s32.totalorder %s90, %s93
      %p102 = scmp.eq.s32.totalorder %s85, 1
      %p103 = por %p101, %p102
      %p104 = scmp.ne.s32.totalorder %s93, %s94
      %p105 = scmp.eq.s32.totalorder %s85, 0
      %p106 = por %p104, %p105
      %p107 = scmp.ne.s32.totalorder %s93, %s94
      %p108 = scmp.eq.s32.totalorder %s86, 1
      %p109 = por %p107, %p108
      %p111 = scmp.ne.s32.totalorder %s94, %s110
      %p112 = scmp.eq.s32.totalorder %s86, 0
      %p113 = por %p111, %p112
      %s114 = ssub.s32 %s80, %s87
      %p115 = scmp.eq.s32.totalorder %s114, 0
      %s117 = sadd.s32 %s116, 1
      %s118 = scalar_select %p115, %s116, %s117
      %p121 = pneg %p115
      %p122 = scmp.eq.s32.totalorder %s80, 1
      %p123 = por %p121, %p122
      %p124 = scmp.ne.s32.totalorder %s116, %s119
      %p125 = scmp.eq.s32.totalorder %s80, 0
      %p126 = por %p124, %p125
      %p127 = scmp.ne.s32.totalorder %s116, %s119
      %p128 = scmp.eq.s32.totalorder %s85, 1
      %p129 = por %p127, %p128
      %p130 = scmp.ne.s32.totalorder %s119, %s120
      %p131 = scmp.eq.s32.totalorder %s85, 0
      %p132 = por %p130, %p131
      %p133 = scmp.ne.s32.totalorder %s119, %s120
      %p134 = scmp.eq.s32.totalorder %s86, 1
      %p135 = por %p133, %p134
      %p137 = scmp.ne.s32.totalorder %s120, %s136
      %p138 = scmp.eq.s32.totalorder %s86, 0
      %p139 = por %p137, %p138
      %s140 = ssub.s32 %s80, %s87
      %p141 = scmp.eq.s32.totalorder %s140, 0
      %s143 = sadd.s32 %s142, 1
      %s144 = scalar_select %p141, %s142, %s143
      %p147 = pneg %p141
      %p148 = scmp.eq.s32.totalorder %s80, 1
      %p149 = por %p147, %p148
      %p150 = scmp.ne.s32.totalorder %s142, %s145
      %p151 = scmp.eq.s32.totalorder %s80, 0
      %p152 = por %p150, %p151
      %p153 = scmp.ne.s32.totalorder %s142, %s145
      %p154 = scmp.eq.s32.totalorder %s85, 1
      %p155 = por %p153, %p154
      %p156 = scmp.ne.s32.totalorder %s145, %s146
      %p157 = scmp.eq.s32.totalorder %s85, 0
      %p158 = por %p156, %p157
      %p159 = scmp.ne.s32.totalorder %s145, %s146
      %p160 = scmp.eq.s32.totalorder %s86, 1
      %p161 = por %p159, %p160
      %p163 = scmp.ne.s32.totalorder %s146, %s162
      %p164 = scmp.eq.s32.totalorder %s86, 0
      %p165 = por %p163, %p164
      %s166 = ssub.s32 %s80, %s87
      %p167 = scmp.eq.s32.totalorder %s166, 0
      %s169 = sadd.s32 %s168, 1
      %s170 = scalar_select %p167, %s168, %s169
      %p173 = pneg %p167
      %p174 = scmp.eq.s32.totalorder %s80, 1
      %p175 = por %p173, %p174
      %p176 = scmp.ne.s32.totalorder %s168, %s171
      %p177 = scmp.eq.s32.totalorder %s80, 0
      %p178 = por %p176, %p177
      %p179 = scmp.ne.s32.totalorder %s168, %s171
      %p180 = scmp.eq.s32.totalorder %s85, 1
      %p181 = por %p179, %p180
      %p182 = scmp.ne.s32.totalorder %s171, %s172
      %p183 = scmp.eq.s32.totalorder %s85, 0
      %p184 = por %p182, %p183
      %p185 = scmp.ne.s32.totalorder %s171, %s172
      %p186 = scmp.eq.s32.totalorder %s86, 1
      %p187 = por %p185, %p186
      %p189 = scmp.ne.s32.totalorder %s172, %s188
      %p190 = scmp.eq.s32.totalorder %s86, 0
      %p191 = por %p189, %p190
      %s193 = sadd.s32 %s192, 1
      %p196 = scmp.eq.s32.totalorder %s80, 1
      %p197 = scmp.ne.s32.totalorder %s192, %s194
      %p198 = scmp.eq.s32.totalorder %s80, 0
      %p199 = por %p197, %p198
      %p200 = scmp.ne.s32.totalorder %s192, %s194
      %p201 = scmp.eq.s32.totalorder %s85, 1
      %p202 = por %p200, %p201
      %p203 = scmp.ne.s32.totalorder %s194, %s195
      %p204 = scmp.eq.s32.totalorder %s85, 0
      %p205 = por %p203, %p204
      %p206 = scmp.ne.s32.totalorder %s194, %s195
      %p207 = scmp.eq.s32.totalorder %s86, 1
      %p208 = por %p206, %p207
      %p210 = scmp.ne.s32.totalorder %s195, %s209
      %p211 = scmp.eq.s32.totalorder %s86, 0
      %p212 = por %p210, %p211
      %s214 = sadd.s32 %s213, 1
      %p217 = scmp.eq.s32.totalorder %s80, 1
      %p218 = scmp.ne.s32.totalorder %s213, %s215
      %p219 = scmp.eq.s32.totalorder %s80, 0
      %p220 = por %p218, %p219
      %p221 = scmp.ne.s32.totalorder %s213, %s215
      %p222 = scmp.eq.s32.totalorder %s85, 1
      %p223 = por %p221, %p222
      %p224 = scmp.ne.s32.totalorder %s215, %s216
      %p225 = scmp.eq.s32.totalorder %s85, 0
      %p226 = por %p224, %p225
      %p227 = scmp.ne.s32.totalorder %s215, %s216
      %p228 = scmp.eq.s32.totalorder %s86, 1
      %p229 = por %p227, %p228
      %p231 = scmp.ne.s32.totalorder %s216, %s230
      %p232 = scmp.eq.s32.totalorder %s86, 0
      %p233 = por %p231, %p232
      %s235 = sadd.s32 %s234, 1
      %p238 = scmp.eq.s32.totalorder %s80, 1
      %p239 = scmp.ne.s32.totalorder %s234, %s236
      %p240 = scmp.eq.s32.totalorder %s80, 0
      %p241 = por %p239, %p240
      %p242 = scmp.ne.s32.totalorder %s234, %s236
      %p243 = scmp.eq.s32.totalorder %s85, 1
      %p244 = por %p242, %p243
      %p245 = scmp.ne.s32.totalorder %s236, %s237
      %p246 = scmp.eq.s32.totalorder %s85, 0
      %p247 = por %p245, %p246
      %p248 = scmp.ne.s32.totalorder %s236, %s237
      %p249 = scmp.eq.s32.totalorder %s86, 1
      %p250 = por %p248, %p249
      %p252 = scmp.ne.s32.totalorder %s237, %s251
      %p253 = scmp.eq.s32.totalorder %s86, 0
      %p254 = por %p252, %p253
      %s256 = sadd.s32 %s255, 1
      %p259 = scmp.eq.s32.totalorder %s80, 1
      %p260 = scmp.ne.s32.totalorder %s255, %s257
      %p261 = scmp.eq.s32.totalorder %s80, 0
      %p262 = por %p260, %p261
      %p263 = scmp.ne.s32.totalorder %s255, %s257
      %p264 = scmp.eq.s32.totalorder %s85, 1
      %p265 = por %p263, %p264
      %p266 = scmp.ne.s32.totalorder %s257, %s258
      %p267 = scmp.eq.s32.totalorder %s85, 0
      %p268 = por %p266, %p267
      %p269 = scmp.ne.s32.totalorder %s257, %s258
      %p270 = scmp.eq.s32.totalorder %s86, 1
      %p271 = por %p269, %p270
      %p273 = scmp.ne.s32.totalorder %s258, %s272
      %p274 = scmp.eq.s32.totalorder %s86, 0
      %p275 = por %p273, %p274
      %s277 = sadd.s32 %s276, 1
      %p280 = scmp.eq.s32.totalorder %s80, 1
      %p281 = scmp.ne.s32.totalorder %s276, %s278
      %p282 = scmp.eq.s32.totalorder %s80, 0
      %p283 = por %p281, %p282
      %p284 = scmp.ne.s32.totalorder %s276, %s278
      %p285 = scmp.eq.s32.totalorder %s85, 1
      %p286 = por %p284, %p285
      %p287 = scmp.ne.s32.totalorder %s278, %s279
      %p288 = scmp.eq.s32.totalorder %s85, 0
      %p289 = por %p287, %p288
      %p290 = scmp.ne.s32.totalorder %s278, %s279
      %p291 = scmp.eq.s32.totalorder %s86, 1
      %p292 = por %p290, %p291
      %p294 = scmp.ne.s32.totalorder %s279, %s293
      %p295 = scmp.eq.s32.totalorder %s86, 0
      %p296 = por %p294, %p295
      %s298 = sadd.s32 %s297, 1
      %p301 = scmp.eq.s32.totalorder %s80, 1
      %p302 = scmp.ne.s32.totalorder %s297, %s299
      %p303 = scmp.eq.s32.totalorder %s80, 0
      %p304 = por %p302, %p303
      %p305 = scmp.ne.s32.totalorder %s297, %s299
      %p306 = scmp.eq.s32.totalorder %s85, 1
      %p307 = por %p305, %p306
      %p308 = scmp.ne.s32.totalorder %s299, %s300
      %p309 = scmp.eq.s32.totalorder %s85, 0
      %p310 = por %p308, %p309
      %p311 = scmp.ne.s32.totalorder %s299, %s300
      %p312 = scmp.eq.s32.totalorder %s86, 1
      %p313 = por %p311, %p312
      %p315 = scmp.ne.s32.totalorder %s300, %s314
      %p316 = scmp.eq.s32.totalorder %s86, 0
      %p317 = por %p315, %p316
      %s319 = sadd.s32 %s318, 1
      %p322 = scmp.eq.s32.totalorder %s80, 1
      %p323 = scmp.ne.s32.totalorder %s318, %s320
      %p324 = scmp.eq.s32.totalorder %s80, 0
      %p325 = por %p323, %p324
      %p326 = scmp.ne.s32.totalorder %s318, %s320
      %p327 = scmp.eq.s32.totalorder %s85, 1
      %p328 = por %p326, %p327
      %p329 = scmp.ne.s32.totalorder %s320, %s321
      %p330 = scmp.eq.s32.totalorder %s85, 0
      %p331 = por %p329, %p330
      %p332 = scmp.ne.s32.totalorder %s320, %s321
      %p333 = scmp.eq.s32.totalorder %s86, 1
      %p334 = por %p332, %p333
      %p336 = scmp.ne.s32.totalorder %s321, %s335
      %p337 = scmp.eq.s32.totalorder %s86, 0
      %p338 = por %p336, %p337
      %s340 = sadd.s32 %s339, 1
      %p343 = scmp.eq.s32.totalorder %s80, 1
      %p344 = scmp.ne.s32.totalorder %s339, %s341
      %p345 = scmp.eq.s32.totalorder %s80, 0
      %p346 = por %p344, %p345
      %p347 = scmp.ne.s32.totalorder %s339, %s341
      %p348 = scmp.eq.s32.totalorder %s85, 1
      %p349 = por %p347, %p348
      %p350 = scmp.ne.s32.totalorder %s341, %s342
      %p351 = scmp.eq.s32.totalorder %s85, 0
      %p352 = por %p350, %p351
      %p353 = scmp.ne.s32.totalorder %s341, %s342
      %p354 = scmp.eq.s32.totalorder %s86, 1
      %p355 = por %p353, %p354
      %p357 = scmp.ne.s32.totalorder %s342, %s356
      %p358 = scmp.eq.s32.totalorder %s86, 0
      %p359 = por %p357, %p358
      %s361 = sadd.s32 %s360, 1
      %p364 = scmp.eq.s32.totalorder %s80, 1
      %p365 = scmp.ne.s32.totalorder %s360, %s362
      %p366 = scmp.eq.s32.totalorder %s80, 0
      %p367 = por %p365, %p366
      %p368 = scmp.ne.s32.totalorder %s360, %s362
      %p369 = scmp.eq.s32.totalorder %s85, 1
      %p370 = por %p368, %p369
      %p371 = scmp.ne.s32.totalorder %s362, %s363
      %p372 = scmp.eq.s32.totalorder %s85, 0
      %p373 = por %p371, %p372
      %p374 = scmp.ne.s32.totalorder %s362, %s363
      %p375 = scmp.eq.s32.totalorder %s86, 1
      %p376 = por %p374, %p375
      %p378 = scmp.ne.s32.totalorder %s363, %s377
      %p379 = scmp.eq.s32.totalorder %s86, 0
      %p380 = por %p378, %p379
      %s382 = sadd.s32 %s381, 1
      %p385 = scmp.eq.s32.totalorder %s80, 1
      %p386 = scmp.ne.s32.totalorder %s381, %s383
      %p387 = scmp.eq.s32.totalorder %s80, 0
      %p388 = por %p386, %p387
      %p389 = scmp.ne.s32.totalorder %s381, %s383
      %p390 = scmp.eq.s32.totalorder %s85, 1
      %p391 = por %p389, %p390
      %p392 = scmp.ne.s32.totalorder %s383, %s384
      %p393 = scmp.eq.s32.totalorder %s85, 0
      %p394 = por %p392, %p393
      %p395 = scmp.ne.s32.totalorder %s383, %s384
      %p396 = scmp.eq.s32.totalorder %s86, 1
      %p397 = por %p395, %p396
      %p399 = scmp.ne.s32.totalorder %s384, %s398
      %p400 = scmp.eq.s32.totalorder %s86, 0
      %p401 = por %p399, %p400
      %s403 = sadd.s32 %s402, 1
      %p406 = scmp.eq.s32.totalorder %s80, 1
      %p407 = scmp.ne.s32.totalorder %s402, %s404
      %p408 = scmp.eq.s32.totalorder %s80, 0
      %p409 = por %p407, %p408
      %p410 = scmp.ne.s32.totalorder %s402, %s404
      %p411 = scmp.eq.s32.totalorder %s85, 1
      %p412 = por %p410, %p411
      %p413 = scmp.ne.s32.totalorder %s404, %s405
      %p414 = scmp.eq.s32.totalorder %s85, 0
      %p415 = por %p413, %p414
      %p416 = scmp.ne.s32.totalorder %s404, %s405
      %p417 = scmp.eq.s32.totalorder %s86, 1
      %p418 = por %p416, %p417
      %p420 = scmp.ne.s32.totalorder %s405, %s419
      %p421 = scmp.eq.s32.totalorder %s86, 0
      %p422 = por %p420, %p421
      %s424 = sadd.s32 %s423, 1
      %p427 = scmp.eq.s32.totalorder %s80, 1
      %p428 = scmp.ne.s32.totalorder %s423, %s425
      %p429 = scmp.eq.s32.totalorder %s80, 0
      %p430 = por %p428, %p429
      %p431 = scmp.ne.s32.totalorder %s423, %s425
      %p432 = scmp.eq.s32.totalorder %s85, 1
      %p433 = por %p431, %p432
      %p434 = scmp.ne.s32.totalorder %s425, %s426
      %p435 = scmp.eq.s32.totalorder %s85, 0
      %p436 = por %p434, %p435
      %p437 = scmp.ne.s32.totalorder %s425, %s426
      %p438 = scmp.eq.s32.totalorder %s86, 1
      %p439 = por %p437, %p438
      %p441 = scmp.ne.s32.totalorder %s426, %s440
      %p442 = scmp.eq.s32.totalorder %s86, 0
      %p443 = por %p441, %p442
      %s445 = sadd.s32 %s444, 1
      %p448 = scmp.eq.s32.totalorder %s80, 1
      %p449 = scmp.ne.s32.totalorder %s444, %s446
      %p450 = scmp.eq.s32.totalorder %s80, 0
      %p451 = por %p449, %p450
      %p452 = scmp.ne.s32.totalorder %s444, %s446
      %p453 = scmp.eq.s32.totalorder %s85, 1
      %p454 = por %p452, %p453
      %p455 = scmp.ne.s32.totalorder %s446, %s447
      %p456 = scmp.eq.s32.totalorder %s85, 0
      %p457 = por %p455, %p456
      %p458 = scmp.ne.s32.totalorder %s446, %s447
      %p459 = scmp.eq.s32.totalorder %s86, 1
      %p460 = por %p458, %p459
      %p462 = scmp.ne.s32.totalorder %s447, %s461
      %p463 = scmp.eq.s32.totalorder %s86, 0
      %p464 = por %p462, %p463
      %s466 = sadd.s32 %s465, 1
      %p469 = scmp.eq.s32.totalorder %s80, 1
      %p470 = scmp.ne.s32.totalorder %s465, %s467
      %p471 = scmp.eq.s32.totalorder %s80, 0
      %p472 = por %p470, %p471
      %p473 = scmp.ne.s32.totalorder %s465, %s467
      %p474 = scmp.eq.s32.totalorder %s85, 1
      %p475 = por %p473, %p474
      %p476 = scmp.ne.s32.totalorder %s467, %s468
      %p477 = scmp.eq.s32.totalorder %s85, 0
      %p478 = por %p476, %p477
      %p479 = scmp.ne.s32.totalorder %s467, %s468
      %p480 = scmp.eq.s32.totalorder %s86, 1
      %p481 = por %p479, %p480
      %p483 = scmp.ne.s32.totalorder %s468, %s482
      %p484 = scmp.eq.s32.totalorder %s86, 0
      %p485 = por %p483, %p484
      %s487 = sadd.s32 %s486, 1
      %p490 = scmp.eq.s32.totalorder %s80, 1
      %p491 = scmp.ne.s32.totalorder %s486, %s488
      %p492 = scmp.eq.s32.totalorder %s80, 0
      %p493 = por %p491, %p492
      %p494 = scmp.ne.s32.totalorder %s486, %s488
      %p495 = scmp.eq.s32.totalorder %s85, 1
      %p496 = por %p494, %p495
      %p497 = scmp.ne.s32.totalorder %s488, %s489
      %p498 = scmp.eq.s32.totalorder %s85, 0
      %p499 = por %p497, %p498
      %p500 = scmp.ne.s32.totalorder %s488, %s489
      %p501 = scmp.eq.s32.totalorder %s86, 1
      %p502 = por %p500, %p501
      %p504 = scmp.ne.s32.totalorder %s489, %s503
      %p505 = scmp.eq.s32.totalorder %s86, 0
      %p506 = por %p504, %p505
      %s508 = sadd.s32 %s507, 1
      %p511 = scmp.eq.s32.totalorder %s80, 1
      %p512 = scmp.ne.s32.totalorder %s507, %s509
      %p513 = scmp.eq.s32.totalorder %s80, 0
      %p514 = por %p512, %p513
      %p515 = scmp.ne.s32.totalorder %s507, %s509
      %p516 = scmp.eq.s32.totalorder %s85, 1
      %p517 = por %p515, %p516
      %p518 = scmp.ne.s32.totalorder %s509, %s510
      %p519 = scmp.eq.s32.totalorder %s85, 0
      %p520 = por %p518, %p519
      %p521 = scmp.ne.s32.totalorder %s509, %s510
      %p522 = scmp.eq.s32.totalorder %s86, 1
      %p523 = por %p521, %p522
      %p525 = scmp.ne.s32.totalorder %s510, %s524
      %p526 = scmp.eq.s32.totalorder %s86, 0
      %p527 = por %p525, %p526
      %s529 = sadd.s32 %s528, 1
      %p532 = scmp.eq.s32.totalorder %s80, 1
      %p533 = scmp.ne.s32.totalorder %s528, %s530
      %p534 = scmp.eq.s32.totalorder %s80, 0
      %p535 = por %p533, %p534
      %p536 = scmp.ne.s32.totalorder %s528, %s530
      %p537 = scmp.eq.s32.totalorder %s85, 1
      %p538 = por %p536, %p537
      %p539 = scmp.ne.s32.totalorder %s530, %s531
      %p540 = scmp.eq.s32.totalorder %s85, 0
      %p541 = por %p539, %p540
      %p542 = scmp.ne.s32.totalorder %s530, %s531
      %p543 = scmp.eq.s32.totalorder %s86, 1
      %p544 = por %p542, %p543
      %p546 = scmp.ne.s32.totalorder %s531, %s545
      %p547 = scmp.eq.s32.totalorder %s86, 0
      %p548 = por %p546, %p547
      %s550 = sadd.s32 %s549, 1
      %p553 = scmp.eq.s32.totalorder %s80, 1
      %p554 = scmp.ne.s32.totalorder %s549, %s551
      %p555 = scmp.eq.s32.totalorder %s80, 0
      %p556 = por %p554, %p555
      %p557 = scmp.ne.s32.totalorder %s549, %s551
      %p558 = scmp.eq.s32.totalorder %s85, 1
      %p559 = por %p557, %p558
      %p560 = scmp.ne.s32.totalorder %s551, %s552
      %p561 = scmp.eq.s32.totalorder %s85, 0
      %p562 = por %p560, %p561
      %p563 = scmp.ne.s32.totalorder %s551, %s552
      %p564 = scmp.eq.s32.totalorder %s86, 1
      %p565 = por %p563, %p564
      %p567 = scmp.ne.s32.totalorder %s552, %s566
      %p568 = scmp.eq.s32.totalorder %s86, 0
      %p569 = por %p567, %p568
      %s571 = sadd.s32 %s570, 1
      %p574 = scmp.eq.s32.totalorder %s80, 1
      %p575 = scmp.ne.s32.totalorder %s570, %s572
      %p576 = scmp.eq.s32.totalorder %s80, 0
      %p577 = por %p575, %p576
      %p578 = scmp.ne.s32.totalorder %s570, %s572
      %p579 = scmp.eq.s32.totalorder %s85, 1
      %p580 = por %p578, %p579
      %p581 = scmp.ne.s32.totalorder %s572, %s573
      %p582 = scmp.eq.s32.totalorder %s85, 0
      %p583 = por %p581, %p582
      %p584 = scmp.ne.s32.totalorder %s572, %s573
      %p585 = scmp.eq.s32.totalorder %s86, 1
      %p586 = por %p584, %p585
      %p588 = scmp.ne.s32.totalorder %s573, %s587
      %p589 = scmp.eq.s32.totalorder %s86, 0
      %p590 = por %p588, %p589
      %s592 = sadd.s32 %s591, 1
      %p595 = scmp.eq.s32.totalorder %s80, 1
      %p596 = scmp.ne.s32.totalorder %s591, %s593
      %p597 = scmp.eq.s32.totalorder %s80, 0
      %p598 = por %p596, %p597
      %p599 = scmp.ne.s32.totalorder %s591, %s593
      %p600 = scmp.eq.s32.totalorder %s85, 1
      %p601 = por %p599, %p600
      %p602 = scmp.ne.s32.totalorder %s593, %s594
      %p603 = scmp.eq.s32.totalorder %s85, 0
      %p604 = por %p602, %p603
      %p605 = scmp.ne.s32.totalorder %s593, %s594
      %p606 = scmp.eq.s32.totalorder %s86, 1
      %p607 = por %p605, %p606
      %p609 = scmp.ne.s32.totalorder %s594, %s608
      %p610 = scmp.eq.s32.totalorder %s86, 0
      %p611 = por %p609, %p610
      %s613 = sadd.s32 %s612, 1
      %p616 = scmp.eq.s32.totalorder %s80, 1
      %p617 = scmp.ne.s32.totalorder %s612, %s614
      %p618 = scmp.eq.s32.totalorder %s80, 0
      %p619 = por %p617, %p618
      %p620 = scmp.ne.s32.totalorder %s612, %s614
      %p621 = scmp.eq.s32.totalorder %s85, 1
      %p622 = por %p620, %p621
      %p623 = scmp.ne.s32.totalorder %s614, %s615
      %p624 = scmp.eq.s32.totalorder %s85, 0
      %p625 = por %p623, %p624
      %p626 = scmp.ne.s32.totalorder %s614, %s615
      %p627 = scmp.eq.s32.totalorder %s86, 1
      %p628 = por %p626, %p627
      %p630 = scmp.ne.s32.totalorder %s615, %s629
      %p631 = scmp.eq.s32.totalorder %s86, 0
      %p632 = por %p630, %p631
      %s634 = sadd.s32 %s633, 1
      %p637 = scmp.eq.s32.totalorder %s80, 1
      %p638 = scmp.ne.s32.totalorder %s633, %s635
      %p639 = scmp.eq.s32.totalorder %s80, 0
      %p640 = por %p638, %p639
      %p641 = scmp.ne.s32.totalorder %s633, %s635
      %p642 = scmp.eq.s32.totalorder %s85, 1
      %p643 = por %p641, %p642
      %p644 = scmp.ne.s32.totalorder %s635, %s636
      %p645 = scmp.eq.s32.totalorder %s85, 0
      %p646 = por %p644, %p645
      %p647 = scmp.ne.s32.totalorder %s635, %s636
      %p648 = scmp.eq.s32.totalorder %s86, 1
      %p649 = por %p647, %p648
      %p651 = scmp.ne.s32.totalorder %s636, %s650
      %p652 = scmp.eq.s32.totalorder %s86, 0
      %p653 = por %p651, %p652
      %s655 = sadd.s32 %s654, 1
      %p658 = scmp.eq.s32.totalorder %s80, 1
      %p659 = scmp.ne.s32.totalorder %s654, %s656
      %p660 = scmp.eq.s32.totalorder %s80, 0
      %p661 = por %p659, %p660
      %p662 = scmp.ne.s32.totalorder %s654, %s656
      %p663 = scmp.eq.s32.totalorder %s85, 1
      %p664 = por %p662, %p663
      %p665 = scmp.ne.s32.totalorder %s656, %s657
      %p666 = scmp.eq.s32.totalorder %s85, 0
      %p667 = por %p665, %p666
      %p668 = scmp.ne.s32.totalorder %s656, %s657
      %p669 = scmp.eq.s32.totalorder %s86, 1
      %p670 = por %p668, %p669
      %p672 = scmp.ne.s32.totalorder %s657, %s671
      %p673 = scmp.eq.s32.totalorder %s86, 0
      %p674 = por %p672, %p673
      %s676 = sadd.s32 %s675, 1
      %p679 = scmp.eq.s32.totalorder %s80, 1
      %p680 = scmp.ne.s32.totalorder %s675, %s677
      %p681 = scmp.eq.s32.totalorder %s80, 0
      %p682 = por %p680, %p681
      %p683 = scmp.ne.s32.totalorder %s675, %s677
      %p684 = scmp.eq.s32.totalorder %s85, 1
      %p685 = por %p683, %p684
      %p686 = scmp.ne.s32.totalorder %s677, %s678
      %p687 = scmp.eq.s32.totalorder %s85, 0
      %p688 = por %p686, %p687
      %p689 = scmp.ne.s32.totalorder %s677, %s678
      %p690 = scmp.eq.s32.totalorder %s86, 1
      %p691 = por %p689, %p690
      %p693 = scmp.ne.s32.totalorder %s678, %s692
      %p694 = scmp.eq.s32.totalorder %s86, 0
      %p695 = por %p693, %p694
      %s697 = sadd.s32 %s696, 1
      %p700 = scmp.eq.s32.totalorder %s80, 1
      %p701 = scmp.ne.s32.totalorder %s696, %s698
      %p702 = scmp.eq.s32.totalorder %s80, 0
      %p703 = por %p701, %p702
      %p704 = scmp.ne.s32.totalorder %s696, %s698
      %p705 = scmp.eq.s32.totalorder %s85, 1
      %p706 = por %p704, %p705
      %p707 = scmp.ne.s32.totalorder %s698, %s699
      %p708 = scmp.eq.s32.totalorder %s85, 0
      %p709 = por %p707, %p708
      %p710 = scmp.ne.s32.totalorder %s698, %s699
      %p711 = scmp.eq.s32.totalorder %s86, 1
      %p712 = por %p710, %p711
      %p714 = scmp.ne.s32.totalorder %s699, %s713
      %p715 = scmp.eq.s32.totalorder %s86, 0
      %p716 = por %p714, %p715
      %s717 = ssub.s32 %s80, %s87
      %p718 = scmp.eq.s32.totalorder %s717, 0
      %s720 = sadd.s32 %s719, 1
      %s721 = scalar_select %p718, %s719, %s720
      %p724 = pneg %p718
      %p725 = scmp.eq.s32.totalorder %s80, 1
      %p726 = por %p724, %p725
      %p727 = scmp.ne.s32.totalorder %s719, %s722
      %p728 = scmp.eq.s32.totalorder %s80, 0
      %p729 = por %p727, %p728
      %p730 = scmp.ne.s32.totalorder %s719, %s722
      %p731 = scmp.eq.s32.totalorder %s85, 1
      %p732 = por %p730, %p731
      %p733 = scmp.ne.s32.totalorder %s722, %s723
      %p734 = scmp.eq.s32.totalorder %s85, 0
      %p735 = por %p733, %p734
      %p736 = scmp.ne.s32.totalorder %s722, %s723
      %p737 = scmp.eq.s32.totalorder %s86, 1
      %p738 = por %p736, %p737
      %p740 = scmp.ne.s32.totalorder %s723, %s739
      %p741 = scmp.eq.s32.totalorder %s86, 0
      %p742 = por %p740, %p741
      %s743 = ssub.s32 %s80, %s87
      %p744 = scmp.eq.s32.totalorder %s743, 0
      %s746 = sadd.s32 %s745, 1
      %s747 = scalar_select %p744, %s745, %s746
      %p750 = pneg %p744
      %p751 = scmp.eq.s32.totalorder %s80, 1
      %p752 = por %p750, %p751
      %p753 = scmp.ne.s32.totalorder %s745, %s748
      %p754 = scmp.eq.s32.totalorder %s80, 0
      %p755 = por %p753, %p754
      %p756 = scmp.ne.s32.totalorder %s745, %s748
      %p757 = scmp.eq.s32.totalorder %s85, 1
      %p758 = por %p756, %p757
      %p759 = scmp.ne.s32.totalorder %s748, %s749
      %p760 = scmp.eq.s32.totalorder %s85, 0
      %p761 = por %p759, %p760
      %p762 = scmp.ne.s32.totalorder %s748, %s749
      %p763 = scmp.eq.s32.totalorder %s86, 1
      %p764 = por %p762, %p763
      %p766 = scmp.ne.s32.totalorder %s749, %s765
      %p767 = scmp.eq.s32.totalorder %s86, 0
      %p768 = por %p766, %p767
      %s769 = ssub.s32 %s80, %s87
      %p770 = scmp.eq.s32.totalorder %s769, 0
      %s772 = sadd.s32 %s771, 1
      %s773 = scalar_select %p770, %s771, %s772
      %p776 = pneg %p770
      %p777 = scmp.eq.s32.totalorder %s80, 1
      %p778 = por %p776, %p777
      %p779 = scmp.ne.s32.totalorder %s771, %s774
      %p780 = scmp.eq.s32.totalorder %s80, 0
      %p781 = por %p779, %p780
      %p782 = scmp.ne.s32.totalorder %s771, %s774
      %p783 = scmp.eq.s32.totalorder %s85, 1
      %p784 = por %p782, %p783
      %p785 = scmp.ne.s32.totalorder %s774, %s775
      %p786 = scmp.eq.s32.totalorder %s85, 0
      %p787 = por %p785, %p786
      %p788 = scmp.ne.s32.totalorder %s774, %s775
      %p789 = scmp.eq.s32.totalorder %s86, 1
      %p790 = por %p788, %p789
      %p792 = scmp.ne.s32.totalorder %s775, %s791
      %p793 = scmp.eq.s32.totalorder %s86, 0
      %p794 = por %p792, %p793
      %s795 = ssub.s32 %s80, %s87
      %p796 = scmp.eq.s32.totalorder %s795, 0
      %s798 = sadd.s32 %s797, 1
      %s799 = scalar_select %p796, %s797, %s798
      %p802 = pneg %p796
      %p803 = scmp.eq.s32.totalorder %s80, 1
      %p804 = por %p802, %p803
      %p805 = scmp.ne.s32.totalorder %s797, %s800
      %p806 = scmp.eq.s32.totalorder %s80, 0
      %p807 = por %p805, %p806
      %p808 = scmp.ne.s32.totalorder %s797, %s800
      %p809 = scmp.eq.s32.totalorder %s85, 1
      %p810 = por %p808, %p809
      %p811 = scmp.ne.s32.totalorder %s800, %s801
      %p812 = scmp.eq.s32.totalorder %s85, 0
      %p813 = por %p811, %p812
      %p814 = scmp.ne.s32.totalorder %s800, %s801
      %p815 = scmp.eq.s32.totalorder %s86, 1
      %p816 = por %p814, %p815
      %p818 = scmp.ne.s32.totalorder %s801, %s817
      %p819 = scmp.eq.s32.totalorder %s86, 0
      %p820 = por %p818, %p819
      %p821 = scmp.le.s32.totalorder 1, %s80
      %p822 = scmp.lt.s32.totalorder %s80, 3
      %p823 = pnand %p821, %p822
      %p824 = pneg %p823
      // Predicated region
      $region9: #{implicit_generator_forward.1} parent=5 // pred_check
        _
      $region10: #{implicit_generator_forward.1} parent=5 // pred_check_branch
        %826 = sbr.rel (%p823) target = $region12
      $region11: #{implicit_generator_forward.1} parent=5 // pred_region
        %s827 = ssub.s32 %s80, 1
        // Predicated region
        $region13: #{implicit_generator_forward.1} parent=11 // pred_check
          %p828 = pneg %p205
        $region14: #{implicit_generator_forward.1} parent=11 // pred_check_branch
          %830 = sbr.rel (%p828) target = $region16
        $region15: #{implicit_generator_forward.1} parent=11 // pred_region
          _
        $region16: #{implicit_generator_forward.1} parent=11 // pred_fallthru
          _
        // Predicated region
        $region17: #{implicit_generator_forward.1} parent=11 // pred_check
          %p831 = pneg %p226
        $region18: #{implicit_generator_forward.1} parent=11 // pred_check_branch
          %833 = sbr.rel (%p831) target = $region20
        $region19: #{implicit_generator_forward.1} parent=11 // pred_region
          _
        $region20: #{implicit_generator_forward.1} parent=11 // pred_fallthru
          _
        // Predicated region
        $region21: #{implicit_generator_forward.1} parent=11 // pred_check
          %p834 = pneg %p247
        $region22: #{implicit_generator_forward.1} parent=11 // pred_check_branch
          %836 = sbr.rel (%p834) target = $region24
        $region23: #{implicit_generator_forward.1} parent=11 // pred_region
          _
        $region24: #{implicit_generator_forward.1} parent=11 // pred_fallthru
          _
        // Predicated region
        $region25: #{implicit_generator_forward.1} parent=11 // pred_check
          %p837 = pneg %p268
        $region26: #{implicit_generator_forward.1} parent=11 // pred_check_branch
          %839 = sbr.rel (%p837) target = $region28
        $region27: #{implicit_generator_forward.1} parent=11 // pred_region
          _
        $region28: #{implicit_generator_forward.1} parent=11 // pred_fallthru
          _
        // Predicated region
        $region29: #{implicit_generator_forward.1} parent=11 // pred_check
          %p840 = pneg %p289
        $region30: #{implicit_generator_forward.1} parent=11 // pred_check_branch
          %842 = sbr.rel (%p840) target = $region32
        $region31: #{implicit_generator_forward.1} parent=11 // pred_region
          _
        $region32: #{implicit_generator_forward.1} parent=11 // pred_fallthru
          _
        // Predicated region
        $region33: #{implicit_generator_forward.1} parent=11 // pred_check
          %p843 = pneg %p310
        $region34: #{implicit_generator_forward.1} parent=11 // pred_check_branch
          %845 = sbr.rel (%p843) target = $region36
        $region35: #{implicit_generator_forward.1} parent=11 // pred_region
          _
        $region36: #{implicit_generator_forward.1} parent=11 // pred_fallthru
          _
        // Predicated region
        $region37: #{implicit_generator_forward.1} parent=11 // pred_check
          %p846 = pneg %p331
        $region38: #{implicit_generator_forward.1} parent=11 // pred_check_branch
          %848 = sbr.rel (%p846) target = $region40
        $region39: #{implicit_generator_forward.1} parent=11 // pred_region
          _
        $region40: #{implicit_generator_forward.1} parent=11 // pred_fallthru
          _
        // Predicated region
        $region41: #{implicit_generator_forward.1} parent=11 // pred_check
          %p849 = pneg %p352
        $region42: #{implicit_generator_forward.1} parent=11 // pred_check_branch
          %851 = sbr.rel (%p849) target = $region44
        $region43: #{implicit_generator_forward.1} parent=11 // pred_region
          _
        $region44: #{implicit_generator_forward.1} parent=11 // pred_fallthru
          _
        // Predicated region
        $region45: #{implicit_generator_forward.1} parent=11 // pred_check
          %p852 = pneg %p373
        $region46: #{implicit_generator_forward.1} parent=11 // pred_check_branch
          %854 = sbr.rel (%p852) target = $region48
        $region47: #{implicit_generator_forward.1} parent=11 // pred_region
          _
        $region48: #{implicit_generator_forward.1} parent=11 // pred_fallthru
          _
        // Predicated region
        $region49: #{implicit_generator_forward.1} parent=11 // pred_check
          %p855 = pneg %p394
        $region50: #{implicit_generator_forward.1} parent=11 // pred_check_branch
          %857 = sbr.rel (%p855) target = $region52
        $region51: #{implicit_generator_forward.1} parent=11 // pred_region
          _
        $region52: #{implicit_generator_forward.1} parent=11 // pred_fallthru
          _
        // Predicated region
        $region53: #{implicit_generator_forward.1} parent=11 // pred_check
          %p858 = pneg %p415
        $region54: #{implicit_generator_forward.1} parent=11 // pred_check_branch
          %860 = sbr.rel (%p858) target = $region56
        $region55: #{implicit_generator_forward.1} parent=11 // pred_region
          _
        $region56: #{implicit_generator_forward.1} parent=11 // pred_fallthru
          _
        // Predicated region
        $region57: #{implicit_generator_forward.1} parent=11 // pred_check
          %p861 = pneg %p436
        $region58: #{implicit_generator_forward.1} parent=11 // pred_check_branch
          %863 = sbr.rel (%p861) target = $region60
        $region59: #{implicit_generator_forward.1} parent=11 // pred_region
          _
        $region60: #{implicit_generator_forward.1} parent=11 // pred_fallthru
          _
        // Predicated region
        $region61: #{implicit_generator_forward.1} parent=11 // pred_check
          %p864 = pneg %p457
        $region62: #{implicit_generator_forward.1} parent=11 // pred_check_branch
          %866 = sbr.rel (%p864) target = $region64
        $region63: #{implicit_generator_forward.1} parent=11 // pred_region
          _
        $region64: #{implicit_generator_forward.1} parent=11 // pred_fallthru
          _
        // Predicated region
        $region65: #{implicit_generator_forward.1} parent=11 // pred_check
          %p867 = pneg %p478
        $region66: #{implicit_generator_forward.1} parent=11 // pred_check_branch
          %869 = sbr.rel (%p867) target = $region68
        $region67: #{implicit_generator_forward.1} parent=11 // pred_region
          _
        $region68: #{implicit_generator_forward.1} parent=11 // pred_fallthru
          _
        // Predicated region
        $region69: #{implicit_generator_forward.1} parent=11 // pred_check
          %p870 = pneg %p499
        $region70: #{implicit_generator_forward.1} parent=11 // pred_check_branch
          %872 = sbr.rel (%p870) target = $region72
        $region71: #{implicit_generator_forward.1} parent=11 // pred_region
          _
        $region72: #{implicit_generator_forward.1} parent=11 // pred_fallthru
          _
        // Predicated region
        $region73: #{implicit_generator_forward.1} parent=11 // pred_check
          %p873 = pneg %p520
        $region74: #{implicit_generator_forward.1} parent=11 // pred_check_branch
          %875 = sbr.rel (%p873) target = $region76
        $region75: #{implicit_generator_forward.1} parent=11 // pred_region
          _
        $region76: #{implicit_generator_forward.1} parent=11 // pred_fallthru
          _
        // Predicated region
        $region77: #{implicit_generator_forward.1} parent=11 // pred_check
          %p876 = pneg %p541
        $region78: #{implicit_generator_forward.1} parent=11 // pred_check_branch
          %878 = sbr.rel (%p876) target = $region80
        $region79: #{implicit_generator_forward.1} parent=11 // pred_region
          _
        $region80: #{implicit_generator_forward.1} parent=11 // pred_fallthru
          _
        // Predicated region
        $region81: #{implicit_generator_forward.1} parent=11 // pred_check
          %p879 = pneg %p562
        $region82: #{implicit_generator_forward.1} parent=11 // pred_check_branch
          %881 = sbr.rel (%p879) target = $region84
        $region83: #{implicit_generator_forward.1} parent=11 // pred_region
          _
        $region84: #{implicit_generator_forward.1} parent=11 // pred_fallthru
          _
        // Predicated region
        $region85: #{implicit_generator_forward.1} parent=11 // pred_check
          %p882 = pneg %p583
        $region86: #{implicit_generator_forward.1} parent=11 // pred_check_branch
          %884 = sbr.rel (%p882) target = $region88
        $region87: #{implicit_generator_forward.1} parent=11 // pred_region
          _
        $region88: #{implicit_generator_forward.1} parent=11 // pred_fallthru
          _
        // Predicated region
        $region89: #{implicit_generator_forward.1} parent=11 // pred_check
          %p885 = pneg %p604
        $region90: #{implicit_generator_forward.1} parent=11 // pred_check_branch
          %887 = sbr.rel (%p885) target = $region92
        $region91: #{implicit_generator_forward.1} parent=11 // pred_region
          _
        $region92: #{implicit_generator_forward.1} parent=11 // pred_fallthru
          _
        // Predicated region
        $region93: #{implicit_generator_forward.1} parent=11 // pred_check
          %p888 = pneg %p625
        $region94: #{implicit_generator_forward.1} parent=11 // pred_check_branch
          %890 = sbr.rel (%p888) target = $region96
        $region95: #{implicit_generator_forward.1} parent=11 // pred_region
          _
        $region96: #{implicit_generator_forward.1} parent=11 // pred_fallthru
          _
        // Predicated region
        $region97: #{implicit_generator_forward.1} parent=11 // pred_check
          %p891 = pneg %p646
        $region98: #{implicit_generator_forward.1} parent=11 // pred_check_branch
          %893 = sbr.rel (%p891) target = $region100
        $region99: #{implicit_generator_forward.1} parent=11 // pred_region
          _
        $region100: #{implicit_generator_forward.1} parent=11 // pred_fallthru
          _
        // Predicated region
        $region101: #{implicit_generator_forward.1} parent=11 // pred_check
          %p894 = pneg %p667
        $region102: #{implicit_generator_forward.1} parent=11 // pred_check_branch
          %896 = sbr.rel (%p894) target = $region104
        $region103: #{implicit_generator_forward.1} parent=11 // pred_region
          _
        $region104: #{implicit_generator_forward.1} parent=11 // pred_fallthru
          _
        // Predicated region
        $region105: #{implicit_generator_forward.1} parent=11 // pred_check
          %p897 = pneg %p688
        $region106: #{implicit_generator_forward.1} parent=11 // pred_check_branch
          %899 = sbr.rel (%p897) target = $region108
        $region107: #{implicit_generator_forward.1} parent=11 // pred_region
          _
        $region108: #{implicit_generator_forward.1} parent=11 // pred_fallthru
          _
        // Predicated region
        $region109: #{implicit_generator_forward.1} parent=11 // pred_check
          %p900 = pneg %p709
        $region110: #{implicit_generator_forward.1} parent=11 // pred_check_branch
          %902 = sbr.rel (%p900) target = $region112
        $region111: #{implicit_generator_forward.1} parent=11 // pred_region
          _
        $region112: #{implicit_generator_forward.1} parent=11 // pred_fallthru
          _
      $region12: #{implicit_generator_forward.1} parent=5 // pred_fallthru
        _
      %p903 = scmp.lt.s32.totalorder %s80, 2
      // Predicated region
      $region113: #{implicit_generator_forward.1} parent=5 // pred_check
        %p904 = pneg %p903
      $region114: #{implicit_generator_forward.1} parent=5 // pred_check_branch
        %906 = sbr.rel (%p904) target = $region116
      $region115: #{implicit_generator_forward.1} parent=5 // pred_region
        // Predicated region
        $region117: #{implicit_generator_forward.1} parent=115 // pred_check
          %p907 = pneg %p100
        $region118: #{implicit_generator_forward.1} parent=115 // pred_check_branch
          %909 = sbr.rel (%p907) target = $region120
        $region119: #{implicit_generator_forward.1} parent=115 // pred_region
          %p910 = scmp.lt.s32.totalorder %s80, 1
          %s911 = scalar_select %p910, %s80, 1
          %s912 = smul.addr %s911, 16
          %s913 = smul.addr %s912, 8
          %s914 = scalar_lea.vmem %s1, %s913
        $region120: #{implicit_generator_forward.1} parent=115 // pred_fallthru
          _
        // Predicated region
        $region121: #{implicit_generator_forward.1} parent=115 // pred_check
          %p915 = pneg %p126
        $region122: #{implicit_generator_forward.1} parent=115 // pred_check_branch
          %917 = sbr.rel (%p915) target = $region124
        $region123: #{implicit_generator_forward.1} parent=115 // pred_region
          %p918 = scmp.lt.s32.totalorder %s80, 1
          %s919 = scalar_select %p918, %s80, 1
          %s920 = smul.addr %s919, 16
          %s921 = smul.addr %s920, 8
          %s922 = scalar_lea.vmem %s3, %s921
        $region124: #{implicit_generator_forward.1} parent=115 // pred_fallthru
          _
        // Predicated region
        $region125: #{implicit_generator_forward.1} parent=115 // pred_check
          %p923 = pneg %p152
        $region126: #{implicit_generator_forward.1} parent=115 // pred_check_branch
          %925 = sbr.rel (%p923) target = $region128
        $region127: #{implicit_generator_forward.1} parent=115 // pred_region
          %p926 = scmp.lt.s32.totalorder %s80, 1
          %s927 = scalar_select %p926, %s80, 1
          %s928 = smul.addr %s927, 4
          %s929 = scalar_lea.vmem %s5, %s928
        $region128: #{implicit_generator_forward.1} parent=115 // pred_fallthru
          _
        // Predicated region
        $region129: #{implicit_generator_forward.1} parent=115 // pred_check
          %p930 = pneg %p178
        $region130: #{implicit_generator_forward.1} parent=115 // pred_check_branch
          %932 = sbr.rel (%p930) target = $region132
        $region131: #{implicit_generator_forward.1} parent=115 // pred_region
          %p933 = scmp.lt.s32.totalorder %s80, 1
          %s934 = scalar_select %p933, %s80, 1
          %s935 = scalar_lea.vmem %s7, %s934
        $region132: #{implicit_generator_forward.1} parent=115 // pred_fallthru
          _
      $region116: #{implicit_generator_forward.1} parent=5 // pred_fallthru
        _
      %p936 = scmp.le.s32.totalorder 1, %s80
      %p937 = scmp.lt.s32.totalorder %s80, 3
      %p938 = pnand %p936, %p937
      %p939 = pneg %p938
      // Predicated region
      $region133: #{implicit_generator_forward.1} parent=5 // pred_check
        _
      $region134: #{implicit_generator_forward.1} parent=5 // pred_check_branch
        %941 = sbr.rel (%p938) target = $region136
      $region135: #{implicit_generator_forward.1} parent=5 // pred_region
        %s942 = ssub.s32 %s80, 1
        %p943 = scmp.lt.s32.totalorder %s85, 1
        %s944 = scalar_select %p943, %s85, 1
        %s945 = smul.addr %s944, 16
        %s946 = smul.addr %s945, 8
        %s947 = scalar_lea.vmem %s1, %s946
        %p948 = pneg %p106
        %p949 = pneg %p103
        %p950 = scmp.lt.s32.totalorder %s85, 1
        %s951 = scalar_select %p950, %s85, 1
        %s952 = smul.addr %s951, 16
        %s953 = smul.addr %s952, 8
        %s954 = scalar_lea.vmem %s3, %s953
        %p955 = pneg %p132
        %p956 = pneg %p129
        %p957 = scmp.lt.s32.totalorder %s85, 1
        %s958 = scalar_select %p957, %s85, 1
        %s959 = smul.addr %s958, 4
        %s960 = scalar_lea.vmem %s5, %s959
        %p961 = pneg %p158
        %p962 = pneg %p155
        %p963 = scmp.lt.s32.totalorder %s85, 1
        %s964 = scalar_select %p963, %s85, 1
        %s965 = scalar_lea.vmem %s7, %s964
        %p966 = pneg %p184
        %p967 = pneg %p181
        %p968 = pneg %p205
        %p969 = pneg %p202
        %p970 = pneg %p226
        %p971 = pneg %p223
        %p972 = pneg %p247
        %p973 = pneg %p244
        %p974 = pneg %p268
        %p975 = pneg %p265
        %p976 = pneg %p289
        %p977 = pneg %p286
        %p978 = pneg %p310
        %p979 = pneg %p307
        %p980 = pneg %p331
        %p981 = pneg %p328
        %p982 = pneg %p352
        %p983 = pneg %p349
        %p984 = pneg %p373
        %p985 = pneg %p370
        %p986 = pneg %p394
        %p987 = pneg %p391
        %p988 = pneg %p415
        %p989 = pneg %p412
        %p990 = pneg %p436
        %p991 = pneg %p433
        %p992 = pneg %p457
        %p993 = pneg %p454
        %p994 = pneg %p478
        %p995 = pneg %p475
        %p996 = pneg %p499
        %p997 = pneg %p496
        %p998 = pneg %p520
        %p999 = pneg %p517
        %p1000 = pneg %p541
        %p1001 = pneg %p538
        %p1002 = pneg %p562
        %p1003 = pneg %p559
        %p1004 = pneg %p583
        %p1005 = pneg %p580
        %p1006 = pneg %p604
        %p1007 = pneg %p601
        %p1008 = pneg %p625
        %p1009 = pneg %p622
        %p1010 = pneg %p646
        %p1011 = pneg %p643
        %p1012 = pneg %p667
        %p1013 = pneg %p664
        %p1014 = pneg %p688
        %p1015 = pneg %p685
        %p1016 = pneg %p709
        %p1017 = pneg %p706
        %p1018 = pneg %p735
        %p1019 = pneg %p732
        %s1020 = sand.u32 %s722, 1
        %s1021 = scalar_lea.sflag [#allocation4], %s1020
        %s1022 = sand.u32 %s722, 1
        %s1023 = scalar_lea.vmem [#allocation3], %s1022
        %p1024 = pneg %p761
        %p1025 = pneg %p758
        %s1026 = sand.u32 %s85, 1
        %s1027 = scalar_lea.sflag [#allocation6], %s1026
        %s1028 = sand.u32 %s748, 1
        %s1029 = scalar_lea.vmem [#allocation5], %s1028
        %p1030 = pneg %p787
        %p1031 = pneg %p784
        %s1032 = sand.u32 %s85, 1
        %s1033 = scalar_lea.sflag [#allocation6], %s1032
        %s1034 = sand.u32 %s774, 1
        %s1035 = scalar_lea.vmem [#allocation7], %s1034
        %p1036 = pneg %p813
        %p1037 = pneg %p810
        %p1038 = scmp.lt.s32.totalorder %s85, 1
        %s1039 = scalar_select %p1038, %s85, 1
        %s1040 = scalar_lea.vmem %s65, %s1039
        %p1041 = scmp.lt.s32.totalorder %s85, 1
        %s1042 = scalar_select %p1041, %s85, 1
        %s1043 = smul.addr %s1042, 16
        %s1044 = smul.addr %s1043, 8
        %s1045 = scalar_lea.vmem %s1, %s1044
        %p1046 = scmp.lt.s32.totalorder %s85, 1
        %s1047 = scalar_select %p1046, %s85, 1
        %s1048 = smul.addr %s1047, 16
        %s1049 = smul.addr %s1048, 8
        %s1050 = scalar_lea.vmem %s3, %s1049
        %p1051 = scmp.lt.s32.totalorder %s85, 1
        %s1052 = scalar_select %p1051, %s85, 1
        %s1053 = smul.addr %s1052, 4
        %s1054 = scalar_lea.vmem %s5, %s1053
        %p1055 = scmp.lt.s32.totalorder %s85, 1
        %s1056 = scalar_select %p1055, %s85, 1
        %s1057 = scalar_lea.vmem %s7, %s1056
        %p1058 = scmp.lt.s32.totalorder %s85, 1
        %s1059 = scalar_select %p1058, %s85, 1
        %s1060 = scalar_lea.vmem %s65, %s1059
        %v1061 = vld [vmem:[%s1045] sm:$0xff]
        %v1062 = vld [vmem:[%s1045 + $0x8] sm:$0xff]
        %v1063 = vld [vmem:[%s1045 + $0x10] sm:$0xff]
        %v1064 = vld [vmem:[%s1045 + $0x18] sm:$0xff]
        %v1065 = vld [vmem:[%s1045 + $0x20] sm:$0xff]
        %v1066 = vld [vmem:[%s1045 + $0x28] sm:$0xff]
        %v1067 = vld [vmem:[%s1045 + $0x30] sm:$0xff]
        %v1068 = vld [vmem:[%s1045 + $0x38] sm:$0xff]
        %v1069 = vld [vmem:[%s1045 + $0x40] sm:$0xff]
        %v1070 = vld [vmem:[%s1045 + $0x48] sm:$0xff]
        %v1071 = vld [vmem:[%s1045 + $0x50] sm:$0xff]
        %v1072 = vld [vmem:[%s1045 + $0x58] sm:$0xff]
        %v1073 = vld [vmem:[%s1045 + $0x60] sm:$0xff]
        %v1074 = vld [vmem:[%s1045 + $0x68] sm:$0xff]
        %v1075 = vld [vmem:[%s1045 + $0x70] sm:$0xff]
        %v1076 = vld [vmem:[%s1045 + $0x78] sm:$0xff]
        %v1077 = vld [vmem:[%s1050] sm:$0xff]
        %v1078 = vld [vmem:[%s1050 + $0x8] sm:$0xff]
        %v1079 = vld [vmem:[%s1050 + $0x10] sm:$0xff]
        %v1080 = vld [vmem:[%s1050 + $0x18] sm:$0xff]
        %v1081 = vld [vmem:[%s1050 + $0x20] sm:$0xff]
        %v1082 = vld [vmem:[%s1050 + $0x28] sm:$0xff]
        %v1083 = vld [vmem:[%s1050 + $0x30] sm:$0xff]
        %v1084 = vld [vmem:[%s1050 + $0x38] sm:$0xff]
        %v1085 = vld [vmem:[%s1050 + $0x40] sm:$0xff]
        %v1086 = vld [vmem:[%s1050 + $0x48] sm:$0xff]
        %v1087 = vld [vmem:[%s1050 + $0x50] sm:$0xff]
        %v1088 = vld [vmem:[%s1050 + $0x58] sm:$0xff]
        %v1089 = vld [vmem:[%s1050 + $0x60] sm:$0xff]
        %v1090 = vld [vmem:[%s1050 + $0x68] sm:$0xff]
        %v1091 = vld [vmem:[%s1050 + $0x70] sm:$0xff]
        %v1092 = vld [vmem:[%s1050 + $0x78] sm:$0xff]
        %v1093 = vld [vmem:[%s9] sm:$0x7]
        %v1094 = vld [vmem:[%s11] sm:$0x7]
        %vm1095 = vcmask 23552
        %v1097 = vsel %vm1095, %v1077, 0
        %v1100 = vsel %vm1095, %v1078, 0
        %v1103 = vsel %vm1095, %v1079, 0
        %v1106 = vsel %vm1095, %v1080, 0
        %v1109 = vsel %vm1095, %v1081, 0
        %v1112 = vsel %vm1095, %v1082, 0
        %v1115 = vsel %vm1095, %v1083, 0
        %v1118 = vsel %vm1095, %v1084, 0
        %v1121 = vsel %vm1095, %v1085, 0
        %v1124 = vsel %vm1095, %v1086, 0
        %v1127 = vsel %vm1095, %v1087, 0
        %v1130 = vsel %vm1095, %v1088, 0
        %v1133 = vsel %vm1095, %v1089, 0
        %v1136 = vsel %vm1095, %v1090, 0
        %v1139 = vsel %vm1095, %v1091, 0
        %v1142 = vsel %vm1095, %v1092, 0
        %vm1144 = vcmask 1042432
        %v1146 = vsel %vm1144, %v1094, 0
        %1148 = vmatprep.subr.mxu0 0.0
        %1149 = vmatpush1.msra.mxu0 %v1146
        %1150 = vmatprep.subr.mxu0 0.0
        %1151 = vmatpush1.msra.mxu0 0.0
        %1152 = vmatprep.subr.mxu0 0.0
        %1153 = vmatpush1.msra.mxu0 0.0
        %1154 = vmatprep.subr.mxu0 0.0
        %1155 = vmatpush1.msra.mxu0 0.0
        %1156 = vmatprep.subr.mxu0 0.0
        %1157 = vmatpush1.msra.mxu0 0.0
        %1158 = vmatprep.subr.mxu0 0.0
        %1159 = vmatpush1.msra.mxu0 0.0
        %1160 = vmatprep.subr.mxu0 0.0
        %1161 = vmatpush1.msra.mxu0 0.0
        %1162 = vmatprep.subr.mxu0 0.0
        %1163 = vmatpush1.msra.mxu0 0.0
        %1164 = vmatprep.subr.mxu0 0.0
        %1165 = vmatpush1.msra.mxu0 0.0
        %1166 = vmatprep.subr.mxu0 0.0
        %1167 = vmatpush1.msra.mxu0 0.0
        %1168 = vmatprep.subr.mxu0 0.0
        %1169 = vmatpush1.msra.mxu0 0.0
        %1170 = vmatprep.subr.mxu0 0.0
        %1171 = vmatpush1.msra.mxu0 0.0
        %1172 = vmatprep.subr.mxu0 0.0
        %1173 = vmatpush1.msra.mxu0 0.0
        %1174 = vmatprep.subr.mxu0 0.0
        %1175 = vmatpush1.msra.mxu0 0.0
        %1176 = vmatprep.subr.mxu0 0.0
        %1177 = vmatpush1.msra.mxu0 0.0
        %1178 = vmatprep.subr.mxu0 0.0
        %1179 = vmatpush1.msra.mxu0 0.0
        %1180 = vmatprep.subr.mxu0 0.0
        %1181 = vmatpush1.msra.mxu0 0.0
        %1182 = vmatprep.subr.mxu0 0.0
        %1183 = vmatpush1.msra.mxu0 0.0
        %1184 = vmatprep.subr.mxu0 0.0
        %1185 = vmatpush1.msra.mxu0 0.0
        %1186 = vmatprep.subr.mxu0 0.0
        %1187 = vmatpush1.msra.mxu0 0.0
        %1188 = vmatprep.subr.mxu0 0.0
        %1189 = vmatpush1.msra.mxu0 0.0
        %1190 = vmatprep.subr.mxu0 0.0
        %1191 = vmatpush1.msra.mxu0 0.0
        %1192 = vmatprep.subr.mxu0 0.0
        %1193 = vmatpush1.msra.mxu0 0.0
        %1194 = vmatprep.subr.mxu0 0.0
        %1195 = vmatpush1.msra.mxu0 0.0
        %1196 = vmatprep.subr.mxu0 0.0
        %1197 = vmatpush1.msra.mxu0 0.0
        %1198 = vmatprep.subr.mxu0 0.0
        %1199 = vmatpush1.msra.mxu0 0.0
        %1200 = vmatprep.subr.mxu0 0.0
        %1201 = vmatpush1.msra.mxu0 0.0
        %1202 = vmatprep.subr.mxu0 0.0
        %1203 = vmatpush1.msra.mxu0 0.0
        %1204 = vmatprep.subr.mxu0 0.0
        %1205 = vmatpush1.msra.mxu0 0.0
        %1206 = vmatprep.subr.mxu0 0.0
        %1207 = vmatpush1.msra.mxu0 0.0
        %1208 = vmatprep.subr.mxu0 0.0
        %1209 = vmatpush1.msra.mxu0 0.0
        %1210 = vmatprep.subr.mxu0 0.0
        %1211 = vmatpush1.msra.mxu0 0.0
        %1212 = vmatprep.mubr.f32.mxu0 0.0
        %1213 = vmatmul.mubr.f32.gmra.mrb[0].mxu0 %v1097
        %v1214 = vpop.f32.mrb[0].mxu0
        %v1215 = vadd.f32 0.0, %v1214
        %v1216 = vpop.f32.mrb[0].mxu0
        %1217 = vmatprep.mubr.f32.mxu0 0.0
        %1218 = vmatmul.mubr.f32.gmra.mrb[0].mxu0 %v1100
        %v1219 = vpop.f32.mrb[0].mxu0
        %v1220 = vadd.f32 0.0, %v1219
        %v1221 = vpop.f32.mrb[0].mxu0
        %1222 = vmatprep.mubr.f32.mxu0 0.0
        %1223 = vmatmul.mubr.f32.gmra.mrb[0].mxu0 %v1103
        %v1224 = vpop.f32.mrb[0].mxu0
        %v1225 = vadd.f32 0.0, %v1224
        %v1226 = vpop.f32.mrb[0].mxu0
        %1227 = vmatprep.mubr.f32.mxu0 0.0
        %1228 = vmatmul.mubr.f32.gmra.mrb[0].mxu0 %v1106
        %v1229 = vpop.f32.mrb[0].mxu0
        %v1230 = vadd.f32 0.0, %v1229
        %v1231 = vpop.f32.mrb[0].mxu0
        %1232 = vmatprep.mubr.f32.mxu0 0.0
        %1233 = vmatmul.mubr.f32.gmra.mrb[0].mxu0 %v1109
        %v1234 = vpop.f32.mrb[0].mxu0
        %v1235 = vadd.f32 0.0, %v1234
        %v1236 = vpop.f32.mrb[0].mxu0
        %1237 = vmatprep.mubr.f32.mxu0 0.0
        %1238 = vmatmul.mubr.f32.gmra.mrb[0].mxu0 %v1112
        %v1239 = vpop.f32.mrb[0].mxu0
        %v1240 = vadd.f32 0.0, %v1239
        %v1241 = vpop.f32.mrb[0].mxu0
        %1242 = vmatprep.mubr.f32.mxu0 0.0
        %1243 = vmatmul.mubr.f32.gmra.mrb[0].mxu0 %v1115
        %v1244 = vpop.f32.mrb[0].mxu0
        %v1245 = vadd.f32 0.0, %v1244
        %v1246 = vpop.f32.mrb[0].mxu0
        %1247 = vmatprep.mubr.f32.mxu0 0.0
        %1248 = vmatmul.mubr.f32.gmra.mrb[0].mxu0 %v1118
        %v1249 = vpop.f32.mrb[0].mxu0
        %v1250 = vadd.f32 0.0, %v1249
        %v1251 = vpop.f32.mrb[0].mxu0
        %1252 = vmatprep.mubr.f32.mxu0 0.0
        %1253 = vmatmul.mubr.f32.gmra.mrb[0].mxu0 %v1121
        %v1254 = vpop.f32.mrb[0].mxu0
        %v1255 = vadd.f32 0.0, %v1254
        %v1256 = vpop.f32.mrb[0].mxu0
        %1257 = vmatprep.mubr.f32.mxu0 0.0
        %1258 = vmatmul.mubr.f32.gmra.mrb[0].mxu0 %v1124
        %v1259 = vpop.f32.mrb[0].mxu0
        %v1260 = vadd.f32 0.0, %v1259
        %v1261 = vpop.f32.mrb[0].mxu0
        %1262 = vmatprep.mubr.f32.mxu0 0.0
        %1263 = vmatmul.mubr.f32.gmra.mrb[0].mxu0 %v1127
        %v1264 = vpop.f32.mrb[0].mxu0
        %v1265 = vadd.f32 0.0, %v1264
        %v1266 = vpop.f32.mrb[0].mxu0
        %1267 = vmatprep.mubr.f32.mxu0 0.0
        %1268 = vmatmul.mubr.f32.gmra.mrb[0].mxu0 %v1130
        %v1269 = vpop.f32.mrb[0].mxu0
        %v1270 = vadd.f32 0.0, %v1269
        %v1271 = vpop.f32.mrb[0].mxu0
        %1272 = vmatprep.mubr.f32.mxu0 0.0
        %1273 = vmatmul.mubr.f32.gmra.mrb[0].mxu0 %v1133
        %v1274 = vpop.f32.mrb[0].mxu0
        %v1275 = vadd.f32 0.0, %v1274
        %v1276 = vpop.f32.mrb[0].mxu0
        %1277 = vmatprep.mubr.f32.mxu0 0.0
        %1278 = vmatmul.mubr.f32.gmra.mrb[0].mxu0 %v1136
        %v1279 = vpop.f32.mrb[0].mxu0
        %v1280 = vadd.f32 0.0, %v1279
        %v1281 = vpop.f32.mrb[0].mxu0
        %1282 = vmatprep.mubr.f32.mxu0 0.0
        %1283 = vmatmul.mubr.f32.gmra.mrb[0].mxu0 %v1139
        %v1284 = vpop.f32.mrb[0].mxu0
        %v1285 = vadd.f32 0.0, %v1284
        %v1286 = vpop.f32.mrb[0].mxu0
        %1287 = vmatprep.mubr.f32.mxu0 0.0
        %1288 = vmatmul.mubr.f32.gmra.mrb[0].mxu0 %v1142
        %v1289 = vpop.f32.mrb[0].mxu0
        %v1290 = vadd.f32 0.0, %v1289
        %v1291 = vpop.f32.mrb[0].mxu0
        %1292 = vdwg.mxu0
        %v1294 = vsel %vm1095, %v1061, 0
        %v1297 = vsel %vm1095, %v1062, 0
        %v1300 = vsel %vm1095, %v1063, 0
        %v1303 = vsel %vm1095, %v1064, 0
        %v1306 = vsel %vm1095, %v1065, 0
        %v1309 = vsel %vm1095, %v1066, 0
        %v1312 = vsel %vm1095, %v1067, 0
        %v1315 = vsel %vm1095, %v1068, 0
        %v1318 = vsel %vm1095, %v1069, 0
        %v1321 = vsel %vm1095, %v1070, 0
        %v1324 = vsel %vm1095, %v1071, 0
        %v1327 = vsel %vm1095, %v1072, 0
        %v1330 = vsel %vm1095, %v1073, 0
        %v1333 = vsel %vm1095, %v1074, 0
        %v1336 = vsel %vm1095, %v1075, 0
        %v1339 = vsel %vm1095, %v1076, 0
        %v1342 = vsel %vm1144, %v1093, 0
        %1344 = vmatprep.subr.mxu0 0.0
        %1345 = vmatpush1.msra.mxu0 %v1342
        %1346 = vmatprep.subr.mxu0 0.0
        %1347 = vmatpush1.msra.mxu0 0.0
        %1348 = vmatprep.subr.mxu0 0.0
        %1349 = vmatpush1.msra.mxu0 0.0
        %1350 = vmatprep.subr.mxu0 0.0
        %1351 = vmatpush1.msra.mxu0 0.0
        %1352 = vmatprep.subr.mxu0 0.0
        %1353 = vmatpush1.msra.mxu0 0.0
        %1354 = vmatprep.subr.mxu0 0.0
        %1355 = vmatpush1.msra.mxu0 0.0
        %1356 = vmatprep.subr.mxu0 0.0
        %1357 = vmatpush1.msra.mxu0 0.0
        %1358 = vmatprep.subr.mxu0 0.0
        %1359 = vmatpush1.msra.mxu0 0.0
        %1360 = vmatprep.subr.mxu0 0.0
        %1361 = vmatpush1.msra.mxu0 0.0
        %1362 = vmatprep.subr.mxu0 0.0
        %1363 = vmatpush1.msra.mxu0 0.0
        %1364 = vmatprep.subr.mxu0 0.0
        %1365 = vmatpush1.msra.mxu0 0.0
        %1366 = vmatprep.subr.mxu0 0.0
        %1367 = vmatpush1.msra.mxu0 0.0
        %1368 = vmatprep.subr.mxu0 0.0
        %1369 = vmatpush1.msra.mxu0 0.0
        %1370 = vmatprep.subr.mxu0 0.0
        %1371 = vmatpush1.msra.mxu0 0.0
        %1372 = vmatprep.subr.mxu0 0.0
        %1373 = vmatpush1.msra.mxu0 0.0
        %1374 = vmatprep.subr.mxu0 0.0
        %1375 = vmatpush1.msra.mxu0 0.0
        %1376 = vmatprep.subr.mxu0 0.0
        %1377 = vmatpush1.msra.mxu0 0.0
        %1378 = vmatprep.subr.mxu0 0.0
        %1379 = vmatpush1.msra.mxu0 0.0
        %1380 = vmatprep.subr.mxu0 0.0
        %1381 = vmatpush1.msra.mxu0 0.0
        %1382 = vmatprep.subr.mxu0 0.0
        %1383 = vmatpush1.msra.mxu0 0.0
        %1384 = vmatprep.subr.mxu0 0.0
        %1385 = vmatpush1.msra.mxu0 0.0
        %1386 = vmatprep.subr.mxu0 0.0
        %1387 = vmatpush1.msra.mxu0 0.0
        %1388 = vmatprep.subr.mxu0 0.0
        %1389 = vmatpush1.msra.mxu0 0.0
        %1390 = vmatprep.subr.mxu0 0.0
        %1391 = vmatpush1.msra.mxu0 0.0
        %1392 = vmatprep.subr.mxu0 0.0
        %1393 = vmatpush1.msra.mxu0 0.0
        %1394 = vmatprep.subr.mxu0 0.0
        %1395 = vmatpush1.msra.mxu0 0.0
        %1396 = vmatprep.subr.mxu0 0.0
        %1397 = vmatpush1.msra.mxu0 0.0
        %1398 = vmatprep.subr.mxu0 0.0
        %1399 = vmatpush1.msra.mxu0 0.0
        %1400 = vmatprep.subr.mxu0 0.0
        %1401 = vmatpush1.msra.mxu0 0.0
        %1402 = vmatprep.subr.mxu0 0.0
        %1403 = vmatpush1.msra.mxu0 0.0
        %1404 = vmatprep.subr.mxu0 0.0
        %1405 = vmatpush1.msra.mxu0 0.0
        %1406 = vmatprep.subr.mxu0 0.0
        %1407 = vmatpush1.msra.mxu0 0.0
        %1408 = vmatprep.mubr.f32.mxu0 0.0
        %1409 = vmatmul.mubr.f32.gmra.mrb[0].mxu0 %v1294
        %v1410 = vpop.f32.mrb[0].mxu0
        %v1411 = vadd.f32 %v1215, %v1410
        %v1412 = vpop.f32.mrb[0].mxu0
        %1413 = vmatprep.mubr.f32.mxu0 0.0
        %1414 = vmatmul.mubr.f32.gmra.mrb[0].mxu0 %v1297
        %v1415 = vpop.f32.mrb[0].mxu0
        %v1416 = vadd.f32 %v1220, %v1415
        %v1417 = vpop.f32.mrb[0].mxu0
        %1418 = vmatprep.mubr.f32.mxu0 0.0
        %1419 = vmatmul.mubr.f32.gmra.mrb[0].mxu0 %v1300
        %v1420 = vpop.f32.mrb[0].mxu0
        %v1421 = vadd.f32 %v1225, %v1420
        %v1422 = vpop.f32.mrb[0].mxu0
        %1423 = vmatprep.mubr.f32.mxu0 0.0
        %1424 = vmatmul.mubr.f32.gmra.mrb[0].mxu0 %v1303
        %v1425 = vpop.f32.mrb[0].mxu0
        %v1426 = vadd.f32 %v1230, %v1425
        %v1427 = vpop.f32.mrb[0].mxu0
        %1428 = vmatprep.mubr.f32.mxu0 0.0
        %1429 = vmatmul.mubr.f32.gmra.mrb[0].mxu0 %v1306
        %v1430 = vpop.f32.mrb[0].mxu0
        %v1431 = vadd.f32 %v1235, %v1430
        %v1432 = vpop.f32.mrb[0].mxu0
        %1433 = vmatprep.mubr.f32.mxu0 0.0
        %1434 = vmatmul.mubr.f32.gmra.mrb[0].mxu0 %v1309
        %v1435 = vpop.f32.mrb[0].mxu0
        %v1436 = vadd.f32 %v1240, %v1435
        %v1437 = vpop.f32.mrb[0].mxu0
        %1438 = vmatprep.mubr.f32.mxu0 0.0
        %1439 = vmatmul.mubr.f32.gmra.mrb[0].mxu0 %v1312
        %v1440 = vpop.f32.mrb[0].mxu0
        %v1441 = vadd.f32 %v1245, %v1440
        %v1442 = vpop.f32.mrb[0].mxu0
        %1443 = vmatprep.mubr.f32.mxu0 0.0
        %1444 = vmatmul.mubr.f32.gmra.mrb[0].mxu0 %v1315
        %v1445 = vpop.f32.mrb[0].mxu0
        %v1446 = vadd.f32 %v1250, %v1445
        %v1447 = vpop.f32.mrb[0].mxu0
        %1448 = vmatprep.mubr.f32.mxu0 0.0
        %1449 = vmatmul.mubr.f32.gmra.mrb[0].mxu0 %v1318
        %v1450 = vpop.f32.mrb[0].mxu0
        %v1451 = vadd.f32 %v1255, %v1450
        %v1452 = vpop.f32.mrb[0].mxu0
        %1453 = vmatprep.mubr.f32.mxu0 0.0
        %1454 = vmatmul.mubr.f32.gmra.mrb[0].mxu0 %v1321
        %v1455 = vpop.f32.mrb[0].mxu0
        %v1456 = vadd.f32 %v1260, %v1455
        %v1457 = vpop.f32.mrb[0].mxu0
        %1458 = vmatprep.mubr.f32.mxu0 0.0
        %1459 = vmatmul.mubr.f32.gmra.mrb[0].mxu0 %v1324
        %v1460 = vpop.f32.mrb[0].mxu0
        %v1461 = vadd.f32 %v1265, %v1460
        %v1462 = vpop.f32.mrb[0].mxu0
        %1463 = vmatprep.mubr.f32.mxu0 0.0
        %1464 = vmatmul.mubr.f32.gmra.mrb[0].mxu0 %v1327
        %v1465 = vpop.f32.mrb[0].mxu0
        %v1466 = vadd.f32 %v1270, %v1465
        %v1467 = vpop.f32.mrb[0].mxu0
        %1468 = vmatprep.mubr.f32.mxu0 0.0
        %1469 = vmatmul.mubr.f32.gmra.mrb[0].mxu0 %v1330
        %v1470 = vpop.f32.mrb[0].mxu0
        %v1471 = vadd.f32 %v1275, %v1470
        %v1472 = vpop.f32.mrb[0].mxu0
        %1473 = vmatprep.mubr.f32.mxu0 0.0
        %1474 = vmatmul.mubr.f32.gmra.mrb[0].mxu0 %v1333
        %v1475 = vpop.f32.mrb[0].mxu0
        %v1476 = vadd.f32 %v1280, %v1475
        %v1477 = vpop.f32.mrb[0].mxu0
        %1478 = vmatprep.mubr.f32.mxu0 0.0
        %1479 = vmatmul.mubr.f32.gmra.mrb[0].mxu0 %v1336
        %v1480 = vpop.f32.mrb[0].mxu0
        %v1481 = vadd.f32 %v1285, %v1480
        %v1482 = vpop.f32.mrb[0].mxu0
        %1483 = vmatprep.mubr.f32.mxu0 0.0
        %1484 = vmatmul.mubr.f32.gmra.mrb[0].mxu0 %v1339
        %v1485 = vpop.f32.mrb[0].mxu0
        %v1486 = vadd.f32 %v1290, %v1485
        %v1487 = vpop.f32.mrb[0].mxu0
        %1488 = vdwg.mxu0
        %v1489 = vld [vmem:[%s13] sm:$0x1]
        %v1491 = vlaneseq
        %v1492 = vshrl.u32 %v1491, 7
        %v1493 = vsub.s32 0, %v1492
        %v1494 = vrot.slane %v1489, %v1493
        %v1496 = vadd.f32 %v1411, %v1494
        %v1497 = vadd.f32 %v1416, %v1494
        %v1498 = vadd.f32 %v1421, %v1494
        %v1499 = vadd.f32 %v1426, %v1494
        %v1500 = vadd.f32 %v1431, %v1494
        %v1501 = vadd.f32 %v1436, %v1494
        %v1502 = vadd.f32 %v1441, %v1494
        %v1503 = vadd.f32 %v1446, %v1494
        %v1504 = vadd.f32 %v1451, %v1494
        %v1505 = vadd.f32 %v1456, %v1494
        %v1506 = vadd.f32 %v1461, %v1494
        %v1507 = vadd.f32 %v1466, %v1494
        %v1508 = vadd.f32 %v1471, %v1494
        %v1509 = vadd.f32 %v1476, %v1494
        %v1510 = vadd.f32 %v1481, %v1494
        %v1511 = vadd.f32 %v1486, %v1494
        %v1512 = vmax.f32 %v1496, 0.0
        %v1513 = vmax.f32 %v1497, 0.0
        %v1514 = vmax.f32 %v1498, 0.0
        %v1515 = vmax.f32 %v1499, 0.0
        %v1516 = vmax.f32 %v1500, 0.0
        %v1517 = vmax.f32 %v1501, 0.0
        %v1518 = vmax.f32 %v1502, 0.0
        %v1519 = vmax.f32 %v1503, 0.0
        %v1520 = vmax.f32 %v1504, 0.0
        %v1521 = vmax.f32 %v1505, 0.0
        %v1522 = vmax.f32 %v1506, 0.0
        %v1523 = vmax.f32 %v1507, 0.0
        %v1524 = vmax.f32 %v1508, 0.0
        %v1525 = vmax.f32 %v1509, 0.0
        %v1526 = vmax.f32 %v1510, 0.0
        %v1527 = vmax.f32 %v1511, 0.0
        %v1528 = vld [vmem:[%s15] sm:$0xff]
        %v1529 = vld [vmem:[%s15 + $0x8] sm:$0xff]
        %v1530 = vld [vmem:[%s15 + $0x10] sm:$0xff]
        %v1531 = vld [vmem:[%s15 + $0x18] sm:$0xff]
        %v1532 = vld [vmem:[%s15 + $0x20] sm:$0xff]
        %v1533 = vld [vmem:[%s15 + $0x28] sm:$0xff]
        %v1534 = vld [vmem:[%s15 + $0x30] sm:$0xff]
        %v1535 = vld [vmem:[%s15 + $0x38] sm:$0xff]
        %v1536 = vld [vmem:[%s15 + $0x40] sm:$0xff]
        %v1537 = vld [vmem:[%s15 + $0x48] sm:$0xff]
        %v1538 = vld [vmem:[%s15 + $0x50] sm:$0xff]
        %v1539 = vld [vmem:[%s15 + $0x58] sm:$0xff]
        %v1540 = vld [vmem:[%s15 + $0x60] sm:$0xff]
        %v1541 = vld [vmem:[%s15 + $0x68] sm:$0xff]
        %v1542 = vld [vmem:[%s15 + $0x70] sm:$0xff]
        %v1543 = vld [vmem:[%s15 + $0x78] sm:$0xff]
        %v1544 = vld [vmem:[%s17] sm:$0x1]
        %v1546 = vlaneseq
        %v1547 = vshrl.u32 %v1546, 7
        %v1548 = vsub.s32 0, %v1547
        %v1549 = vrot.slane %v1544, %v1548
        %1551 = vmatprep.subr.mxu0 0.0
        %1552 = vmatpush1.msra.mxu0 %v1528
        %1553 = vmatprep.subr.mxu0 0.0
        %1554 = vmatpush1.msra.mxu0 %v1529
        %1555 = vmatprep.subr.mxu0 0.0
        %1556 = vmatpush1.msra.mxu0 %v1530
        %1557 = vmatprep.subr.mxu0 0.0
        %1558 = vmatpush1.msra.mxu0 %v1531
        %1559 = vmatprep.subr.mxu0 0.0
        %1560 = vmatpush1.msra.mxu0 %v1532
        %1561 = vmatprep.subr.mxu0 0.0
        %1562 = vmatpush1.msra.mxu0 %v1533
        %1563 = vmatprep.subr.mxu0 0.0
        %1564 = vmatpush1.msra.mxu0 %v1534
        %1565 = vmatprep.subr.mxu0 0.0
        %1566 = vmatpush1.msra.mxu0 %v1535
        %1567 = vmatprep.subr.mxu0 0.0
        %1568 = vmatpush1.msra.mxu0 %v1536
        %1569 = vmatprep.subr.mxu0 0.0
        %1570 = vmatpush1.msra.mxu0 %v1537
        %1571 = vmatprep.subr.mxu0 0.0
        %1572 = vmatpush1.msra.mxu0 %v1538
        %1573 = vmatprep.subr.mxu0 0.0
        %1574 = vmatpush1.msra.mxu0 %v1539
        %1575 = vmatprep.subr.mxu0 0.0
        %1576 = vmatpush1.msra.mxu0 %v1540
        %1577 = vmatprep.subr.mxu0 0.0
        %1578 = vmatpush1.msra.mxu0 %v1541
        %1579 = vmatprep.subr.mxu0 0.0
        %1580 = vmatpush1.msra.mxu0 %v1542
        %1581 = vmatprep.subr.mxu0 0.0
        %1582 = vmatpush1.msra.mxu0 %v1543
        %1583 = vmatprep.subr.mxu0 0.0
        %1584 = vmatpush1.msra.mxu0 0.0
        %1585 = vmatprep.subr.mxu0 0.0
        %1586 = vmatpush1.msra.mxu0 0.0
        %1587 = vmatprep.subr.mxu0 0.0
        %1588 = vmatpush1.msra.mxu0 0.0
        %1589 = vmatprep.subr.mxu0 0.0
        %1590 = vmatpush1.msra.mxu0 0.0
        %1591 = vmatprep.subr.mxu0 0.0
        %1592 = vmatpush1.msra.mxu0 0.0
        %1593 = vmatprep.subr.mxu0 0.0
        %1594 = vmatpush1.msra.mxu0 0.0
        %1595 = vmatprep.subr.mxu0 0.0
        %1596 = vmatpush1.msra.mxu0 0.0
        %1597 = vmatprep.subr.mxu0 0.0
        %1598 = vmatpush1.msra.mxu0 0.0
        %1599 = vmatprep.subr.mxu0 0.0
        %1600 = vmatpush1.msra.mxu0 0.0
        %1601 = vmatprep.subr.mxu0 0.0
        %1602 = vmatpush1.msra.mxu0 0.0
        %1603 = vmatprep.subr.mxu0 0.0
        %1604 = vmatpush1.msra.mxu0 0.0
        %1605 = vmatprep.subr.mxu0 0.0
        %1606 = vmatpush1.msra.mxu0 0.0
        %1607 = vmatprep.subr.mxu0 0.0
        %1608 = vmatpush1.msra.mxu0 0.0
        %1609 = vmatprep.subr.mxu0 0.0
        %1610 = vmatpush1.msra.mxu0 0.0
        %1611 = vmatprep.subr.mxu0 0.0
        %1612 = vmatpush1.msra.mxu0 0.0
        %1613 = vmatprep.subr.mxu0 0.0
        %1614 = vmatpush1.msra.mxu0 0.0
        %1615 = vmatprep.mubr.f32.mxu0 0.0
        %1616 = vmatmul.mubr.f32.gmra.mrb[0].mxu0 %v1512
        %v1617 = vpop.f32.mrb[0].mxu0
        %v1618 = vadd.f32 %v1549, %v1617
        %v1619 = vpop.f32.mrb[0].mxu0
        %1620 = vmatprep.mubr.f32.mxu0 0.0
        %1621 = vmatmul.mubr.f32.gmra.mrb[0].mxu0 %v1513
        %v1622 = vpop.f32.mrb[0].mxu0
        %v1623 = vadd.f32 %v1549, %v1622
        %v1624 = vpop.f32.mrb[0].mxu0
        %1625 = vmatprep.mubr.f32.mxu0 0.0
        %1626 = vmatmul.mubr.f32.gmra.mrb[0].mxu0 %v1514
        %v1627 = vpop.f32.mrb[0].mxu0
        %v1628 = vadd.f32 %v1549, %v1627
        %v1629 = vpop.f32.mrb[0].mxu0
        %1630 = vmatprep.mubr.f32.mxu0 0.0
        %1631 = vmatmul.mubr.f32.gmra.mrb[0].mxu0 %v1515
        %v1632 = vpop.f32.mrb[0].mxu0
        %v1633 = vadd.f32 %v1549, %v1632
        %v1634 = vpop.f32.mrb[0].mxu0
        %1635 = vmatprep.mubr.f32.mxu0 0.0
        %1636 = vmatmul.mubr.f32.gmra.mrb[0].mxu0 %v1516
        %v1637 = vpop.f32.mrb[0].mxu0
        %v1638 = vadd.f32 %v1549, %v1637
        %v1639 = vpop.f32.mrb[0].mxu0
        %1640 = vmatprep.mubr.f32.mxu0 0.0
        %1641 = vmatmul.mubr.f32.gmra.mrb[0].mxu0 %v1517
        %v1642 = vpop.f32.mrb[0].mxu0
        %v1643 = vadd.f32 %v1549, %v1642
        %v1644 = vpop.f32.mrb[0].mxu0
        %1645 = vmatprep.mubr.f32.mxu0 0.0
        %1646 = vmatmul.mubr.f32.gmra.mrb[0].mxu0 %v1518
        %v1647 = vpop.f32.mrb[0].mxu0
        %v1648 = vadd.f32 %v1549, %v1647
        %v1649 = vpop.f32.mrb[0].mxu0
        %1650 = vmatprep.mubr.f32.mxu0 0.0
        %1651 = vmatmul.mubr.f32.gmra.mrb[0].mxu0 %v1519
        %v1652 = vpop.f32.mrb[0].mxu0
        %v1653 = vadd.f32 %v1549, %v1652
        %v1654 = vpop.f32.mrb[0].mxu0
        %1655 = vmatprep.mubr.f32.mxu0 0.0
        %1656 = vmatmul.mubr.f32.gmra.mrb[0].mxu0 %v1520
        %v1657 = vpop.f32.mrb[0].mxu0
        %v1658 = vadd.f32 %v1549, %v1657
        %v1659 = vpop.f32.mrb[0].mxu0
        %1660 = vmatprep.mubr.f32.mxu0 0.0
        %1661 = vmatmul.mubr.f32.gmra.mrb[0].mxu0 %v1521
        %v1662 = vpop.f32.mrb[0].mxu0
        %v1663 = vadd.f32 %v1549, %v1662
        %v1664 = vpop.f32.mrb[0].mxu0
        %1665 = vmatprep.mubr.f32.mxu0 0.0
        %1666 = vmatmul.mubr.f32.gmra.mrb[0].mxu0 %v1522
        %v1667 = vpop.f32.mrb[0].mxu0
        %v1668 = vadd.f32 %v1549, %v1667
        %v1669 = vpop.f32.mrb[0].mxu0
        %1670 = vmatprep.mubr.f32.mxu0 0.0
        %1671 = vmatmul.mubr.f32.gmra.mrb[0].mxu0 %v1523
        %v1672 = vpop.f32.mrb[0].mxu0
        %v1673 = vadd.f32 %v1549, %v1672
        %v1674 = vpop.f32.mrb[0].mxu0
        %1675 = vmatprep.mubr.f32.mxu0 0.0
        %1676 = vmatmul.mubr.f32.gmra.mrb[0].mxu0 %v1524
        %v1677 = vpop.f32.mrb[0].mxu0
        %v1678 = vadd.f32 %v1549, %v1677
        %v1679 = vpop.f32.mrb[0].mxu0
        %1680 = vmatprep.mubr.f32.mxu0 0.0
        %1681 = vmatmul.mubr.f32.gmra.mrb[0].mxu0 %v1525
        %v1682 = vpop.f32.mrb[0].mxu0
        %v1683 = vadd.f32 %v1549, %v1682
        %v1684 = vpop.f32.mrb[0].mxu0
        %1685 = vmatprep.mubr.f32.mxu0 0.0
        %1686 = vmatmul.mubr.f32.gmra.mrb[0].mxu0 %v1526
        %v1687 = vpop.f32.mrb[0].mxu0
        %v1688 = vadd.f32 %v1549, %v1687
        %v1689 = vpop.f32.mrb[0].mxu0
        %1690 = vmatprep.mubr.f32.mxu0 0.0
        %1691 = vmatmul.mubr.f32.gmra.mrb[0].mxu0 %v1527
        %v1692 = vpop.f32.mrb[0].mxu0
        %v1693 = vadd.f32 %v1549, %v1692
        %v1694 = vpop.f32.mrb[0].mxu0
        %1695 = vdwg.mxu0
        %v1696 = vmax.f32 %v1618, 0.0
        %v1697 = vmax.f32 %v1623, 0.0
        %v1698 = vmax.f32 %v1628, 0.0
        %v1699 = vmax.f32 %v1633, 0.0
        %v1700 = vmax.f32 %v1638, 0.0
        %v1701 = vmax.f32 %v1643, 0.0
        %v1702 = vmax.f32 %v1648, 0.0
        %v1703 = vmax.f32 %v1653, 0.0
        %v1704 = vmax.f32 %v1658, 0.0
        %v1705 = vmax.f32 %v1663, 0.0
        %v1706 = vmax.f32 %v1668, 0.0
        %v1707 = vmax.f32 %v1673, 0.0
        %v1708 = vmax.f32 %v1678, 0.0
        %v1709 = vmax.f32 %v1683, 0.0
        %v1710 = vmax.f32 %v1688, 0.0
        %v1711 = vmax.f32 %v1693, 0.0
        %1712 = vxpose.xlu0.b32.start [1/16] %v1696, 128
        %1713 = vxpose.xlu0.b32.cont [2/16] %v1697, 128
        %1714 = vxpose.xlu0.b32.cont [3/16] %v1698, 128
        %1715 = vxpose.xlu0.b32.cont [4/16] %v1699, 128
        %1716 = vxpose.xlu0.b32.cont [5/16] %v1700, 128
        %1717 = vxpose.xlu0.b32.cont [6/16] %v1701, 128
        %1718 = vxpose.xlu0.b32.cont [7/16] %v1702, 128
        %1719 = vxpose.xlu0.b32.cont [8/16] %v1703, 128
        %1720 = vxpose.xlu0.b32.cont [9/16] %v1704, 128
        %1721 = vxpose.xlu0.b32.cont [10/16] %v1705, 128
        %1722 = vxpose.xlu0.b32.cont [11/16] %v1706, 128
        %1723 = vxpose.xlu0.b32.cont [12/16] %v1707, 128
        %1724 = vxpose.xlu0.b32.cont [13/16] %v1708, 128
        %1725 = vxpose.xlu0.b32.cont [14/16] %v1709, 128
        %1726 = vxpose.xlu0.b32.cont [15/16] %v1710, 128
        %1727 = vxpose.xlu0.b32.end [16/16] %v1711, 128
        %v1728 = vpop.trf.xlu0
        %v1729 = vpop.trf.xlu0
        %v1730 = vpop.trf.xlu0
        %v1731 = vpop.trf.xlu0
        %v1732 = vpop.trf.xlu0
        %v1733 = vpop.trf.xlu0
        %v1734 = vpop.trf.xlu0
        %v1735 = vpop.trf.xlu0
        %v1736 = vpop.trf.xlu0
        %v1737 = vpop.trf.xlu0
        %v1738 = vpop.trf.xlu0
        %v1739 = vpop.trf.xlu0
        %v1740 = vpop.trf.xlu0
        %v1741 = vpop.trf.xlu0
        %v1742 = vpop.trf.xlu0
        %v1743 = vpop.trf.xlu0
        %1744 = vmax.xlane.f32.xlu0 %v1728
        %v1745 = vpop.xlane.xlu0 %1744
        %1746 = vmax.xlane.f32.xlu0 %v1729
        %v1747 = vpop.xlane.xlu0 %1746
        %1748 = vmax.xlane.f32.xlu0 %v1730
        %v1749 = vpop.xlane.xlu0 %1748
        %1750 = vmax.xlane.f32.xlu0 %v1731
        %v1751 = vpop.xlane.xlu0 %1750
        %1752 = vmax.xlane.f32.xlu0 %v1732
        %v1753 = vpop.xlane.xlu0 %1752
        %1754 = vmax.xlane.f32.xlu0 %v1733
        %v1755 = vpop.xlane.xlu0 %1754
        %1756 = vmax.xlane.f32.xlu0 %v1734
        %v1757 = vpop.xlane.xlu0 %1756
        %1758 = vmax.xlane.f32.xlu0 %v1735
        %v1759 = vpop.xlane.xlu0 %1758
        %v1760 = vld [vmem:[%s21] sm:$0xff]
        %v1761 = vld [vmem:[%s21 + $0x8] sm:$0xff]
        %v1762 = vld [vmem:[%s21 + $0x10] sm:$0xff]
        %v1763 = vld [vmem:[%s21 + $0x18] sm:$0xff]
        %v1764 = vld [vmem:[%s21 + $0x20] sm:$0xff]
        %v1765 = vld [vmem:[%s21 + $0x28] sm:$0xff]
        %v1766 = vld [vmem:[%s21 + $0x30] sm:$0xff]
        %v1767 = vld [vmem:[%s21 + $0x38] sm:$0xff]
        %v1768 = vmul.f32 %v1745, %v1760
        %v1769 = vmul.f32 %v1747, %v1761
        %v1770 = vmul.f32 %v1749, %v1762
        %v1771 = vmul.f32 %v1751, %v1763
        %v1772 = vmul.f32 %v1753, %v1764
        %v1773 = vmul.f32 %v1755, %v1765
        %v1774 = vmul.f32 %v1757, %v1766
        %v1775 = vmul.f32 %v1759, %v1767
        %vm1776 = vcmask 523264
        %v1777 = vsel %vm1776, %v1768, 0.0
        %v1778 = vsel %vm1776, %v1769, 0.0
        %v1779 = vadd.f32 %v1777, %v1778
        %v1780 = vsel %vm1776, %v1770, 0.0
        %v1781 = vadd.f32 %v1779, %v1780
        %v1782 = vsel %vm1776, %v1771, 0.0
        %v1783 = vadd.f32 %v1781, %v1782
        %v1784 = vsel %vm1776, %v1772, 0.0
        %v1785 = vadd.f32 %v1783, %v1784
        %v1786 = vsel %vm1776, %v1773, 0.0
        %v1787 = vadd.f32 %v1785, %v1786
        %v1788 = vsel %vm1776, %v1774, 0.0
        %v1789 = vadd.f32 %v1787, %v1788
        %v1790 = vsel %vm1776, %v1775, 0.0
        %v1791 = vadd.f32 %v1789, %v1790
        %v1792 = vrot.slane %v1791, 4
        %v1793 = vadd.f32 %v1791, %v1792
        %v1794 = vrot.slane %v1793, 2
        %v1795 = vadd.f32 %v1793, %v1794
        %v1796 = vrot.slane %v1795, 1
        %v1797 = vadd.f32 %v1795, %v1796
        %v1798 = vld [vmem:[%s19] sm:$0xff]
        %v1799 = vld [vmem:[%s19 + $0x8] sm:$0xff]
        %v1800 = vld [vmem:[%s19 + $0x10] sm:$0xff]
        %v1801 = vld [vmem:[%s19 + $0x18] sm:$0xff]
        %v1802 = vld [vmem:[%s19 + $0x20] sm:$0xff]
        %v1803 = vld [vmem:[%s19 + $0x28] sm:$0xff]
        %v1804 = vld [vmem:[%s19 + $0x30] sm:$0xff]
        %v1805 = vld [vmem:[%s19 + $0x38] sm:$0xff]
        %v1807 = vsel %vm1776, %v1696, 0
        %v1810 = vsel %vm1776, %v1697, 0
        %v1813 = vsel %vm1776, %v1698, 0
        %v1816 = vsel %vm1776, %v1699, 0
        %v1819 = vsel %vm1776, %v1700, 0
        %v1822 = vsel %vm1776, %v1701, 0
        %v1825 = vsel %vm1776, %v1702, 0
        %v1828 = vsel %vm1776, %v1703, 0
        %v1831 = vsel %vm1776, %v1704, 0
        %v1834 = vsel %vm1776, %v1705, 0
        %v1837 = vsel %vm1776, %v1706, 0
        %v1840 = vsel %vm1776, %v1707, 0
        %v1843 = vsel %vm1776, %v1708, 0
        %v1846 = vsel %vm1776, %v1709, 0
        %v1849 = vsel %vm1776, %v1710, 0
        %v1852 = vsel %vm1776, %v1711, 0
        %1854 = vmatprep.subr.mxu0 0.0
        %1855 = vmatpush1.msra.mxu0 %v1798
        %1856 = vmatprep.subr.mxu0 0.0
        %1857 = vmatpush1.msra.mxu0 %v1799
        %1858 = vmatprep.subr.mxu0 0.0
        %1859 = vmatpush1.msra.mxu0 %v1800
        %1860 = vmatprep.subr.mxu0 0.0
        %1861 = vmatpush1.msra.mxu0 %v1801
        %1862 = vmatprep.subr.mxu0 0.0
        %1863 = vmatpush1.msra.mxu0 %v1802
        %1864 = vmatprep.subr.mxu0 0.0
        %1865 = vmatpush1.msra.mxu0 %v1803
        %1866 = vmatprep.subr.mxu0 0.0
        %1867 = vmatpush1.msra.mxu0 %v1804
        %1868 = vmatprep.subr.mxu0 0.0
        %1869 = vmatpush1.msra.mxu0 %v1805
        %1870 = vmatprep.subr.mxu0 0.0
        %1871 = vmatpush1.msra.mxu0 0.0
        %1872 = vmatprep.subr.mxu0 0.0
        %1873 = vmatpush1.msra.mxu0 0.0
        %1874 = vmatprep.subr.mxu0 0.0
        %1875 = vmatpush1.msra.mxu0 0.0
        %1876 = vmatprep.subr.mxu0 0.0
        %1877 = vmatpush1.msra.mxu0 0.0
        %1878 = vmatprep.subr.mxu0 0.0
        %1879 = vmatpush1.msra.mxu0 0.0
        %1880 = vmatprep.subr.mxu0 0.0
        %1881 = vmatpush1.msra.mxu0 0.0
        %1882 = vmatprep.subr.mxu0 0.0
        %1883 = vmatpush1.msra.mxu0 0.0
        %1884 = vmatprep.subr.mxu0 0.0
        %1885 = vmatpush1.msra.mxu0 0.0
        %1886 = vmatprep.subr.mxu0 0.0
        %1887 = vmatpush1.msra.mxu0 0.0
        %1888 = vmatprep.subr.mxu0 0.0
        %1889 = vmatpush1.msra.mxu0 0.0
        %1890 = vmatprep.subr.mxu0 0.0
        %1891 = vmatpush1.msra.mxu0 0.0
        %1892 = vmatprep.subr.mxu0 0.0
        %1893 = vmatpush1.msra.mxu0 0.0
        %1894 = vmatprep.subr.mxu0 0.0
        %1895 = vmatpush1.msra.mxu0 0.0
        %1896 = vmatprep.subr.mxu0 0.0
        %1897 = vmatpush1.msra.mxu0 0.0
        %1898 = vmatprep.subr.mxu0 0.0
        %1899 = vmatpush1.msra.mxu0 0.0
        %1900 = vmatprep.subr.mxu0 0.0
        %1901 = vmatpush1.msra.mxu0 0.0
        %1902 = vmatprep.subr.mxu0 0.0
        %1903 = vmatpush1.msra.mxu0 0.0
        %1904 = vmatprep.subr.mxu0 0.0
        %1905 = vmatpush1.msra.mxu0 0.0
        %1906 = vmatprep.subr.mxu0 0.0
        %1907 = vmatpush1.msra.mxu0 0.0
        %1908 = vmatprep.subr.mxu0 0.0
        %1909 = vmatpush1.msra.mxu0 0.0
        %1910 = vmatprep.subr.mxu0 0.0
        %1911 = vmatpush1.msra.mxu0 0.0
        %1912 = vmatprep.subr.mxu0 0.0
        %1913 = vmatpush1.msra.mxu0 0.0
        %1914 = vmatprep.subr.mxu0 0.0
        %1915 = vmatpush1.msra.mxu0 0.0
        %1916 = vmatprep.subr.mxu0 0.0
        %1917 = vmatpush1.msra.mxu0 0.0
        %1918 = vmatprep.mubr.f32.mxu0 0.0
        %1919 = vmatmul.mubr.f32.gmra.mrb[0].mxu0 %v1807
        %v1920 = vpop.f32.mrb[0].mxu0
        %v1921 = vadd.f32 %v1797, %v1920
        %v1922 = vpop.f32.mrb[0].mxu0
        %1923 = vmatprep.mubr.f32.mxu0 0.0
        %1924 = vmatmul.mubr.f32.gmra.mrb[0].mxu0 %v1810
        %v1925 = vpop.f32.mrb[0].mxu0
        %v1926 = vadd.f32 %v1797, %v1925
        %v1927 = vpop.f32.mrb[0].mxu0
        %1928 = vmatprep.mubr.f32.mxu0 0.0
        %1929 = vmatmul.mubr.f32.gmra.mrb[0].mxu0 %v1813
        %v1930 = vpop.f32.mrb[0].mxu0
        %v1931 = vadd.f32 %v1797, %v1930
        %v1932 = vpop.f32.mrb[0].mxu0
        %1933 = vmatprep.mubr.f32.mxu0 0.0
        %1934 = vmatmul.mubr.f32.gmra.mrb[0].mxu0 %v1816
        %v1935 = vpop.f32.mrb[0].mxu0
        %v1936 = vadd.f32 %v1797, %v1935
        %v1937 = vpop.f32.mrb[0].mxu0
        %1938 = vmatprep.mubr.f32.mxu0 0.0
        %1939 = vmatmul.mubr.f32.gmra.mrb[0].mxu0 %v1819
        %v1940 = vpop.f32.mrb[0].mxu0
        %v1941 = vadd.f32 %v1797, %v1940
        %v1942 = vpop.f32.mrb[0].mxu0
        %1943 = vmatprep.mubr.f32.mxu0 0.0
        %1944 = vmatmul.mubr.f32.gmra.mrb[0].mxu0 %v1822
        %v1945 = vpop.f32.mrb[0].mxu0
        %v1946 = vadd.f32 %v1797, %v1945
        %v1947 = vpop.f32.mrb[0].mxu0
        %1948 = vmatprep.mubr.f32.mxu0 0.0
        %1949 = vmatmul.mubr.f32.gmra.mrb[0].mxu0 %v1825
        %v1950 = vpop.f32.mrb[0].mxu0
        %v1951 = vadd.f32 %v1797, %v1950
        %v1952 = vpop.f32.mrb[0].mxu0
        %1953 = vmatprep.mubr.f32.mxu0 0.0
        %1954 = vmatmul.mubr.f32.gmra.mrb[0].mxu0 %v1828
        %v1955 = vpop.f32.mrb[0].mxu0
        %v1956 = vadd.f32 %v1797, %v1955
        %v1957 = vpop.f32.mrb[0].mxu0
        %1958 = vmatprep.mubr.f32.mxu0 0.0
        %1959 = vmatmul.mubr.f32.gmra.mrb[0].mxu0 %v1831
        %v1960 = vpop.f32.mrb[0].mxu0
        %v1961 = vadd.f32 %v1797, %v1960
        %v1962 = vpop.f32.mrb[0].mxu0
        %1963 = vmatprep.mubr.f32.mxu0 0.0
        %1964 = vmatmul.mubr.f32.gmra.mrb[0].mxu0 %v1834
        %v1965 = vpop.f32.mrb[0].mxu0
        %v1966 = vadd.f32 %v1797, %v1965
        %v1967 = vpop.f32.mrb[0].mxu0
        %1968 = vmatprep.mubr.f32.mxu0 0.0
        %1969 = vmatmul.mubr.f32.gmra.mrb[0].mxu0 %v1837
        %v1970 = vpop.f32.mrb[0].mxu0
        %v1971 = vadd.f32 %v1797, %v1970
        %v1972 = vpop.f32.mrb[0].mxu0
        %1973 = vmatprep.mubr.f32.mxu0 0.0
        %1974 = vmatmul.mubr.f32.gmra.mrb[0].mxu0 %v1840
        %v1975 = vpop.f32.mrb[0].mxu0
        %v1976 = vadd.f32 %v1797, %v1975
        %v1977 = vpop.f32.mrb[0].mxu0
        %1978 = vmatprep.mubr.f32.mxu0 0.0
        %1979 = vmatmul.mubr.f32.gmra.mrb[0].mxu0 %v1843
        %v1980 = vpop.f32.mrb[0].mxu0
        %v1981 = vadd.f32 %v1797, %v1980
        %v1982 = vpop.f32.mrb[0].mxu0
        %1983 = vmatprep.mubr.f32.mxu0 0.0
        %1984 = vmatmul.mubr.f32.gmra.mrb[0].mxu0 %v1846
        %v1985 = vpop.f32.mrb[0].mxu0
        %v1986 = vadd.f32 %v1797, %v1985
        %v1987 = vpop.f32.mrb[0].mxu0
        %1988 = vmatprep.mubr.f32.mxu0 0.0
        %1989 = vmatmul.mubr.f32.gmra.mrb[0].mxu0 %v1849
        %v1990 = vpop.f32.mrb[0].mxu0
        %v1991 = vadd.f32 %v1797, %v1990
        %v1992 = vpop.f32.mrb[0].mxu0
        %1993 = vmatprep.mubr.f32.mxu0 0.0
        %1994 = vmatmul.mubr.f32.gmra.mrb[0].mxu0 %v1852
        %v1995 = vpop.f32.mrb[0].mxu0
        %v1996 = vadd.f32 %v1797, %v1995
        %v1997 = vpop.f32.mrb[0].mxu0
        %1998 = vdwg.mxu0
        %v1999 = vld [vmem:[%s23] sm:$0x1]
        %v2001 = vlaneseq
        %v2002 = vshrl.u32 %v2001, 7
        %v2003 = vsub.s32 0, %v2002
        %v2004 = vrot.slane %v1999, %v2003
        %v2006 = vadd.f32 %v1921, %v2004
        %v2007 = vadd.f32 %v1926, %v2004
        %v2008 = vadd.f32 %v1931, %v2004
        %v2009 = vadd.f32 %v1936, %v2004
        %v2010 = vadd.f32 %v1941, %v2004
        %v2011 = vadd.f32 %v1946, %v2004
        %v2012 = vadd.f32 %v1951, %v2004
        %v2013 = vadd.f32 %v1956, %v2004
        %v2014 = vadd.f32 %v1961, %v2004
        %v2015 = vadd.f32 %v1966, %v2004
        %v2016 = vadd.f32 %v1971, %v2004
        %v2017 = vadd.f32 %v1976, %v2004
        %v2018 = vadd.f32 %v1981, %v2004
        %v2019 = vadd.f32 %v1986, %v2004
        %v2020 = vadd.f32 %v1991, %v2004
        %v2021 = vadd.f32 %v1996, %v2004
        %v2022 = vmax.f32 %v2006, 0.0
        %v2023 = vmax.f32 %v2007, 0.0
        %v2024 = vmax.f32 %v2008, 0.0
        %v2025 = vmax.f32 %v2009, 0.0
        %v2026 = vmax.f32 %v2010, 0.0
        %v2027 = vmax.f32 %v2011, 0.0
        %v2028 = vmax.f32 %v2012, 0.0
        %v2029 = vmax.f32 %v2013, 0.0
        %v2030 = vmax.f32 %v2014, 0.0
        %v2031 = vmax.f32 %v2015, 0.0
        %v2032 = vmax.f32 %v2016, 0.0
        %v2033 = vmax.f32 %v2017, 0.0
        %v2034 = vmax.f32 %v2018, 0.0
        %v2035 = vmax.f32 %v2019, 0.0
        %v2036 = vmax.f32 %v2020, 0.0
        %v2037 = vmax.f32 %v2021, 0.0
        %2038 = vxpose.xlu0.b32.start [1/16] %v2022, 128
        %2039 = vxpose.xlu0.b32.cont [2/16] %v2023, 128
        %2040 = vxpose.xlu0.b32.cont [3/16] %v2024, 128
        %2041 = vxpose.xlu0.b32.cont [4/16] %v2025, 128
        %2042 = vxpose.xlu0.b32.cont [5/16] %v2026, 128
        %2043 = vxpose.xlu0.b32.cont [6/16] %v2027, 128
        %2044 = vxpose.xlu0.b32.cont [7/16] %v2028, 128
        %2045 = vxpose.xlu0.b32.cont [8/16] %v2029, 128
        %2046 = vxpose.xlu0.b32.cont [9/16] %v2030, 128
        %2047 = vxpose.xlu0.b32.cont [10/16] %v2031, 128
        %2048 = vxpose.xlu0.b32.cont [11/16] %v2032, 128
        %2049 = vxpose.xlu0.b32.cont [12/16] %v2033, 128
        %2050 = vxpose.xlu0.b32.cont [13/16] %v2034, 128
        %2051 = vxpose.xlu0.b32.cont [14/16] %v2035, 128
        %2052 = vxpose.xlu0.b32.cont [15/16] %v2036, 128
        %2053 = vxpose.xlu0.b32.end [16/16] %v2037, 128
        %v2054 = vpop.trf.xlu0
        %v2055 = vpop.trf.xlu0
        %v2056 = vpop.trf.xlu0
        %v2057 = vpop.trf.xlu0
        %v2058 = vpop.trf.xlu0
        %v2059 = vpop.trf.xlu0
        %v2060 = vpop.trf.xlu0
        %v2061 = vpop.trf.xlu0
        %v2062 = vpop.trf.xlu0
        %v2063 = vpop.trf.xlu0
        %v2064 = vpop.trf.xlu0
        %v2065 = vpop.trf.xlu0
        %v2066 = vpop.trf.xlu0
        %v2067 = vpop.trf.xlu0
        %v2068 = vpop.trf.xlu0
        %v2069 = vpop.trf.xlu0
        %2070 = vmax.xlane.f32.xlu0 %v2054
        %v2071 = vpop.xlane.xlu0 %2070
        %2072 = vmax.xlane.f32.xlu0 %v2055
        %v2073 = vpop.xlane.xlu0 %2072
        %2074 = vmax.xlane.f32.xlu0 %v2056
        %v2075 = vpop.xlane.xlu0 %2074
        %2076 = vmax.xlane.f32.xlu0 %v2057
        %v2077 = vpop.xlane.xlu0 %2076
        %2078 = vmax.xlane.f32.xlu0 %v2058
        %v2079 = vpop.xlane.xlu0 %2078
        %2080 = vmax.xlane.f32.xlu0 %v2059
        %v2081 = vpop.xlane.xlu0 %2080
        %2082 = vmax.xlane.f32.xlu0 %v2060
        %v2083 = vpop.xlane.xlu0 %2082
        %2084 = vmax.xlane.f32.xlu0 %v2061
        %v2085 = vpop.xlane.xlu0 %2084
        %v2086 = vld [vmem:[%s27] sm:$0xff]
        %v2087 = vld [vmem:[%s27 + $0x8] sm:$0xff]
        %v2088 = vld [vmem:[%s27 + $0x10] sm:$0xff]
        %v2089 = vld [vmem:[%s27 + $0x18] sm:$0xff]
        %v2090 = vld [vmem:[%s27 + $0x20] sm:$0xff]
        %v2091 = vld [vmem:[%s27 + $0x28] sm:$0xff]
        %v2092 = vld [vmem:[%s27 + $0x30] sm:$0xff]
        %v2093 = vld [vmem:[%s27 + $0x38] sm:$0xff]
        %v2094 = vmul.f32 %v2071, %v2086
        %v2095 = vmul.f32 %v2073, %v2087
        %v2096 = vmul.f32 %v2075, %v2088
        %v2097 = vmul.f32 %v2077, %v2089
        %v2098 = vmul.f32 %v2079, %v2090
        %v2099 = vmul.f32 %v2081, %v2091
        %v2100 = vmul.f32 %v2083, %v2092
        %v2101 = vmul.f32 %v2085, %v2093
        %v2102 = vsel %vm1776, %v2094, 0.0
        %v2103 = vsel %vm1776, %v2095, 0.0
        %v2104 = vadd.f32 %v2102, %v2103
        %v2105 = vsel %vm1776, %v2096, 0.0
        %v2106 = vadd.f32 %v2104, %v2105
        %v2107 = vsel %vm1776, %v2097, 0.0
        %v2108 = vadd.f32 %v2106, %v2107
        %v2109 = vsel %vm1776, %v2098, 0.0
        %v2110 = vadd.f32 %v2108, %v2109
        %v2111 = vsel %vm1776, %v2099, 0.0
        %v2112 = vadd.f32 %v2110, %v2111
        %v2113 = vsel %vm1776, %v2100, 0.0
        %v2114 = vadd.f32 %v2112, %v2113
        %v2115 = vsel %vm1776, %v2101, 0.0
        %v2116 = vadd.f32 %v2114, %v2115
        %v2117 = vrot.slane %v2116, 4
        %v2118 = vadd.f32 %v2116, %v2117
        %v2119 = vrot.slane %v2118, 2
        %v2120 = vadd.f32 %v2118, %v2119
        %v2121 = vrot.slane %v2120, 1
        %v2122 = vadd.f32 %v2120, %v2121
        %v2123 = vld [vmem:[%s25] sm:$0xff]
        %v2124 = vld [vmem:[%s25 + $0x8] sm:$0xff]
        %v2125 = vld [vmem:[%s25 + $0x10] sm:$0xff]
        %v2126 = vld [vmem:[%s25 + $0x18] sm:$0xff]
        %v2127 = vld [vmem:[%s25 + $0x20] sm:$0xff]
        %v2128 = vld [vmem:[%s25 + $0x28] sm:$0xff]
        %v2129 = vld [vmem:[%s25 + $0x30] sm:$0xff]
        %v2130 = vld [vmem:[%s25 + $0x38] sm:$0xff]
        %v2132 = vsel %vm1776, %v2022, 0
        %v2135 = vsel %vm1776, %v2023, 0
        %v2138 = vsel %vm1776, %v2024, 0
        %v2141 = vsel %vm1776, %v2025, 0
        %v2144 = vsel %vm1776, %v2026, 0
        %v2147 = vsel %vm1776, %v2027, 0
        %v2150 = vsel %vm1776, %v2028, 0
        %v2153 = vsel %vm1776, %v2029, 0
        %v2156 = vsel %vm1776, %v2030, 0
        %v2159 = vsel %vm1776, %v2031, 0
        %v2162 = vsel %vm1776, %v2032, 0
        %v2165 = vsel %vm1776, %v2033, 0
        %v2168 = vsel %vm1776, %v2034, 0
        %v2171 = vsel %vm1776, %v2035, 0
        %v2174 = vsel %vm1776, %v2036, 0
        %v2177 = vsel %vm1776, %v2037, 0
        %2179 = vmatprep.subr.mxu0 0.0
        %2180 = vmatpush1.msra.mxu0 %v2123
        %2181 = vmatprep.subr.mxu0 0.0
        %2182 = vmatpush1.msra.mxu0 %v2124
        %2183 = vmatprep.subr.mxu0 0.0
        %2184 = vmatpush1.msra.mxu0 %v2125
        %2185 = vmatprep.subr.mxu0 0.0
        %2186 = vmatpush1.msra.mxu0 %v2126
        %2187 = vmatprep.subr.mxu0 0.0
        %2188 = vmatpush1.msra.mxu0 %v2127
        %2189 = vmatprep.subr.mxu0 0.0
        %2190 = vmatpush1.msra.mxu0 %v2128
        %2191 = vmatprep.subr.mxu0 0.0
        %2192 = vmatpush1.msra.mxu0 %v2129
        %2193 = vmatprep.subr.mxu0 0.0
        %2194 = vmatpush1.msra.mxu0 %v2130
        %2195 = vmatprep.subr.mxu0 0.0
        %2196 = vmatpush1.msra.mxu0 0.0
        %2197 = vmatprep.subr.mxu0 0.0
        %2198 = vmatpush1.msra.mxu0 0.0
        %2199 = vmatprep.subr.mxu0 0.0
        %2200 = vmatpush1.msra.mxu0 0.0
        %2201 = vmatprep.subr.mxu0 0.0
        %2202 = vmatpush1.msra.mxu0 0.0
        %2203 = vmatprep.subr.mxu0 0.0
        %2204 = vmatpush1.msra.mxu0 0.0
        %2205 = vmatprep.subr.mxu0 0.0
        %2206 = vmatpush1.msra.mxu0 0.0
        %2207 = vmatprep.subr.mxu0 0.0
        %2208 = vmatpush1.msra.mxu0 0.0
        %2209 = vmatprep.subr.mxu0 0.0
        %2210 = vmatpush1.msra.mxu0 0.0
        %2211 = vmatprep.subr.mxu0 0.0
        %2212 = vmatpush1.msra.mxu0 0.0
        %2213 = vmatprep.subr.mxu0 0.0
        %2214 = vmatpush1.msra.mxu0 0.0
        %2215 = vmatprep.subr.mxu0 0.0
        %2216 = vmatpush1.msra.mxu0 0.0
        %2217 = vmatprep.subr.mxu0 0.0
        %2218 = vmatpush1.msra.mxu0 0.0
        %2219 = vmatprep.subr.mxu0 0.0
        %2220 = vmatpush1.msra.mxu0 0.0
        %2221 = vmatprep.subr.mxu0 0.0
        %2222 = vmatpush1.msra.mxu0 0.0
        %2223 = vmatprep.subr.mxu0 0.0
        %2224 = vmatpush1.msra.mxu0 0.0
        %2225 = vmatprep.subr.mxu0 0.0
        %2226 = vmatpush1.msra.mxu0 0.0
        %2227 = vmatprep.subr.mxu0 0.0
        %2228 = vmatpush1.msra.mxu0 0.0
        %2229 = vmatprep.subr.mxu0 0.0
        %2230 = vmatpush1.msra.mxu0 0.0
        %2231 = vmatprep.subr.mxu0 0.0
        %2232 = vmatpush1.msra.mxu0 0.0
        %2233 = vmatprep.subr.mxu0 0.0
        %2234 = vmatpush1.msra.mxu0 0.0
        %2235 = vmatprep.subr.mxu0 0.0
        %2236 = vmatpush1.msra.mxu0 0.0
        %2237 = vmatprep.subr.mxu0 0.0
        %2238 = vmatpush1.msra.mxu0 0.0
        %2239 = vmatprep.subr.mxu0 0.0
        %2240 = vmatpush1.msra.mxu0 0.0
        %2241 = vmatprep.subr.mxu0 0.0
        %2242 = vmatpush1.msra.mxu0 0.0
        %2243 = vmatprep.mubr.f32.mxu0 0.0
        %2244 = vmatmul.mubr.f32.gmra.mrb[0].mxu0 %v2132
        %v2245 = vpop.f32.mrb[0].mxu0
        %v2246 = vadd.f32 %v2122, %v2245
        %v2247 = vpop.f32.mrb[0].mxu0
        %2248 = vmatprep.mubr.f32.mxu0 0.0
        %2249 = vmatmul.mubr.f32.gmra.mrb[0].mxu0 %v2135
        %v2250 = vpop.f32.mrb[0].mxu0
        %v2251 = vadd.f32 %v2122, %v2250
        %v2252 = vpop.f32.mrb[0].mxu0
        %2253 = vmatprep.mubr.f32.mxu0 0.0
        %2254 = vmatmul.mubr.f32.gmra.mrb[0].mxu0 %v2138
        %v2255 = vpop.f32.mrb[0].mxu0
        %v2256 = vadd.f32 %v2122, %v2255
        %v2257 = vpop.f32.mrb[0].mxu0
        %2258 = vmatprep.mubr.f32.mxu0 0.0
        %2259 = vmatmul.mubr.f32.gmra.mrb[0].mxu0 %v2141
        %v2260 = vpop.f32.mrb[0].mxu0
        %v2261 = vadd.f32 %v2122, %v2260
        %v2262 = vpop.f32.mrb[0].mxu0
        %2263 = vmatprep.mubr.f32.mxu0 0.0
        %2264 = vmatmul.mubr.f32.gmra.mrb[0].mxu0 %v2144
        %v2265 = vpop.f32.mrb[0].mxu0
        %v2266 = vadd.f32 %v2122, %v2265
        %v2267 = vpop.f32.mrb[0].mxu0
        %2268 = vmatprep.mubr.f32.mxu0 0.0
        %2269 = vmatmul.mubr.f32.gmra.mrb[0].mxu0 %v2147
        %v2270 = vpop.f32.mrb[0].mxu0
        %v2271 = vadd.f32 %v2122, %v2270
        %v2272 = vpop.f32.mrb[0].mxu0
        %2273 = vmatprep.mubr.f32.mxu0 0.0
        %2274 = vmatmul.mubr.f32.gmra.mrb[0].mxu0 %v2150
        %v2275 = vpop.f32.mrb[0].mxu0
        %v2276 = vadd.f32 %v2122, %v2275
        %v2277 = vpop.f32.mrb[0].mxu0
        %2278 = vmatprep.mubr.f32.mxu0 0.0
        %2279 = vmatmul.mubr.f32.gmra.mrb[0].mxu0 %v2153
        %v2280 = vpop.f32.mrb[0].mxu0
        %v2281 = vadd.f32 %v2122, %v2280
        %v2282 = vpop.f32.mrb[0].mxu0
        %2283 = vmatprep.mubr.f32.mxu0 0.0
        %2284 = vmatmul.mubr.f32.gmra.mrb[0].mxu0 %v2156
        %v2285 = vpop.f32.mrb[0].mxu0
        %v2286 = vadd.f32 %v2122, %v2285
        %v2287 = vpop.f32.mrb[0].mxu0
        %2288 = vmatprep.mubr.f32.mxu0 0.0
        %2289 = vmatmul.mubr.f32.gmra.mrb[0].mxu0 %v2159
        %v2290 = vpop.f32.mrb[0].mxu0
        %v2291 = vadd.f32 %v2122, %v2290
        %v2292 = vpop.f32.mrb[0].mxu0
        %2293 = vmatprep.mubr.f32.mxu0 0.0
        %2294 = vmatmul.mubr.f32.gmra.mrb[0].mxu0 %v2162
        %v2295 = vpop.f32.mrb[0].mxu0
        %v2296 = vadd.f32 %v2122, %v2295
        %v2297 = vpop.f32.mrb[0].mxu0
        %2298 = vmatprep.mubr.f32.mxu0 0.0
        %2299 = vmatmul.mubr.f32.gmra.mrb[0].mxu0 %v2165
        %v2300 = vpop.f32.mrb[0].mxu0
        %v2301 = vadd.f32 %v2122, %v2300
        %v2302 = vpop.f32.mrb[0].mxu0
        %2303 = vmatprep.mubr.f32.mxu0 0.0
        %2304 = vmatmul.mubr.f32.gmra.mrb[0].mxu0 %v2168
        %v2305 = vpop.f32.mrb[0].mxu0
        %v2306 = vadd.f32 %v2122, %v2305
        %v2307 = vpop.f32.mrb[0].mxu0
        %2308 = vmatprep.mubr.f32.mxu0 0.0
        %2309 = vmatmul.mubr.f32.gmra.mrb[0].mxu0 %v2171
        %v2310 = vpop.f32.mrb[0].mxu0
        %v2311 = vadd.f32 %v2122, %v2310
        %v2312 = vpop.f32.mrb[0].mxu0
        %2313 = vmatprep.mubr.f32.mxu0 0.0
        %2314 = vmatmul.mubr.f32.gmra.mrb[0].mxu0 %v2174
        %v2315 = vpop.f32.mrb[0].mxu0
        %v2316 = vadd.f32 %v2122, %v2315
        %v2317 = vpop.f32.mrb[0].mxu0
        %2318 = vmatprep.mubr.f32.mxu0 0.0
        %2319 = vmatmul.mubr.f32.gmra.mrb[0].mxu0 %v2177
        %v2320 = vpop.f32.mrb[0].mxu0
        %v2321 = vadd.f32 %v2122, %v2320
        %v2322 = vpop.f32.mrb[0].mxu0
        %2323 = vdwg.mxu0
        %v2324 = vld [vmem:[%s29] sm:$0x1]
        %v2326 = vlaneseq
        %v2327 = vshrl.u32 %v2326, 7
        %v2328 = vsub.s32 0, %v2327
        %v2329 = vrot.slane %v2324, %v2328
        %v2331 = vadd.f32 %v2246, %v2329
        %v2332 = vadd.f32 %v2251, %v2329
        %v2333 = vadd.f32 %v2256, %v2329
        %v2334 = vadd.f32 %v2261, %v2329
        %v2335 = vadd.f32 %v2266, %v2329
        %v2336 = vadd.f32 %v2271, %v2329
        %v2337 = vadd.f32 %v2276, %v2329
        %v2338 = vadd.f32 %v2281, %v2329
        %v2339 = vadd.f32 %v2286, %v2329
        %v2340 = vadd.f32 %v2291, %v2329
        %v2341 = vadd.f32 %v2296, %v2329
        %v2342 = vadd.f32 %v2301, %v2329
        %v2343 = vadd.f32 %v2306, %v2329
        %v2344 = vadd.f32 %v2311, %v2329
        %v2345 = vadd.f32 %v2316, %v2329
        %v2346 = vadd.f32 %v2321, %v2329
        %v2347 = vmax.f32 %v2331, 0.0
        %v2348 = vmax.f32 %v2332, 0.0
        %v2349 = vmax.f32 %v2333, 0.0
        %v2350 = vmax.f32 %v2334, 0.0
        %v2351 = vmax.f32 %v2335, 0.0
        %v2352 = vmax.f32 %v2336, 0.0
        %v2353 = vmax.f32 %v2337, 0.0
        %v2354 = vmax.f32 %v2338, 0.0
        %v2355 = vmax.f32 %v2339, 0.0
        %v2356 = vmax.f32 %v2340, 0.0
        %v2357 = vmax.f32 %v2341, 0.0
        %v2358 = vmax.f32 %v2342, 0.0
        %v2359 = vmax.f32 %v2343, 0.0
        %v2360 = vmax.f32 %v2344, 0.0
        %v2361 = vmax.f32 %v2345, 0.0
        %v2362 = vmax.f32 %v2346, 0.0
        %2363 = vxpose.xlu0.b32.start [1/16] %v2347, 128
        %2364 = vxpose.xlu0.b32.cont [2/16] %v2348, 128
        %2365 = vxpose.xlu0.b32.cont [3/16] %v2349, 128
        %2366 = vxpose.xlu0.b32.cont [4/16] %v2350, 128
        %2367 = vxpose.xlu0.b32.cont [5/16] %v2351, 128
        %2368 = vxpose.xlu0.b32.cont [6/16] %v2352, 128
        %2369 = vxpose.xlu0.b32.cont [7/16] %v2353, 128
        %2370 = vxpose.xlu0.b32.cont [8/16] %v2354, 128
        %2371 = vxpose.xlu0.b32.cont [9/16] %v2355, 128
        %2372 = vxpose.xlu0.b32.cont [10/16] %v2356, 128
        %2373 = vxpose.xlu0.b32.cont [11/16] %v2357, 128
        %2374 = vxpose.xlu0.b32.cont [12/16] %v2358, 128
        %2375 = vxpose.xlu0.b32.cont [13/16] %v2359, 128
        %2376 = vxpose.xlu0.b32.cont [14/16] %v2360, 128
        %2377 = vxpose.xlu0.b32.cont [15/16] %v2361, 128
        %2378 = vxpose.xlu0.b32.end [16/16] %v2362, 128
        %v2379 = vpop.trf.xlu0
        %v2380 = vpop.trf.xlu0
        %v2381 = vpop.trf.xlu0
        %v2382 = vpop.trf.xlu0
        %v2383 = vpop.trf.xlu0
        %v2384 = vpop.trf.xlu0
        %v2385 = vpop.trf.xlu0
        %v2386 = vpop.trf.xlu0
        %v2387 = vpop.trf.xlu0
        %v2388 = vpop.trf.xlu0
        %v2389 = vpop.trf.xlu0
        %v2390 = vpop.trf.xlu0
        %v2391 = vpop.trf.xlu0
        %v2392 = vpop.trf.xlu0
        %v2393 = vpop.trf.xlu0
        %v2394 = vpop.trf.xlu0
        %2395 = vmax.xlane.f32.xlu0 %v2379
        %v2396 = vpop.xlane.xlu0 %2395
        %2397 = vmax.xlane.f32.xlu0 %v2380
        %v2398 = vpop.xlane.xlu0 %2397
        %2399 = vmax.xlane.f32.xlu0 %v2381
        %v2400 = vpop.xlane.xlu0 %2399
        %2401 = vmax.xlane.f32.xlu0 %v2382
        %v2402 = vpop.xlane.xlu0 %2401
        %2403 = vmax.xlane.f32.xlu0 %v2383
        %v2404 = vpop.xlane.xlu0 %2403
        %2405 = vmax.xlane.f32.xlu0 %v2384
        %v2406 = vpop.xlane.xlu0 %2405
        %2407 = vmax.xlane.f32.xlu0 %v2385
        %v2408 = vpop.xlane.xlu0 %2407
        %2409 = vmax.xlane.f32.xlu0 %v2386
        %v2410 = vpop.xlane.xlu0 %2409
        %v2411 = vld [vmem:[%s33] sm:$0xff]
        %v2412 = vld [vmem:[%s33 + $0x8] sm:$0xff]
        %v2413 = vld [vmem:[%s33 + $0x10] sm:$0xff]
        %v2414 = vld [vmem:[%s33 + $0x18] sm:$0xff]
        %v2415 = vld [vmem:[%s33 + $0x20] sm:$0xff]
        %v2416 = vld [vmem:[%s33 + $0x28] sm:$0xff]
        %v2417 = vld [vmem:[%s33 + $0x30] sm:$0xff]
        %v2418 = vld [vmem:[%s33 + $0x38] sm:$0xff]
        %v2419 = vmul.f32 %v2396, %v2411
        %v2420 = vmul.f32 %v2398, %v2412
        %v2421 = vmul.f32 %v2400, %v2413
        %v2422 = vmul.f32 %v2402, %v2414
        %v2423 = vmul.f32 %v2404, %v2415
        %v2424 = vmul.f32 %v2406, %v2416
        %v2425 = vmul.f32 %v2408, %v2417
        %v2426 = vmul.f32 %v2410, %v2418
        %v2427 = vsel %vm1776, %v2419, 0.0
        %v2428 = vsel %vm1776, %v2420, 0.0
        %v2429 = vadd.f32 %v2427, %v2428
        %v2430 = vsel %vm1776, %v2421, 0.0
        %v2431 = vadd.f32 %v2429, %v2430
        %v2432 = vsel %vm1776, %v2422, 0.0
        %v2433 = vadd.f32 %v2431, %v2432
        %v2434 = vsel %vm1776, %v2423, 0.0
        %v2435 = vadd.f32 %v2433, %v2434
        %v2436 = vsel %vm1776, %v2424, 0.0
        %v2437 = vadd.f32 %v2435, %v2436
        %v2438 = vsel %vm1776, %v2425, 0.0
        %v2439 = vadd.f32 %v2437, %v2438
        %v2440 = vsel %vm1776, %v2426, 0.0
        %v2441 = vadd.f32 %v2439, %v2440
        %v2442 = vrot.slane %v2441, 4
        %v2443 = vadd.f32 %v2441, %v2442
        %v2444 = vrot.slane %v2443, 2
        %v2445 = vadd.f32 %v2443, %v2444
        %v2446 = vrot.slane %v2445, 1
        %v2447 = vadd.f32 %v2445, %v2446
        %v2448 = vld [vmem:[%s31] sm:$0xff]
        %v2449 = vld [vmem:[%s31 + $0x8] sm:$0xff]
        %v2450 = vld [vmem:[%s31 + $0x10] sm:$0xff]
        %v2451 = vld [vmem:[%s31 + $0x18] sm:$0xff]
        %v2452 = vld [vmem:[%s31 + $0x20] sm:$0xff]
        %v2453 = vld [vmem:[%s31 + $0x28] sm:$0xff]
        %v2454 = vld [vmem:[%s31 + $0x30] sm:$0xff]
        %v2455 = vld [vmem:[%s31 + $0x38] sm:$0xff]
        %v2457 = vsel %vm1776, %v2347, 0
        %v2460 = vsel %vm1776, %v2348, 0
        %v2463 = vsel %vm1776, %v2349, 0
        %v2466 = vsel %vm1776, %v2350, 0
        %v2469 = vsel %vm1776, %v2351, 0
        %v2472 = vsel %vm1776, %v2352, 0
        %v2475 = vsel %vm1776, %v2353, 0
        %v2478 = vsel %vm1776, %v2354, 0
        %v2481 = vsel %vm1776, %v2355, 0
        %v2484 = vsel %vm1776, %v2356, 0
        %v2487 = vsel %vm1776, %v2357, 0
        %v2490 = vsel %vm1776, %v2358, 0
        %v2493 = vsel %vm1776, %v2359, 0
        %v2496 = vsel %vm1776, %v2360, 0
        %v2499 = vsel %vm1776, %v2361, 0
        %v2502 = vsel %vm1776, %v2362, 0
        %2504 = vmatprep.subr.mxu0 0.0
        %2505 = vmatpush1.msra.mxu0 %v2448
        %2506 = vmatprep.subr.mxu0 0.0
        %2507 = vmatpush1.msra.mxu0 %v2449
        %2508 = vmatprep.subr.mxu0 0.0
        %2509 = vmatpush1.msra.mxu0 %v2450
        %2510 = vmatprep.subr.mxu0 0.0
        %2511 = vmatpush1.msra.mxu0 %v2451
        %2512 = vmatprep.subr.mxu0 0.0
        %2513 = vmatpush1.msra.mxu0 %v2452
        %2514 = vmatprep.subr.mxu0 0.0
        %2515 = vmatpush1.msra.mxu0 %v2453
        %2516 = vmatprep.subr.mxu0 0.0
        %2517 = vmatpush1.msra.mxu0 %v2454
        %2518 = vmatprep.subr.mxu0 0.0
        %2519 = vmatpush1.msra.mxu0 %v2455
        %2520 = vmatprep.subr.mxu0 0.0
        %2521 = vmatpush1.msra.mxu0 0.0
        %2522 = vmatprep.subr.mxu0 0.0
        %2523 = vmatpush1.msra.mxu0 0.0
        %2524 = vmatprep.subr.mxu0 0.0
        %2525 = vmatpush1.msra.mxu0 0.0
        %2526 = vmatprep.subr.mxu0 0.0
        %2527 = vmatpush1.msra.mxu0 0.0
        %2528 = vmatprep.subr.mxu0 0.0
        %2529 = vmatpush1.msra.mxu0 0.0
        %2530 = vmatprep.subr.mxu0 0.0
        %2531 = vmatpush1.msra.mxu0 0.0
        %2532 = vmatprep.subr.mxu0 0.0
        %2533 = vmatpush1.msra.mxu0 0.0
        %2534 = vmatprep.subr.mxu0 0.0
        %2535 = vmatpush1.msra.mxu0 0.0
        %2536 = vmatprep.subr.mxu0 0.0
        %2537 = vmatpush1.msra.mxu0 0.0
        %2538 = vmatprep.subr.mxu0 0.0
        %2539 = vmatpush1.msra.mxu0 0.0
        %2540 = vmatprep.subr.mxu0 0.0
        %2541 = vmatpush1.msra.mxu0 0.0
        %2542 = vmatprep.subr.mxu0 0.0
        %2543 = vmatpush1.msra.mxu0 0.0
        %2544 = vmatprep.subr.mxu0 0.0
        %2545 = vmatpush1.msra.mxu0 0.0
        %2546 = vmatprep.subr.mxu0 0.0
        %2547 = vmatpush1.msra.mxu0 0.0
        %2548 = vmatprep.subr.mxu0 0.0
        %2549 = vmatpush1.msra.mxu0 0.0
        %2550 = vmatprep.subr.mxu0 0.0
        %2551 = vmatpush1.msra.mxu0 0.0
        %2552 = vmatprep.subr.mxu0 0.0
        %2553 = vmatpush1.msra.mxu0 0.0
        %2554 = vmatprep.subr.mxu0 0.0
        %2555 = vmatpush1.msra.mxu0 0.0
        %2556 = vmatprep.subr.mxu0 0.0
        %2557 = vmatpush1.msra.mxu0 0.0
        %2558 = vmatprep.subr.mxu0 0.0
        %2559 = vmatpush1.msra.mxu0 0.0
        %2560 = vmatprep.subr.mxu0 0.0
        %2561 = vmatpush1.msra.mxu0 0.0
        %2562 = vmatprep.subr.mxu0 0.0
        %2563 = vmatpush1.msra.mxu0 0.0
        %2564 = vmatprep.subr.mxu0 0.0
        %2565 = vmatpush1.msra.mxu0 0.0
        %2566 = vmatprep.subr.mxu0 0.0
        %2567 = vmatpush1.msra.mxu0 0.0
        %2568 = vmatprep.mubr.f32.mxu0 0.0
        %2569 = vmatmul.mubr.f32.gmra.mrb[0].mxu0 %v2457
        %v2570 = vpop.f32.mrb[0].mxu0
        %v2571 = vadd.f32 %v2447, %v2570
        %v2572 = vpop.f32.mrb[0].mxu0
        %2573 = vmatprep.mubr.f32.mxu0 0.0
        %2574 = vmatmul.mubr.f32.gmra.mrb[0].mxu0 %v2460
        %v2575 = vpop.f32.mrb[0].mxu0
        %v2576 = vadd.f32 %v2447, %v2575
        %v2577 = vpop.f32.mrb[0].mxu0
        %2578 = vmatprep.mubr.f32.mxu0 0.0
        %2579 = vmatmul.mubr.f32.gmra.mrb[0].mxu0 %v2463
        %v2580 = vpop.f32.mrb[0].mxu0
        %v2581 = vadd.f32 %v2447, %v2580
        %v2582 = vpop.f32.mrb[0].mxu0
        %2583 = vmatprep.mubr.f32.mxu0 0.0
        %2584 = vmatmul.mubr.f32.gmra.mrb[0].mxu0 %v2466
        %v2585 = vpop.f32.mrb[0].mxu0
        %v2586 = vadd.f32 %v2447, %v2585
        %v2587 = vpop.f32.mrb[0].mxu0
        %2588 = vmatprep.mubr.f32.mxu0 0.0
        %2589 = vmatmul.mubr.f32.gmra.mrb[0].mxu0 %v2469
        %v2590 = vpop.f32.mrb[0].mxu0
        %v2591 = vadd.f32 %v2447, %v2590
        %v2592 = vpop.f32.mrb[0].mxu0
        %2593 = vmatprep.mubr.f32.mxu0 0.0
        %2594 = vmatmul.mubr.f32.gmra.mrb[0].mxu0 %v2472
        %v2595 = vpop.f32.mrb[0].mxu0
        %v2596 = vadd.f32 %v2447, %v2595
        %v2597 = vpop.f32.mrb[0].mxu0
        %2598 = vmatprep.mubr.f32.mxu0 0.0
        %2599 = vmatmul.mubr.f32.gmra.mrb[0].mxu0 %v2475
        %v2600 = vpop.f32.mrb[0].mxu0
        %v2601 = vadd.f32 %v2447, %v2600
        %v2602 = vpop.f32.mrb[0].mxu0
        %2603 = vmatprep.mubr.f32.mxu0 0.0
        %2604 = vmatmul.mubr.f32.gmra.mrb[0].mxu0 %v2478
        %v2605 = vpop.f32.mrb[0].mxu0
        %v2606 = vadd.f32 %v2447, %v2605
        %v2607 = vpop.f32.mrb[0].mxu0
        %2608 = vmatprep.mubr.f32.mxu0 0.0
        %2609 = vmatmul.mubr.f32.gmra.mrb[0].mxu0 %v2481
        %v2610 = vpop.f32.mrb[0].mxu0
        %v2611 = vadd.f32 %v2447, %v2610
        %v2612 = vpop.f32.mrb[0].mxu0
        %2613 = vmatprep.mubr.f32.mxu0 0.0
        %2614 = vmatmul.mubr.f32.gmra.mrb[0].mxu0 %v2484
        %v2615 = vpop.f32.mrb[0].mxu0
        %v2616 = vadd.f32 %v2447, %v2615
        %v2617 = vpop.f32.mrb[0].mxu0
        %2618 = vmatprep.mubr.f32.mxu0 0.0
        %2619 = vmatmul.mubr.f32.gmra.mrb[0].mxu0 %v2487
        %v2620 = vpop.f32.mrb[0].mxu0
        %v2621 = vadd.f32 %v2447, %v2620
        %v2622 = vpop.f32.mrb[0].mxu0
        %2623 = vmatprep.mubr.f32.mxu0 0.0
        %2624 = vmatmul.mubr.f32.gmra.mrb[0].mxu0 %v2490
        %v2625 = vpop.f32.mrb[0].mxu0
        %v2626 = vadd.f32 %v2447, %v2625
        %v2627 = vpop.f32.mrb[0].mxu0
        %2628 = vmatprep.mubr.f32.mxu0 0.0
        %2629 = vmatmul.mubr.f32.gmra.mrb[0].mxu0 %v2493
        %v2630 = vpop.f32.mrb[0].mxu0
        %v2631 = vadd.f32 %v2447, %v2630
        %v2632 = vpop.f32.mrb[0].mxu0
        %2633 = vmatprep.mubr.f32.mxu0 0.0
        %2634 = vmatmul.mubr.f32.gmra.mrb[0].mxu0 %v2496
        %v2635 = vpop.f32.mrb[0].mxu0
        %v2636 = vadd.f32 %v2447, %v2635
        %v2637 = vpop.f32.mrb[0].mxu0
        %2638 = vmatprep.mubr.f32.mxu0 0.0
        %2639 = vmatmul.mubr.f32.gmra.mrb[0].mxu0 %v2499
        %v2640 = vpop.f32.mrb[0].mxu0
        %v2641 = vadd.f32 %v2447, %v2640
        %v2642 = vpop.f32.mrb[0].mxu0
        %2643 = vmatprep.mubr.f32.mxu0 0.0
        %2644 = vmatmul.mubr.f32.gmra.mrb[0].mxu0 %v2502
        %v2645 = vpop.f32.mrb[0].mxu0
        %v2646 = vadd.f32 %v2447, %v2645
        %v2647 = vpop.f32.mrb[0].mxu0
        %2648 = vdwg.mxu0
        %v2649 = vld [vmem:[%s35] sm:$0x1]
        %v2651 = vlaneseq
        %v2652 = vshrl.u32 %v2651, 7
        %v2653 = vsub.s32 0, %v2652
        %v2654 = vrot.slane %v2649, %v2653
        %v2656 = vadd.f32 %v2571, %v2654
        %v2657 = vadd.f32 %v2576, %v2654
        %v2658 = vadd.f32 %v2581, %v2654
        %v2659 = vadd.f32 %v2586, %v2654
        %v2660 = vadd.f32 %v2591, %v2654
        %v2661 = vadd.f32 %v2596, %v2654
        %v2662 = vadd.f32 %v2601, %v2654
        %v2663 = vadd.f32 %v2606, %v2654
        %v2664 = vadd.f32 %v2611, %v2654
        %v2665 = vadd.f32 %v2616, %v2654
        %v2666 = vadd.f32 %v2621, %v2654
        %v2667 = vadd.f32 %v2626, %v2654
        %v2668 = vadd.f32 %v2631, %v2654
        %v2669 = vadd.f32 %v2636, %v2654
        %v2670 = vadd.f32 %v2641, %v2654
        %v2671 = vadd.f32 %v2646, %v2654
        %v2672 = vmax.f32 %v2656, 0.0
        %v2673 = vmax.f32 %v2657, 0.0
        %v2674 = vmax.f32 %v2658, 0.0
        %v2675 = vmax.f32 %v2659, 0.0
        %v2676 = vmax.f32 %v2660, 0.0
        %v2677 = vmax.f32 %v2661, 0.0
        %v2678 = vmax.f32 %v2662, 0.0
        %v2679 = vmax.f32 %v2663, 0.0
        %v2680 = vmax.f32 %v2664, 0.0
        %v2681 = vmax.f32 %v2665, 0.0
        %v2682 = vmax.f32 %v2666, 0.0
        %v2683 = vmax.f32 %v2667, 0.0
        %v2684 = vmax.f32 %v2668, 0.0
        %v2685 = vmax.f32 %v2669, 0.0
        %v2686 = vmax.f32 %v2670, 0.0
        %v2687 = vmax.f32 %v2671, 0.0
        %2688 = vxpose.xlu0.b32.start [1/16] %v2672, 128
        %2689 = vxpose.xlu0.b32.cont [2/16] %v2673, 128
        %2690 = vxpose.xlu0.b32.cont [3/16] %v2674, 128
        %2691 = vxpose.xlu0.b32.cont [4/16] %v2675, 128
        %2692 = vxpose.xlu0.b32.cont [5/16] %v2676, 128
        %2693 = vxpose.xlu0.b32.cont [6/16] %v2677, 128
        %2694 = vxpose.xlu0.b32.cont [7/16] %v2678, 128
        %2695 = vxpose.xlu0.b32.cont [8/16] %v2679, 128
        %2696 = vxpose.xlu0.b32.cont [9/16] %v2680, 128
        %2697 = vxpose.xlu0.b32.cont [10/16] %v2681, 128
        %2698 = vxpose.xlu0.b32.cont [11/16] %v2682, 128
        %2699 = vxpose.xlu0.b32.cont [12/16] %v2683, 128
        %2700 = vxpose.xlu0.b32.cont [13/16] %v2684, 128
        %2701 = vxpose.xlu0.b32.cont [14/16] %v2685, 128
        %2702 = vxpose.xlu0.b32.cont [15/16] %v2686, 128
        %2703 = vxpose.xlu0.b32.end [16/16] %v2687, 128
        %v2704 = vpop.trf.xlu0
        %v2705 = vpop.trf.xlu0
        %v2706 = vpop.trf.xlu0
        %v2707 = vpop.trf.xlu0
        %v2708 = vpop.trf.xlu0
        %v2709 = vpop.trf.xlu0
        %v2710 = vpop.trf.xlu0
        %v2711 = vpop.trf.xlu0
        %v2712 = vpop.trf.xlu0
        %v2713 = vpop.trf.xlu0
        %v2714 = vpop.trf.xlu0
        %v2715 = vpop.trf.xlu0
        %v2716 = vpop.trf.xlu0
        %v2717 = vpop.trf.xlu0
        %v2718 = vpop.trf.xlu0
        %v2719 = vpop.trf.xlu0
        %2720 = vmax.xlane.f32.xlu0 %v2704
        %v2721 = vpop.xlane.xlu0 %2720
        %2722 = vmax.xlane.f32.xlu0 %v2705
        %v2723 = vpop.xlane.xlu0 %2722
        %2724 = vmax.xlane.f32.xlu0 %v2706
        %v2725 = vpop.xlane.xlu0 %2724
        %2726 = vmax.xlane.f32.xlu0 %v2707
        %v2727 = vpop.xlane.xlu0 %2726
        %2728 = vmax.xlane.f32.xlu0 %v2708
        %v2729 = vpop.xlane.xlu0 %2728
        %2730 = vmax.xlane.f32.xlu0 %v2709
        %v2731 = vpop.xlane.xlu0 %2730
        %2732 = vmax.xlane.f32.xlu0 %v2710
        %v2733 = vpop.xlane.xlu0 %2732
        %2734 = vmax.xlane.f32.xlu0 %v2711
        %v2735 = vpop.xlane.xlu0 %2734
        %v2736 = vld [vmem:[%s37] sm:$0xff]
        %v2737 = vld [vmem:[%s37 + $0x8] sm:$0xff]
        %v2738 = vld [vmem:[%s37 + $0x10] sm:$0xff]
        %v2739 = vld [vmem:[%s37 + $0x18] sm:$0xff]
        %v2740 = vld [vmem:[%s37 + $0x20] sm:$0xff]
        %v2741 = vld [vmem:[%s37 + $0x28] sm:$0xff]
        %v2742 = vld [vmem:[%s37 + $0x30] sm:$0xff]
        %v2743 = vld [vmem:[%s37 + $0x38] sm:$0xff]
        %v2744 = vmul.f32 %v2721, %v2736
        %v2745 = vmul.f32 %v2723, %v2737
        %v2746 = vmul.f32 %v2725, %v2738
        %v2747 = vmul.f32 %v2727, %v2739
        %v2748 = vmul.f32 %v2729, %v2740
        %v2749 = vmul.f32 %v2731, %v2741
        %v2750 = vmul.f32 %v2733, %v2742
        %v2751 = vmul.f32 %v2735, %v2743
        %vm2752 = vcmask 261120
        %v2753 = vsel %vm2752, %v2744, 0.0
        %v2754 = vsel %vm2752, %v2745, 0.0
        %v2755 = vadd.f32 %v2753, %v2754
        %v2756 = vsel %vm2752, %v2746, 0.0
        %v2757 = vadd.f32 %v2755, %v2756
        %v2758 = vsel %vm2752, %v2747, 0.0
        %v2759 = vadd.f32 %v2757, %v2758
        %v2760 = vsel %vm2752, %v2748, 0.0
        %v2761 = vadd.f32 %v2759, %v2760
        %v2762 = vsel %vm2752, %v2749, 0.0
        %v2763 = vadd.f32 %v2761, %v2762
        %v2764 = vsel %vm2752, %v2750, 0.0
        %v2765 = vadd.f32 %v2763, %v2764
        %v2766 = vsel %vm2752, %v2751, 0.0
        %v2767 = vadd.f32 %v2765, %v2766
        %v2768 = vrot.slane %v2767, 4
        %v2769 = vadd.f32 %v2767, %v2768
        %v2770 = vrot.slane %v2769, 2
        %v2771 = vadd.f32 %v2769, %v2770
        %v2772 = vrot.slane %v2771, 1
        %v2773 = vadd.f32 %v2771, %v2772
        %v2774 = vld [vmem:[%s39] sm:$0x1]
        %v2775 = vadd.f32 %v2773, %v2774
        %v2776 = vld [vmem:[%s41] sm:$0xff]
        %v2777 = vld [vmem:[%s41 + $0x8] sm:$0xff]
        %v2778 = vld [vmem:[%s41 + $0x10] sm:$0xff]
        %v2779 = vld [vmem:[%s41 + $0x18] sm:$0xff]
        %v2780 = vld [vmem:[%s41 + $0x20] sm:$0xff]
        %v2781 = vld [vmem:[%s41 + $0x28] sm:$0xff]
        %v2782 = vld [vmem:[%s41 + $0x30] sm:$0xff]
        %v2783 = vld [vmem:[%s41 + $0x38] sm:$0xff]
        %v2784 = vmul.f32 %v2721, %v2776
        %v2785 = vmul.f32 %v2723, %v2777
        %v2786 = vmul.f32 %v2725, %v2778
        %v2787 = vmul.f32 %v2727, %v2779
        %v2788 = vmul.f32 %v2729, %v2780
        %v2789 = vmul.f32 %v2731, %v2781
        %v2790 = vmul.f32 %v2733, %v2782
        %v2791 = vmul.f32 %v2735, %v2783
        %v2792 = vsel %vm2752, %v2784, 0.0
        %v2793 = vsel %vm2752, %v2785, 0.0
        %v2794 = vadd.f32 %v2792, %v2793
        %v2795 = vsel %vm2752, %v2786, 0.0
        %v2796 = vadd.f32 %v2794, %v2795
        %v2797 = vsel %vm2752, %v2787, 0.0
        %v2798 = vadd.f32 %v2796, %v2797
        %v2799 = vsel %vm2752, %v2788, 0.0
        %v2800 = vadd.f32 %v2798, %v2799
        %v2801 = vsel %vm2752, %v2789, 0.0
        %v2802 = vadd.f32 %v2800, %v2801
        %v2803 = vsel %vm2752, %v2790, 0.0
        %v2804 = vadd.f32 %v2802, %v2803
        %v2805 = vsel %vm2752, %v2791, 0.0
        %v2806 = vadd.f32 %v2804, %v2805
        %v2807 = vrot.slane %v2806, 4
        %v2808 = vadd.f32 %v2806, %v2807
        %v2809 = vrot.slane %v2808, 2
        %v2810 = vadd.f32 %v2808, %v2809
        %v2811 = vrot.slane %v2810, 1
        %v2812 = vadd.f32 %v2810, %v2811
        %v2813 = vld [vmem:[%s43] sm:$0x1]
        %v2814 = vadd.f32 %v2812, %v2813
        %v2815 = vmul.f32 %v2814, 1.442695
        %v2816 = vpow.pop %v2815
        %v2817 = vld [vmem:[%s1057] sm:$0x1]
        %v2818 = vmul.f32 %v2816, %v2817
        %v2819 = vadd.f32 %v2775, %v2818
        %vm2820 = vcmask 253952
        %2821 = vst.msk [vmem:[%s1029] sm:$0x1] %vm2820, %v2775
        %2822 = vst.msk [vmem:[%s1035] sm:$0x1] %vm2820, %v2819
        %v2823 = vand.u32 2147483647, %v2775
        %v2824 = vsel %vm2820, %v2823, 0.0
        %2825 = vadd.xlane.f32.xlu0 %v2824
        %v2826 = vpop.xlane.xlu0 %2825
        %v2827 = vrcp.pop 32.0
        %v2828 = vmul.f32 %v2826, %v2827
        %v2829 = vadd.f32 %v2814, 1.0
        %v2830 = vand.u32 2147483647, %v2829
        %v2831 = vsel %vm2820, %v2830, 0.0
        %2832 = vadd.xlane.f32.xlu0 %v2831
        %v2833 = vpop.xlane.xlu0 %2832
        %v2834 = vmul.f32 %v2833, %v2827
        %v2835 = vadd.f32 %v2828, %v2834
        %vm2836 = vcmask 0
        %2837 = vst.msk [vmem:[%s1060] sm:$0x1] %vm2836, %v2835
        %v2838 = vld [vmem:[%s1054] sm:$0x7]
        %v2839 = vld [vmem:[%s47] sm:$0xff]
        %v2840 = vld [vmem:[%s47 + $0x8] sm:$0xff]
        %v2841 = vld [vmem:[%s47 + $0x10] sm:$0xff]
        %v2842 = vld [vmem:[%s47 + $0x18] sm:$0xff]
        %v2843 = vld [vmem:[%s47 + $0x20] sm:$0xff]
        %v2844 = vld [vmem:[%s47 + $0x28] sm:$0xff]
        %v2845 = vld [vmem:[%s47 + $0x30] sm:$0xff]
        %v2846 = vld [vmem:[%s47 + $0x38] sm:$0xff]
        %v2847 = vlaneseq
        %v2848 = vshrl.u32 %v2847, 7
        %v2849 = vsub.s32 0, %v2848
        %v2850 = vrot.slane %v2819, %v2849
        %v2851 = vmul.f32 %v2839, %v2850
        %v2852 = vmul.f32 %v2840, %v2850
        %v2853 = vmul.f32 %v2841, %v2850
        %v2854 = vmul.f32 %v2842, %v2850
        %v2855 = vmul.f32 %v2843, %v2850
        %v2856 = vmul.f32 %v2844, %v2850
        %v2857 = vmul.f32 %v2845, %v2850
        %v2858 = vmul.f32 %v2846, %v2850
        %v2859 = vsel %vm2752, %v2851, 0.0
        %2860 = vadd.xlane.f32.xlu0 %v2859
        %v2861 = vpop.xlane.xlu0 %2860
        %v2862 = vsel %vm2752, %v2852, 0.0
        %2863 = vadd.xlane.f32.xlu0 %v2862
        %v2864 = vpop.xlane.xlu0 %2863
        %v2865 = vsel %vm2752, %v2853, 0.0
        %2866 = vadd.xlane.f32.xlu0 %v2865
        %v2867 = vpop.xlane.xlu0 %2866
        %v2868 = vsel %vm2752, %v2854, 0.0
        %2869 = vadd.xlane.f32.xlu0 %v2868
        %v2870 = vpop.xlane.xlu0 %2869
        %v2871 = vsel %vm2752, %v2855, 0.0
        %2872 = vadd.xlane.f32.xlu0 %v2871
        %v2873 = vpop.xlane.xlu0 %2872
        %v2874 = vsel %vm2752, %v2856, 0.0
        %2875 = vadd.xlane.f32.xlu0 %v2874
        %v2876 = vpop.xlane.xlu0 %2875
        %v2877 = vsel %vm2752, %v2857, 0.0
        %2878 = vadd.xlane.f32.xlu0 %v2877
        %v2879 = vpop.xlane.xlu0 %2878
        %v2880 = vsel %vm2752, %v2858, 0.0
        %2881 = vadd.xlane.f32.xlu0 %v2880
        %v2882 = vpop.xlane.xlu0 %2881
        %v2883 = vld [vmem:[%s45] sm:$0xff]
        %v2884 = vld [vmem:[%s45 + $0x8] sm:$0xff]
        %v2885 = vld [vmem:[%s45 + $0x10] sm:$0xff]
        %v2886 = vld [vmem:[%s45 + $0x18] sm:$0xff]
        %v2887 = vld [vmem:[%s45 + $0x20] sm:$0xff]
        %v2888 = vld [vmem:[%s45 + $0x28] sm:$0xff]
        %v2889 = vld [vmem:[%s45 + $0x30] sm:$0xff]
        %v2890 = vld [vmem:[%s45 + $0x38] sm:$0xff]
        %v2892 = vsel %vm1095, %v2883, 0
        %v2895 = vsel %vm1095, %v2884, 0
        %v2898 = vsel %vm1095, %v2885, 0
        %v2901 = vsel %vm1095, %v2886, 0
        %v2904 = vsel %vm1095, %v2887, 0
        %v2907 = vsel %vm1095, %v2888, 0
        %v2910 = vsel %vm1095, %v2889, 0
        %v2913 = vsel %vm1095, %v2890, 0
        %v2916 = vsel %vm1144, %v2838, 0
        %2918 = vmatprep.subr.mxu0 0.0
        %2919 = vmatpush1.msra.mxu0 %v2916
        %2920 = vmatprep.subr.mxu0 0.0
        %2921 = vmatpush1.msra.mxu0 0.0
        %2922 = vmatprep.subr.mxu0 0.0
        %2923 = vmatpush1.msra.mxu0 0.0
        %2924 = vmatprep.subr.mxu0 0.0
        %2925 = vmatpush1.msra.mxu0 0.0
        %2926 = vmatprep.subr.mxu0 0.0
        %2927 = vmatpush1.msra.mxu0 0.0
        %2928 = vmatprep.subr.mxu0 0.0
        %2929 = vmatpush1.msra.mxu0 0.0
        %2930 = vmatprep.subr.mxu0 0.0
        %2931 = vmatpush1.msra.mxu0 0.0
        %2932 = vmatprep.subr.mxu0 0.0
        %2933 = vmatpush1.msra.mxu0 0.0
        %2934 = vmatprep.subr.mxu0 0.0
        %2935 = vmatpush1.msra.mxu0 0.0
        %2936 = vmatprep.subr.mxu0 0.0
        %2937 = vmatpush1.msra.mxu0 0.0
        %2938 = vmatprep.subr.mxu0 0.0
        %2939 = vmatpush1.msra.mxu0 0.0
        %2940 = vmatprep.subr.mxu0 0.0
        %2941 = vmatpush1.msra.mxu0 0.0
        %2942 = vmatprep.subr.mxu0 0.0
        %2943 = vmatpush1.msra.mxu0 0.0
        %2944 = vmatprep.subr.mxu0 0.0
        %2945 = vmatpush1.msra.mxu0 0.0
        %2946 = vmatprep.subr.mxu0 0.0
        %2947 = vmatpush1.msra.mxu0 0.0
        %2948 = vmatprep.subr.mxu0 0.0
        %2949 = vmatpush1.msra.mxu0 0.0
        %2950 = vmatprep.subr.mxu0 0.0
        %2951 = vmatpush1.msra.mxu0 0.0
        %2952 = vmatprep.subr.mxu0 0.0
        %2953 = vmatpush1.msra.mxu0 0.0
        %2954 = vmatprep.subr.mxu0 0.0
        %2955 = vmatpush1.msra.mxu0 0.0
        %2956 = vmatprep.subr.mxu0 0.0
        %2957 = vmatpush1.msra.mxu0 0.0
        %2958 = vmatprep.subr.mxu0 0.0
        %2959 = vmatpush1.msra.mxu0 0.0
        %2960 = vmatprep.subr.mxu0 0.0
        %2961 = vmatpush1.msra.mxu0 0.0
        %2962 = vmatprep.subr.mxu0 0.0
        %2963 = vmatpush1.msra.mxu0 0.0
        %2964 = vmatprep.subr.mxu0 0.0
        %2965 = vmatpush1.msra.mxu0 0.0
        %2966 = vmatprep.subr.mxu0 0.0
        %2967 = vmatpush1.msra.mxu0 0.0
        %2968 = vmatprep.subr.mxu0 0.0
        %2969 = vmatpush1.msra.mxu0 0.0
        %2970 = vmatprep.subr.mxu0 0.0
        %2971 = vmatpush1.msra.mxu0 0.0
        %2972 = vmatprep.subr.mxu0 0.0
        %2973 = vmatpush1.msra.mxu0 0.0
        %2974 = vmatprep.subr.mxu0 0.0
        %2975 = vmatpush1.msra.mxu0 0.0
        %2976 = vmatprep.subr.mxu0 0.0
        %2977 = vmatpush1.msra.mxu0 0.0
        %2978 = vmatprep.subr.mxu0 0.0
        %2979 = vmatpush1.msra.mxu0 0.0
        %2980 = vmatprep.subr.mxu0 0.0
        %2981 = vmatpush1.msra.mxu0 0.0
        %2982 = vmatprep.mubr.f32.mxu0 0.0
        %2983 = vmatmul.mubr.f32.gmra.mrb[0].mxu0 %v2892
        %v2984 = vpop.f32.mrb[0].mxu0
        %v2985 = vadd.f32 %v2861, %v2984
        %v2986 = vpop.f32.mrb[0].mxu0
        %2987 = vmatprep.mubr.f32.mxu0 0.0
        %2988 = vmatmul.mubr.f32.gmra.mrb[0].mxu0 %v2895
        %v2989 = vpop.f32.mrb[0].mxu0
        %v2990 = vadd.f32 %v2864, %v2989
        %v2991 = vpop.f32.mrb[0].mxu0
        %2992 = vmatprep.mubr.f32.mxu0 0.0
        %2993 = vmatmul.mubr.f32.gmra.mrb[0].mxu0 %v2898
        %v2994 = vpop.f32.mrb[0].mxu0
        %v2995 = vadd.f32 %v2867, %v2994
        %v2996 = vpop.f32.mrb[0].mxu0
        %2997 = vmatprep.mubr.f32.mxu0 0.0
        %2998 = vmatmul.mubr.f32.gmra.mrb[0].mxu0 %v2901
        %v2999 = vpop.f32.mrb[0].mxu0
        %v3000 = vadd.f32 %v2870, %v2999
        %v3001 = vpop.f32.mrb[0].mxu0
        %3002 = vmatprep.mubr.f32.mxu0 0.0
        %3003 = vmatmul.mubr.f32.gmra.mrb[0].mxu0 %v2904
        %v3004 = vpop.f32.mrb[0].mxu0
        %v3005 = vadd.f32 %v2873, %v3004
        %v3006 = vpop.f32.mrb[0].mxu0
        %3007 = vmatprep.mubr.f32.mxu0 0.0
        %3008 = vmatmul.mubr.f32.gmra.mrb[0].mxu0 %v2907
        %v3009 = vpop.f32.mrb[0].mxu0
        %v3010 = vadd.f32 %v2876, %v3009
        %v3011 = vpop.f32.mrb[0].mxu0
        %3012 = vmatprep.mubr.f32.mxu0 0.0
        %3013 = vmatmul.mubr.f32.gmra.mrb[0].mxu0 %v2910
        %v3014 = vpop.f32.mrb[0].mxu0
        %v3015 = vadd.f32 %v2879, %v3014
        %v3016 = vpop.f32.mrb[0].mxu0
        %3017 = vmatprep.mubr.f32.mxu0 0.0
        %3018 = vmatmul.mubr.f32.gmra.mrb[0].mxu0 %v2913
        %v3019 = vpop.f32.mrb[0].mxu0
        %v3020 = vadd.f32 %v2882, %v3019
        %v3021 = vpop.f32.mrb[0].mxu0
        %3022 = vdwg.mxu0
        %v3023 = vld [vmem:[%s49] sm:$0xff]
        %v3024 = vld [vmem:[%s49 + $0x8] sm:$0xff]
        %v3025 = vld [vmem:[%s49 + $0x10] sm:$0xff]
        %v3026 = vld [vmem:[%s49 + $0x18] sm:$0xff]
        %v3027 = vld [vmem:[%s49 + $0x20] sm:$0xff]
        %v3028 = vld [vmem:[%s49 + $0x28] sm:$0xff]
        %v3029 = vld [vmem:[%s49 + $0x30] sm:$0xff]
        %v3030 = vld [vmem:[%s49 + $0x38] sm:$0xff]
        %3032 = vset.pattern.permute.xlu0 0
        %3033 = vperm.xlu0 %3032, %v3023
        %v3034 = vpop.permute.xlu0 %3033
        %3037 = vset.pattern.permute.xlu0 0
        %3038 = vperm.xlu0 %3037, %v3024
        %v3039 = vpop.permute.xlu0 %3038
        %3042 = vset.pattern.permute.xlu0 0
        %3043 = vperm.xlu0 %3042, %v3025
        %v3044 = vpop.permute.xlu0 %3043
        %3047 = vset.pattern.permute.xlu0 0
        %3048 = vperm.xlu0 %3047, %v3026
        %v3049 = vpop.permute.xlu0 %3048
        %3052 = vset.pattern.permute.xlu0 0
        %3053 = vperm.xlu0 %3052, %v3027
        %v3054 = vpop.permute.xlu0 %3053
        %3057 = vset.pattern.permute.xlu0 0
        %3058 = vperm.xlu0 %3057, %v3028
        %v3059 = vpop.permute.xlu0 %3058
        %3062 = vset.pattern.permute.xlu0 0
        %3063 = vperm.xlu0 %3062, %v3029
        %v3064 = vpop.permute.xlu0 %3063
        %3067 = vset.pattern.permute.xlu0 0
        %3068 = vperm.xlu0 %3067, %v3030
        %v3069 = vpop.permute.xlu0 %3068
        %v3071 = vadd.f32 %v2985, %v3034
        %v3072 = vadd.f32 %v2990, %v3039
        %v3073 = vadd.f32 %v2995, %v3044
        %v3074 = vadd.f32 %v3000, %v3049
        %v3075 = vadd.f32 %v3005, %v3054
        %v3076 = vadd.f32 %v3010, %v3059
        %v3077 = vadd.f32 %v3015, %v3064
        %v3078 = vadd.f32 %v3020, %v3069
        %v3079 = vmul.f32 %v3071, 100.0
        %v3080 = vmul.f32 %v3072, 100.0
        %v3081 = vmul.f32 %v3073, 100.0
        %v3082 = vmul.f32 %v3074, 100.0
        %v3083 = vmul.f32 %v3075, 100.0
        %v3084 = vmul.f32 %v3076, 100.0
        %v3085 = vmul.f32 %v3077, 100.0
        %v3086 = vmul.f32 %v3078, 100.0
        %v3087 = vmin.f32 %v3079, 20.0
        %v3088 = vmin.f32 %v3080, 20.0
        %v3089 = vmin.f32 %v3081, 20.0
        %v3090 = vmin.f32 %v3082, 20.0
        %v3091 = vmin.f32 %v3083, 20.0
        %v3092 = vmin.f32 %v3084, 20.0
        %v3093 = vmin.f32 %v3085, 20.0
        %v3094 = vmin.f32 %v3086, 20.0
        %v3095 = vmul.f32 %v3087, 1.442695
        %v3096 = vpow.pop %v3095
        %v3097 = vmul.f32 %v3088, 1.442695
        %v3098 = vpow.pop %v3097
        %v3099 = vmul.f32 %v3089, 1.442695
        %v3100 = vpow.pop %v3099
        %v3101 = vmul.f32 %v3090, 1.442695
        %v3102 = vpow.pop %v3101
        %v3103 = vmul.f32 %v3091, 1.442695
        %v3104 = vpow.pop %v3103
        %v3105 = vmul.f32 %v3092, 1.442695
        %v3106 = vpow.pop %v3105
        %v3107 = vmul.f32 %v3093, 1.442695
        %v3108 = vpow.pop %v3107
        %v3109 = vmul.f32 %v3094, 1.442695
        %v3110 = vpow.pop %v3109
        %v3111 = vadd.f32 %v3096, 1.0
        %v3112 = vlog2.pop %v3111
        %v3113 = vmul.f32 %v3112, 0.6931472
        %v3114 = vmul.f32 -0.5, %v3096
        %v3115 = vadd.f32 %v3114, 1.0
        %v3116 = vmul.f32 %v3115, %v3096
        %v3117 = vand.u32 2147483647, %v3096
        %vm3118 = vcmp.lt.f32.partialorder %v3117, 0.0004427343
        %v3119 = vsel %vm3118, %v3116, %v3113
        %v3120 = vadd.f32 %v3098, 1.0
        %v3121 = vlog2.pop %v3120
        %v3122 = vmul.f32 %v3121, 0.6931472
        %v3123 = vmul.f32 -0.5, %v3098
        %v3124 = vadd.f32 %v3123, 1.0
        %v3125 = vmul.f32 %v3124, %v3098
        %v3126 = vand.u32 2147483647, %v3098
        %vm3127 = vcmp.lt.f32.partialorder %v3126, 0.0004427343
        %v3128 = vsel %vm3127, %v3125, %v3122
        %v3129 = vadd.f32 %v3100, 1.0
        %v3130 = vlog2.pop %v3129
        %v3131 = vmul.f32 %v3130, 0.6931472
        %v3132 = vmul.f32 -0.5, %v3100
        %v3133 = vadd.f32 %v3132, 1.0
        %v3134 = vmul.f32 %v3133, %v3100
        %v3135 = vand.u32 2147483647, %v3100
        %vm3136 = vcmp.lt.f32.partialorder %v3135, 0.0004427343
        %v3137 = vsel %vm3136, %v3134, %v3131
        %v3138 = vadd.f32 %v3102, 1.0
        %v3139 = vlog2.pop %v3138
        %v3140 = vmul.f32 %v3139, 0.6931472
        %v3141 = vmul.f32 -0.5, %v3102
        %v3142 = vadd.f32 %v3141, 1.0
        %v3143 = vmul.f32 %v3142, %v3102
        %v3144 = vand.u32 2147483647, %v3102
        %vm3145 = vcmp.lt.f32.partialorder %v3144, 0.0004427343
        %v3146 = vsel %vm3145, %v3143, %v3140
        %v3147 = vadd.f32 %v3104, 1.0
        %v3148 = vlog2.pop %v3147
        %v3149 = vmul.f32 %v3148, 0.6931472
        %v3150 = vmul.f32 -0.5, %v3104
        %v3151 = vadd.f32 %v3150, 1.0
        %v3152 = vmul.f32 %v3151, %v3104
        %v3153 = vand.u32 2147483647, %v3104
        %vm3154 = vcmp.lt.f32.partialorder %v3153, 0.0004427343
        %v3155 = vsel %vm3154, %v3152, %v3149
        %v3156 = vadd.f32 %v3106, 1.0
        %v3157 = vlog2.pop %v3156
        %v3158 = vmul.f32 %v3157, 0.6931472
        %v3159 = vmul.f32 -0.5, %v3106
        %v3160 = vadd.f32 %v3159, 1.0
        %v3161 = vmul.f32 %v3160, %v3106
        %v3162 = vand.u32 2147483647, %v3106
        %vm3163 = vcmp.lt.f32.partialorder %v3162, 0.0004427343
        %v3164 = vsel %vm3163, %v3161, %v3158
        %v3165 = vadd.f32 %v3108, 1.0
        %v3166 = vlog2.pop %v3165
        %v3167 = vmul.f32 %v3166, 0.6931472
        %v3168 = vmul.f32 -0.5, %v3108
        %v3169 = vadd.f32 %v3168, 1.0
        %v3170 = vmul.f32 %v3169, %v3108
        %v3171 = vand.u32 2147483647, %v3108
        %vm3172 = vcmp.lt.f32.partialorder %v3171, 0.0004427343
        %v3173 = vsel %vm3172, %v3170, %v3167
        %v3174 = vadd.f32 %v3110, 1.0
        %v3175 = vlog2.pop %v3174
        %v3176 = vmul.f32 %v3175, 0.6931472
        %v3177 = vmul.f32 -0.5, %v3110
        %v3178 = vadd.f32 %v3177, 1.0
        %v3179 = vmul.f32 %v3178, %v3110
        %v3180 = vand.u32 2147483647, %v3110
        %vm3181 = vcmp.lt.f32.partialorder %v3180, 0.0004427343
        %v3182 = vsel %vm3181, %v3179, %v3176
        %v3183 = vrcp.pop 100.0
        %v3184 = vmul.f32 %v3119, %v3183
        %v3185 = vmul.f32 %v3128, %v3183
        %v3186 = vmul.f32 %v3137, %v3183
        %v3187 = vmul.f32 %v3146, %v3183
        %v3188 = vmul.f32 %v3155, %v3183
        %v3189 = vmul.f32 %v3164, %v3183
        %v3190 = vmul.f32 %v3173, %v3183
        %v3191 = vmul.f32 %v3182, %v3183
        %vm3192 = vcmp.gt.f32.partialorder %v3079, 20.0
        %vm3193 = vcmp.gt.f32.partialorder %v3080, 20.0
        %vm3194 = vcmp.gt.f32.partialorder %v3081, 20.0
        %vm3195 = vcmp.gt.f32.partialorder %v3082, 20.0
        %vm3196 = vcmp.gt.f32.partialorder %v3083, 20.0
        %vm3197 = vcmp.gt.f32.partialorder %v3084, 20.0
        %vm3198 = vcmp.gt.f32.partialorder %v3085, 20.0
        %vm3199 = vcmp.gt.f32.partialorder %v3086, 20.0
        %v3200 = vsel %vm3192, %v3071, %v3184
        %v3201 = vsel %vm3193, %v3072, %v3185
        %v3202 = vsel %vm3194, %v3073, %v3186
        %v3203 = vsel %vm3195, %v3074, %v3187
        %v3204 = vsel %vm3196, %v3075, %v3188
        %v3205 = vsel %vm3197, %v3076, %v3189
        %v3206 = vsel %vm3198, %v3077, %v3190
        %v3207 = vsel %vm3199, %v3078, %v3191
        %v3208 = vld [vmem:[%s51] sm:$0xff]
        %v3209 = vld [vmem:[%s51 + $0x8] sm:$0xff]
        %v3210 = vld [vmem:[%s51 + $0x10] sm:$0xff]
        %v3211 = vld [vmem:[%s51 + $0x18] sm:$0xff]
        %v3212 = vld [vmem:[%s51 + $0x20] sm:$0xff]
        %v3213 = vld [vmem:[%s51 + $0x28] sm:$0xff]
        %v3214 = vld [vmem:[%s51 + $0x30] sm:$0xff]
        %v3215 = vld [vmem:[%s51 + $0x38] sm:$0xff]
        %v3216 = vld [vmem:[%s53] sm:$0xff]
        %v3217 = vld [vmem:[%s53 + $0x8] sm:$0xff]
        %v3218 = vld [vmem:[%s53 + $0x10] sm:$0xff]
        %v3219 = vld [vmem:[%s53 + $0x18] sm:$0xff]
        %v3220 = vld [vmem:[%s53 + $0x20] sm:$0xff]
        %v3221 = vld [vmem:[%s53 + $0x28] sm:$0xff]
        %v3222 = vld [vmem:[%s53 + $0x30] sm:$0xff]
        %v3223 = vld [vmem:[%s53 + $0x38] sm:$0xff]
        %3225 = vset.pattern.permute.xlu0 0
        %3226 = vperm.xlu0 %3225, %v3216
        %v3227 = vpop.permute.xlu0 %3226
        %3230 = vset.pattern.permute.xlu0 0
        %3231 = vperm.xlu0 %3230, %v3217
        %v3232 = vpop.permute.xlu0 %3231
        %3235 = vset.pattern.permute.xlu0 0
        %3236 = vperm.xlu0 %3235, %v3218
        %v3237 = vpop.permute.xlu0 %3236
        %3240 = vset.pattern.permute.xlu0 0
        %3241 = vperm.xlu0 %3240, %v3219
        %v3242 = vpop.permute.xlu0 %3241
        %3245 = vset.pattern.permute.xlu0 0
        %3246 = vperm.xlu0 %3245, %v3220
        %v3247 = vpop.permute.xlu0 %3246
        %3250 = vset.pattern.permute.xlu0 0
        %3251 = vperm.xlu0 %3250, %v3221
        %v3252 = vpop.permute.xlu0 %3251
        %3255 = vset.pattern.permute.xlu0 0
        %3256 = vperm.xlu0 %3255, %v3222
        %v3257 = vpop.permute.xlu0 %3256
        %3260 = vset.pattern.permute.xlu0 0
        %3261 = vperm.xlu0 %3260, %v3223
        %v3262 = vpop.permute.xlu0 %3261
        %v3265 = vsel %vm1776, %v3208, 0
        %v3268 = vsel %vm1776, %v3209, 0
        %v3271 = vsel %vm1776, %v3210, 0
        %v3274 = vsel %vm1776, %v3211, 0
        %v3277 = vsel %vm1776, %v3212, 0
        %v3280 = vsel %vm1776, %v3213, 0
        %v3283 = vsel %vm1776, %v3214, 0
        %v3286 = vsel %vm1776, %v3215, 0
        %3288 = vmatprep.subr.mxu0 0.0
        %3289 = vmatpush1.msra.mxu0 %v3200
        %3290 = vmatprep.subr.mxu0 0.0
        %3291 = vmatpush1.msra.mxu0 %v3201
        %3292 = vmatprep.subr.mxu0 0.0
        %3293 = vmatpush1.msra.mxu0 %v3202
        %3294 = vmatprep.subr.mxu0 0.0
        %3295 = vmatpush1.msra.mxu0 %v3203
        %3296 = vmatprep.subr.mxu0 0.0
        %3297 = vmatpush1.msra.mxu0 %v3204
        %3298 = vmatprep.subr.mxu0 0.0
        %3299 = vmatpush1.msra.mxu0 %v3205
        %3300 = vmatprep.subr.mxu0 0.0
        %3301 = vmatpush1.msra.mxu0 %v3206
        %3302 = vmatprep.subr.mxu0 0.0
        %3303 = vmatpush1.msra.mxu0 %v3207
        %3304 = vmatprep.subr.mxu0 0.0
        %3305 = vmatpush1.msra.mxu0 0.0
        %3306 = vmatprep.subr.mxu0 0.0
        %3307 = vmatpush1.msra.mxu0 0.0
        %3308 = vmatprep.subr.mxu0 0.0
        %3309 = vmatpush1.msra.mxu0 0.0
        %3310 = vmatprep.subr.mxu0 0.0
        %3311 = vmatpush1.msra.mxu0 0.0
        %3312 = vmatprep.subr.mxu0 0.0
        %3313 = vmatpush1.msra.mxu0 0.0
        %3314 = vmatprep.subr.mxu0 0.0
        %3315 = vmatpush1.msra.mxu0 0.0
        %3316 = vmatprep.subr.mxu0 0.0
        %3317 = vmatpush1.msra.mxu0 0.0
        %3318 = vmatprep.subr.mxu0 0.0
        %3319 = vmatpush1.msra.mxu0 0.0
        %3320 = vmatprep.subr.mxu0 0.0
        %3321 = vmatpush1.msra.mxu0 0.0
        %3322 = vmatprep.subr.mxu0 0.0
        %3323 = vmatpush1.msra.mxu0 0.0
        %3324 = vmatprep.subr.mxu0 0.0
        %3325 = vmatpush1.msra.mxu0 0.0
        %3326 = vmatprep.subr.mxu0 0.0
        %3327 = vmatpush1.msra.mxu0 0.0
        %3328 = vmatprep.subr.mxu0 0.0
        %3329 = vmatpush1.msra.mxu0 0.0
        %3330 = vmatprep.subr.mxu0 0.0
        %3331 = vmatpush1.msra.mxu0 0.0
        %3332 = vmatprep.subr.mxu0 0.0
        %3333 = vmatpush1.msra.mxu0 0.0
        %3334 = vmatprep.subr.mxu0 0.0
        %3335 = vmatpush1.msra.mxu0 0.0
        %3336 = vmatprep.subr.mxu0 0.0
        %3337 = vmatpush1.msra.mxu0 0.0
        %3338 = vmatprep.subr.mxu0 0.0
        %3339 = vmatpush1.msra.mxu0 0.0
        %3340 = vmatprep.subr.mxu0 0.0
        %3341 = vmatpush1.msra.mxu0 0.0
        %3342 = vmatprep.subr.mxu0 0.0
        %3343 = vmatpush1.msra.mxu0 0.0
        %3344 = vmatprep.subr.mxu0 0.0
        %3345 = vmatpush1.msra.mxu0 0.0
        %3346 = vmatprep.subr.mxu0 0.0
        %3347 = vmatpush1.msra.mxu0 0.0
        %3348 = vmatprep.subr.mxu0 0.0
        %3349 = vmatpush1.msra.mxu0 0.0
        %3350 = vmatprep.subr.mxu0 0.0
        %3351 = vmatpush1.msra.mxu0 0.0
        %3352 = vmatprep.mubr.f32.mxu0 0.0
        %3353 = vmatmul.mubr.f32.gmra.mrb[0].mxu0 %v3265
        %v3354 = vpop.f32.mrb[0].mxu0
        %v3355 = vadd.f32 %v3227, %v3354
        %v3356 = vpop.f32.mrb[0].mxu0
        %3357 = vmatprep.mubr.f32.mxu0 0.0
        %3358 = vmatmul.mubr.f32.gmra.mrb[0].mxu0 %v3268
        %v3359 = vpop.f32.mrb[0].mxu0
        %v3360 = vadd.f32 %v3232, %v3359
        %v3361 = vpop.f32.mrb[0].mxu0
        %3362 = vmatprep.mubr.f32.mxu0 0.0
        %3363 = vmatmul.mubr.f32.gmra.mrb[0].mxu0 %v3271
        %v3364 = vpop.f32.mrb[0].mxu0
        %v3365 = vadd.f32 %v3237, %v3364
        %v3366 = vpop.f32.mrb[0].mxu0
        %3367 = vmatprep.mubr.f32.mxu0 0.0
        %3368 = vmatmul.mubr.f32.gmra.mrb[0].mxu0 %v3274
        %v3369 = vpop.f32.mrb[0].mxu0
        %v3370 = vadd.f32 %v3242, %v3369
        %v3371 = vpop.f32.mrb[0].mxu0
        %3372 = vmatprep.mubr.f32.mxu0 0.0
        %3373 = vmatmul.mubr.f32.gmra.mrb[0].mxu0 %v3277
        %v3374 = vpop.f32.mrb[0].mxu0
        %v3375 = vadd.f32 %v3247, %v3374
        %v3376 = vpop.f32.mrb[0].mxu0
        %3377 = vmatprep.mubr.f32.mxu0 0.0
        %3378 = vmatmul.mubr.f32.gmra.mrb[0].mxu0 %v3280
        %v3379 = vpop.f32.mrb[0].mxu0
        %v3380 = vadd.f32 %v3252, %v3379
        %v3381 = vpop.f32.mrb[0].mxu0
        %3382 = vmatprep.mubr.f32.mxu0 0.0
        %3383 = vmatmul.mubr.f32.gmra.mrb[0].mxu0 %v3283
        %v3384 = vpop.f32.mrb[0].mxu0
        %v3385 = vadd.f32 %v3257, %v3384
        %v3386 = vpop.f32.mrb[0].mxu0
        %3387 = vmatprep.mubr.f32.mxu0 0.0
        %3388 = vmatmul.mubr.f32.gmra.mrb[0].mxu0 %v3286
        %v3389 = vpop.f32.mrb[0].mxu0
        %v3390 = vadd.f32 %v3262, %v3389
        %v3391 = vpop.f32.mrb[0].mxu0
        %3392 = vdwg.mxu0
        %v3393 = vmul.f32 %v3355, 100.0
        %v3394 = vmul.f32 %v3360, 100.0
        %v3395 = vmul.f32 %v3365, 100.0
        %v3396 = vmul.f32 %v3370, 100.0
        %v3397 = vmul.f32 %v3375, 100.0
        %v3398 = vmul.f32 %v3380, 100.0
        %v3399 = vmul.f32 %v3385, 100.0
        %v3400 = vmul.f32 %v3390, 100.0
        %v3401 = vmin.f32 %v3393, 20.0
        %v3402 = vmin.f32 %v3394, 20.0
        %v3403 = vmin.f32 %v3395, 20.0
        %v3404 = vmin.f32 %v3396, 20.0
        %v3405 = vmin.f32 %v3397, 20.0
        %v3406 = vmin.f32 %v3398, 20.0
        %v3407 = vmin.f32 %v3399, 20.0
        %v3408 = vmin.f32 %v3400, 20.0
        %v3409 = vmul.f32 %v3401, 1.442695
        %v3410 = vpow.pop %v3409
        %v3411 = vmul.f32 %v3402, 1.442695
        %v3412 = vpow.pop %v3411
        %v3413 = vmul.f32 %v3403, 1.442695
        %v3414 = vpow.pop %v3413
        %v3415 = vmul.f32 %v3404, 1.442695
        %v3416 = vpow.pop %v3415
        %v3417 = vmul.f32 %v3405, 1.442695
        %v3418 = vpow.pop %v3417
        %v3419 = vmul.f32 %v3406, 1.442695
        %v3420 = vpow.pop %v3419
        %v3421 = vmul.f32 %v3407, 1.442695
        %v3422 = vpow.pop %v3421
        %v3423 = vmul.f32 %v3408, 1.442695
        %v3424 = vpow.pop %v3423
        %v3425 = vadd.f32 %v3410, 1.0
        %v3426 = vlog2.pop %v3425
        %v3427 = vmul.f32 %v3426, 0.6931472
        %v3428 = vmul.f32 -0.5, %v3410
        %v3429 = vadd.f32 %v3428, 1.0
        %v3430 = vmul.f32 %v3429, %v3410
        %v3431 = vand.u32 2147483647, %v3410
        %vm3432 = vcmp.lt.f32.partialorder %v3431, 0.0004427343
        %v3433 = vsel %vm3432, %v3430, %v3427
        %v3434 = vadd.f32 %v3412, 1.0
        %v3435 = vlog2.pop %v3434
        %v3436 = vmul.f32 %v3435, 0.6931472
        %v3437 = vmul.f32 -0.5, %v3412
        %v3438 = vadd.f32 %v3437, 1.0
        %v3439 = vmul.f32 %v3438, %v3412
        %v3440 = vand.u32 2147483647, %v3412
        %vm3441 = vcmp.lt.f32.partialorder %v3440, 0.0004427343
        %v3442 = vsel %vm3441, %v3439, %v3436
        %v3443 = vadd.f32 %v3414, 1.0
        %v3444 = vlog2.pop %v3443
        %v3445 = vmul.f32 %v3444, 0.6931472
        %v3446 = vmul.f32 -0.5, %v3414
        %v3447 = vadd.f32 %v3446, 1.0
        %v3448 = vmul.f32 %v3447, %v3414
        %v3449 = vand.u32 2147483647, %v3414
        %vm3450 = vcmp.lt.f32.partialorder %v3449, 0.0004427343
        %v3451 = vsel %vm3450, %v3448, %v3445
        %v3452 = vadd.f32 %v3416, 1.0
        %v3453 = vlog2.pop %v3452
        %v3454 = vmul.f32 %v3453, 0.6931472
        %v3455 = vmul.f32 -0.5, %v3416
        %v3456 = vadd.f32 %v3455, 1.0
        %v3457 = vmul.f32 %v3456, %v3416
        %v3458 = vand.u32 2147483647, %v3416
        %vm3459 = vcmp.lt.f32.partialorder %v3458, 0.0004427343
        %v3460 = vsel %vm3459, %v3457, %v3454
        %v3461 = vadd.f32 %v3418, 1.0
        %v3462 = vlog2.pop %v3461
        %v3463 = vmul.f32 %v3462, 0.6931472
        %v3464 = vmul.f32 -0.5, %v3418
        %v3465 = vadd.f32 %v3464, 1.0
        %v3466 = vmul.f32 %v3465, %v3418
        %v3467 = vand.u32 2147483647, %v3418
        %vm3468 = vcmp.lt.f32.partialorder %v3467, 0.0004427343
        %v3469 = vsel %vm3468, %v3466, %v3463
        %v3470 = vadd.f32 %v3420, 1.0
        %v3471 = vlog2.pop %v3470
        %v3472 = vmul.f32 %v3471, 0.6931472
        %v3473 = vmul.f32 -0.5, %v3420
        %v3474 = vadd.f32 %v3473, 1.0
        %v3475 = vmul.f32 %v3474, %v3420
        %v3476 = vand.u32 2147483647, %v3420
        %vm3477 = vcmp.lt.f32.partialorder %v3476, 0.0004427343
        %v3478 = vsel %vm3477, %v3475, %v3472
        %v3479 = vadd.f32 %v3422, 1.0
        %v3480 = vlog2.pop %v3479
        %v3481 = vmul.f32 %v3480, 0.6931472
        %v3482 = vmul.f32 -0.5, %v3422
        %v3483 = vadd.f32 %v3482, 1.0
        %v3484 = vmul.f32 %v3483, %v3422
        %v3485 = vand.u32 2147483647, %v3422
        %vm3486 = vcmp.lt.f32.partialorder %v3485, 0.0004427343
        %v3487 = vsel %vm3486, %v3484, %v3481
        %v3488 = vadd.f32 %v3424, 1.0
        %v3489 = vlog2.pop %v3488
        %v3490 = vmul.f32 %v3489, 0.6931472
        %v3491 = vmul.f32 -0.5, %v3424
        %v3492 = vadd.f32 %v3491, 1.0
        %v3493 = vmul.f32 %v3492, %v3424
        %v3494 = vand.u32 2147483647, %v3424
        %vm3495 = vcmp.lt.f32.partialorder %v3494, 0.0004427343
        %v3496 = vsel %vm3495, %v3493, %v3490
        %v3497 = vmul.f32 %v3433, %v3183
        %v3498 = vmul.f32 %v3442, %v3183
        %v3499 = vmul.f32 %v3451, %v3183
        %v3500 = vmul.f32 %v3460, %v3183
        %v3501 = vmul.f32 %v3469, %v3183
        %v3502 = vmul.f32 %v3478, %v3183
        %v3503 = vmul.f32 %v3487, %v3183
        %v3504 = vmul.f32 %v3496, %v3183
        %vm3505 = vcmp.gt.f32.partialorder %v3393, 20.0
        %vm3506 = vcmp.gt.f32.partialorder %v3394, 20.0
        %vm3507 = vcmp.gt.f32.partialorder %v3395, 20.0
        %vm3508 = vcmp.gt.f32.partialorder %v3396, 20.0
        %vm3509 = vcmp.gt.f32.partialorder %v3397, 20.0
        %vm3510 = vcmp.gt.f32.partialorder %v3398, 20.0
        %vm3511 = vcmp.gt.f32.partialorder %v3399, 20.0
        %vm3512 = vcmp.gt.f32.partialorder %v3400, 20.0
        %v3513 = vsel %vm3505, %v3355, %v3497
        %v3514 = vsel %vm3506, %v3360, %v3498
        %v3515 = vsel %vm3507, %v3365, %v3499
        %v3516 = vsel %vm3508, %v3370, %v3500
        %v3517 = vsel %vm3509, %v3375, %v3501
        %v3518 = vsel %vm3510, %v3380, %v3502
        %v3519 = vsel %vm3511, %v3385, %v3503
        %v3520 = vsel %vm3512, %v3390, %v3504
        %v3521 = vld [vmem:[%s55] sm:$0xff]
        %v3522 = vld [vmem:[%s55 + $0x8] sm:$0xff]
        %v3523 = vld [vmem:[%s55 + $0x10] sm:$0xff]
        %v3524 = vld [vmem:[%s55 + $0x18] sm:$0xff]
        %v3525 = vld [vmem:[%s55 + $0x20] sm:$0xff]
        %v3526 = vld [vmem:[%s55 + $0x28] sm:$0xff]
        %v3527 = vld [vmem:[%s55 + $0x30] sm:$0xff]
        %v3528 = vld [vmem:[%s55 + $0x38] sm:$0xff]
        %3530 = vset.pattern.permute.xlu0 0
        %3531 = vperm.xlu0 %3530, %v3521
        %v3532 = vpop.permute.xlu0 %3531
        %3535 = vset.pattern.permute.xlu0 0
        %3536 = vperm.xlu0 %3535, %v3522
        %v3537 = vpop.permute.xlu0 %3536
        %3540 = vset.pattern.permute.xlu0 0
        %3541 = vperm.xlu0 %3540, %v3523
        %v3542 = vpop.permute.xlu0 %3541
        %3545 = vset.pattern.permute.xlu0 0
        %3546 = vperm.xlu0 %3545, %v3524
        %v3547 = vpop.permute.xlu0 %3546
        %3550 = vset.pattern.permute.xlu0 0
        %3551 = vperm.xlu0 %3550, %v3525
        %v3552 = vpop.permute.xlu0 %3551
        %3555 = vset.pattern.permute.xlu0 0
        %3556 = vperm.xlu0 %3555, %v3526
        %v3557 = vpop.permute.xlu0 %3556
        %3560 = vset.pattern.permute.xlu0 0
        %3561 = vperm.xlu0 %3560, %v3527
        %v3562 = vpop.permute.xlu0 %3561
        %3565 = vset.pattern.permute.xlu0 0
        %3566 = vperm.xlu0 %3565, %v3528
        %v3567 = vpop.permute.xlu0 %3566
        %v3569 = vmul.f32 %v3513, %v3532
        %v3570 = vmul.f32 %v3514, %v3537
        %v3571 = vmul.f32 %v3515, %v3542
        %v3572 = vmul.f32 %v3516, %v3547
        %v3573 = vmul.f32 %v3517, %v3552
        %v3574 = vmul.f32 %v3518, %v3557
        %v3575 = vmul.f32 %v3519, %v3562
        %v3576 = vmul.f32 %v3520, %v3567
        %v3577 = vadd.f32 %v3569, %v3570
        %v3578 = vadd.f32 %v3577, %v3571
        %v3579 = vadd.f32 %v3578, %v3572
        %v3580 = vadd.f32 %v3579, %v3573
        %v3581 = vadd.f32 %v3580, %v3574
        %v3582 = vadd.f32 %v3581, %v3575
        %v3583 = vadd.f32 %v3582, %v3576
        %v3584 = vrot.slane %v3583, 4
        %v3585 = vadd.f32 %v3583, %v3584
        %v3586 = vrot.slane %v3585, 2
        %v3587 = vadd.f32 %v3585, %v3586
        %v3588 = vrot.slane %v3587, 1
        %v3589 = vadd.f32 %v3587, %v3588
        %v3590 = vld [vmem:[#allocation2] sm:$0x1]
        %3592 = vset.pattern.permute.xlu0 0
        %3593 = vperm.xlu0 %3592, %v3590
        %v3594 = vpop.permute.xlu0 %3593
        %v3596 = vlaneseq
        %v3597 = vshrl.u32 %v3596, 7
        %v3598 = vsub.s32 0, %v3597
        %v3599 = vrot.slane %v3594, %v3598
        %v3600 = vadd.f32 %v3589, %v3599
        %3601 = vst [vmem:[%s1023] sm:$0x1] %v3600
        %s3602 = sand.u32 %s722, 1
        %s3603 = scalar_lea.sflag [#allocation4], %s3602
        %s3604 = sand.u32 %s722, 1
        %s3605 = scalar_lea.vmem [#allocation3], %s3604
        %s3606 = sand.u32 %s85, 1
        %s3607 = scalar_lea.sflag [#allocation6], %s3606
        %s3608 = sand.u32 %s748, 1
        %s3609 = scalar_lea.vmem [#allocation5], %s3608
        %s3610 = sand.u32 %s85, 1
        %s3611 = scalar_lea.sflag [#allocation6], %s3610
        %s3612 = sand.u32 %s774, 1
        %s3613 = scalar_lea.vmem [#allocation7], %s3612
        %p3614 = scmp.lt.s32.totalorder %s85, 1
        %s3615 = scalar_select %p3614, %s85, 1
        %s3616 = scalar_lea.vmem %s65, %s3615
        // Predicated region
        $region137: #{implicit_generator_forward.1} parent=135 // pred_check
          %p3617 = pneg %p732
        $region138: #{implicit_generator_forward.1} parent=135 // pred_check_branch
          %3619 = sbr.rel (%p3617) target = $region140
        $region139: #{implicit_generator_forward.1} parent=135 // pred_region
          %s3621 = ssub.s32 16, 16
          %3622 = vsyncadd %s3603, %s3621
          %s3623 = smul.addr %s85, 16
          %s3624 = scalar_lea.hbm %s59, %s3623
          %s3626 = sshll.u32 %s3605, 4
          %s3627 = int_to_ptr.vmem [resolvable:$true] %s3626
          %3629 = dma.vmem_to_hbm [thread:$0]  %s3627, 16, %s3624, %s3603
        $region140: #{implicit_generator_forward.1} parent=135 // pred_fallthru
          _
        // Predicated region
        $region141: #{implicit_generator_forward.1} parent=135 // pred_check
          %p3630 = pneg %p758
        $region142: #{implicit_generator_forward.1} parent=135 // pred_check_branch
          %3632 = sbr.rel (%p3630) target = $region144
        $region143: #{implicit_generator_forward.1} parent=135 // pred_region
          %s3634 = ssub.s32 16, 16
          %3635 = vsyncadd %s3607, %s3634
          %s3636 = smul.addr %s85, 16
          %s3637 = scalar_lea.hbm %s61, %s3636
          %s3639 = sshll.u32 %s3609, 4
          %s3640 = int_to_ptr.vmem [resolvable:$true] %s3639
          %3642 = dma.vmem_to_hbm [thread:$0]  %s3640, 16, %s3637, %s3607
        $region144: #{implicit_generator_forward.1} parent=135 // pred_fallthru
          _
        // Predicated region
        $region145: #{implicit_generator_forward.1} parent=135 // pred_check
          %p3643 = pneg %p784
        $region146: #{implicit_generator_forward.1} parent=135 // pred_check_branch
          %3645 = sbr.rel (%p3643) target = $region148
        $region147: #{implicit_generator_forward.1} parent=135 // pred_region
          %s3647 = ssub.s32 16, 16
          %3648 = vsyncadd %s3611, %s3647
          %s3649 = smul.addr %s85, 16
          %s3650 = scalar_lea.hbm %s63, %s3649
          %s3652 = sshll.u32 %s3613, 4
          %s3653 = int_to_ptr.vmem [resolvable:$true] %s3652
          %3655 = dma.vmem_to_hbm [thread:$0]  %s3653, 16, %s3650, %s3611
        $region148: #{implicit_generator_forward.1} parent=135 // pred_fallthru
          _
        // Predicated region
        $region149: #{implicit_generator_forward.1} parent=135 // pred_check
          %p3656 = pneg %p810
        $region150: #{implicit_generator_forward.1} parent=135 // pred_check_branch
          %3658 = sbr.rel (%p3656) target = $region152
        $region151: #{implicit_generator_forward.1} parent=135 // pred_region
          _
        $region152: #{implicit_generator_forward.1} parent=135 // pred_fallthru
          _
      $region136: #{implicit_generator_forward.1} parent=5 // pred_fallthru
        _
      %p3659 = scmp.le.s32.totalorder 2, %s80
      // Predicated region
      $region153: #{implicit_generator_forward.1} parent=5 // pred_check
        %p3660 = pneg %p3659
      $region154: #{implicit_generator_forward.1} parent=5 // pred_check_branch
        %3662 = sbr.rel (%p3660) target = $region156
      $region155: #{implicit_generator_forward.1} parent=5 // pred_region
        %s3663 = ssub.s32 %s80, 2
        // Predicated region
        $region157: #{implicit_generator_forward.1} parent=155 // pred_check
          %p3664 = pneg %p738
        $region158: #{implicit_generator_forward.1} parent=155 // pred_check_branch
          %3666 = sbr.rel (%p3664) target = $region160
        $region159: #{implicit_generator_forward.1} parent=155 // pred_region
          %s3667 = sand.u32 %s723, 1
          %s3668 = scalar_lea.sflag [#allocation4], %s3667
          %s3669 = sand.u32 %s723, 1
          %s3670 = scalar_lea.vmem [#allocation3], %s3669
          %3671 = dma.done %s3668, 16
        $region160: #{implicit_generator_forward.1} parent=155 // pred_fallthru
          _
        // Predicated region
        $region161: #{implicit_generator_forward.1} parent=155 // pred_check
          %p3672 = pneg %p764
        $region162: #{implicit_generator_forward.1} parent=155 // pred_check_branch
          %3674 = sbr.rel (%p3672) target = $region164
        $region163: #{implicit_generator_forward.1} parent=155 // pred_region
          %s3675 = sand.u32 %s86, 1
          %s3676 = scalar_lea.sflag [#allocation6], %s3675
          %s3677 = sand.u32 %s749, 1
          %s3678 = scalar_lea.vmem [#allocation5], %s3677
          %3679 = dma.done %s3676, 16
        $region164: #{implicit_generator_forward.1} parent=155 // pred_fallthru
          _
        // Predicated region
        $region165: #{implicit_generator_forward.1} parent=155 // pred_check
          %p3680 = pneg %p790
        $region166: #{implicit_generator_forward.1} parent=155 // pred_check_branch
          %3682 = sbr.rel (%p3680) target = $region168
        $region167: #{implicit_generator_forward.1} parent=155 // pred_region
          %s3683 = sand.u32 %s86, 1
          %s3684 = scalar_lea.sflag [#allocation6], %s3683
          %s3685 = sand.u32 %s775, 1
          %s3686 = scalar_lea.vmem [#allocation7], %s3685
          %3687 = dma.done %s3684, 16
        $region168: #{implicit_generator_forward.1} parent=155 // pred_fallthru
          _
        // Predicated region
        $region169: #{implicit_generator_forward.1} parent=155 // pred_check
          %p3688 = pneg %p816
        $region170: #{implicit_generator_forward.1} parent=155 // pred_check_branch
          %3690 = sbr.rel (%p3688) target = $region172
        $region171: #{implicit_generator_forward.1} parent=155 // pred_region
          %p3691 = scmp.lt.s32.totalorder %s86, 1
          %s3692 = scalar_select %p3691, %s86, 1
          %s3693 = scalar_lea.vmem %s65, %s3692
        $region172: #{implicit_generator_forward.1} parent=155 // pred_fallthru
          _
      $region156: #{implicit_generator_forward.1} parent=5 // pred_fallthru
        _
    $region6: #{implicit_generator_forward.1} parent=1 // loop_footer
      %s84 = sadd.s32 1, %s80
    $region7: #{implicit_generator_forward.1} parent=1 // loop_footer_branch
      %79 = sbr.rel target = $region3
    $region8: #{implicit_generator_forward.1} parent=1 // loop_exit
      _
    %3694 = vsyncpa [#allocation4], 1
    %s3695 = scalar_lea.sflag [#allocation4], 1
    %3696 = vsyncpa %s3695, 1
    %3697 = vsyncpa [#allocation6], 1
    %s3698 = scalar_lea.sflag [#allocation6], 1
    %3699 = vsyncpa %s3698, 1

</llo_original>
